<compile_context>
chip_gen: v7x
topology: tpu7x:2x2x1
jax: 0.10.0
libtpu: 0.0.40
codegen_flags: <defaults>
</compile_context>

<pallas_src>
import jax
import jax.numpy as jnp
from jax import lax
from jax.experimental import pallas as pl
from jax.experimental.pallas import tpu as pltpu

# ---------------- shapes / hyper-parameters ----------------
B = 2
C = 4                    # channels ("ch")
H = W = 16               # spatial
K = 5                    # kernel_size (padding=2 -> same spatial size)
PAD = 2
HP = H + 2 * PAD         # 20
WP = W + 2 * PAD         # 20
FLAT = HP * WP           # 400   flattened padded image (row stride WP)
WIDE = H * WP            # 320   wide-row output layout per batch
STRIDE = 448             # per-batch slab stride: >= FLAT and STRIDE+WIDE % 128 == 0
N_SLAB = STRIDE + WIDE   # 768 = 6*128   matmul N dim (both batches side by side)
XLEN = B * STRIDE        # 896 >= max tap offset (84) + N_SLAB (768) = 852
T = K * K                # 25 taps
SROWS = T * C + 4        # 104: 100 tap rows + 1 ones(bias) row + 3 zero pad rows
INNER = PAD * WP + PAD   # 42: flat offset of (row=PAD, col=PAD)
ALPHA = 1.0              # nn.ELU() default


def _elu(x):
    # exact ELU: x if x > 0 else alpha*(exp(x)-1); min() guards exp overflow on
    # the (unused) positive branch.
    return jnp.where(x > 0.0, x, ALPHA * (jnp.exp(jnp.minimum(x, 0.0)) - 1.0))


# ---------------- fused kernel: conv1 + ELU + conv2 + residual ----------------
def residual_layer_kernel(xp_ref, w_ref, mask_ref, o_ref, stk_ref, yp_ref):
    """
    xp_ref   : (C, XLEN)        padded inputs; batch b's padded image at cols [b*448, b*448+400)
    w_ref    : (2, C, SROWS)    packed weights: [conv][co, t*C+ci], col 100 = bias, 101..103 = 0
    mask_ref : (C, N_SLAB)      1.0 on valid wide output columns, 0.0 on junk columns
    o_ref    : (C, N_SLAB)      output slab (lane-dense, 6 full vregs wide)
    stk_ref  : VMEM (SROWS, N_SLAB)   im2col scratch, reused by both convs
    yp_ref   : VMEM (C, XLEN)         zero-padded conv1 activation (conv2 input)
    """
    # Bias / pad rows of the im2col matrix: set once, reused by both convs.
    stk_ref[T * C:T * C + 1, :] = jnp.ones((1, N_SLAB), jnp.float32)
    stk_ref[T * C + 1:SROWS, :] = jnp.zeros((SROWS - T * C - 1, N_SLAB), jnp.float32)

    # ---- conv1: stack 25 lane-shifted slices (both batches at once), 1 matmul ----
    for t in range(T):
        off = (t // K) * WP + (t % K)                       # dh*WP + dw
        stk_ref[t * C:(t + 1) * C, :] = xp_ref[:, off:off + N_SLAB]
    y1 = jnp.dot(w_ref[0], stk_ref[...], preferred_element_type=jnp.float32)
    # mask re-zeroes junk columns -> they become conv2's zero padding
    y1 = _elu(y1) * mask_ref[...]

    # ---- conv2: write zero-padded activation, stack 25 slices, 1 matmul ----
    yp_ref[...] = jnp.zeros_like(yp_ref)
    yp_ref[:, INNER:INNER + N_SLAB] = y1
    for t in range(T):
        off = (t // K) * WP + (t % K)
        stk_ref[t * C:(t + 1) * C, :] = yp_ref[:, off:off + N_SLAB]
    res = jnp.dot(w_ref[1], stk_ref[...], preferred_element_type=jnp.float32)

    # ---- residual: x in wide layout == interior slice of the padded input ----
    o_ref[...] = xp_ref[:, INNER:INNER + N_SLAB] + res


# ---------------- wrapper ----------------
@jax.jit
def residual_layer(x, w1, b1, w2, b2):
    x = x.astype(jnp.float32)

    # zero-pad spatially, flatten padded rows, place each batch at a 448-col slab
    xpad = jnp.pad(x, ((0, 0), (0, 0), (PAD, PAD), (PAD, PAD))).reshape(B, C, FLAT)
    xpad = jnp.pad(xpad, ((0, 0), (0, 0), (0, STRIDE - FLAT)))        # (B, C, 448)
    xp = jnp.transpose(xpad, (1, 0, 2)).reshape(C, XLEN)              # (C, 896)

    # pack weights: (C_out, K*K*C_in) tap matrix + bias column + zero pad cols
    def pack(w, b):
        wt = jnp.transpose(w, (0, 2, 3, 1)).reshape(C, T * C)         # [co, t*C+ci]
        return jnp.concatenate(
            [wt, b.reshape(C, 1), jnp.zeros((C, SROWS - T * C - 1), jnp.float32)],
            axis=1)
    w_all = jnp.stack([pack(w1, b1), pack(w2, b2)]).astype(jnp.float32)  # (2, C, 104)

    # junk-column mask over the wide slab (valid: within-batch col < 320 and col%20 < 16)
    col = jnp.arange(N_SLAB)
    within = jnp.where(col < STRIDE, col, col - STRIDE)
    mask = ((within < WIDE) & (within % WP < W)).astype(jnp.float32)
    mask = jnp.broadcast_to(mask.reshape(1, N_SLAB), (C, N_SLAB))

    out_slab = pl.pallas_call(
        residual_layer_kernel,
        out_shape=jax.ShapeDtypeStruct((C, N_SLAB), jnp.float32),
        scratch_shapes=[pltpu.VMEM((SROWS, N_SLAB), jnp.float32),
                        pltpu.VMEM((C, XLEN), jnp.float32)],
    )(xp, w_all, mask)

    # wide slab -> (B, C, H, W): pick each batch's 320 columns, drop 4 junk cols/row
    out = jnp.stack([out_slab[:, 0:WIDE], out_slab[:, STRIDE:STRIDE + WIDE]], axis=0)
    return out.reshape(B, C, H, WP)[:, :, :, :W]


# ---------------- pure-JAX reference (sanity check) ----------------
def reference(x, w1, b1, w2, b2):
    dn = lax.conv_dimension_numbers(x.shape, w1.shape, ("NCHW", "OIHW", "NCHW"))

    def conv(t, w, b):
        y = lax.conv_general_dilated(
            t, w, window_strides=(1, 1), padding=[(PAD, PAD), (PAD, PAD)],
            dimension_numbers=dn, precision=lax.Precision.HIGHEST)
        return y + b[None, :, None, None]

    y1 = jax.nn.elu(conv(x, w1, b1))
    return x + conv(y1, w2, b2)


if __name__ == "__main__":
    key = jax.random.PRNGKey(0)
    k1, k2, k3, k4, k5 = jax.random.split(key, 5)

    x = jax.random.normal(k1, (B, C, H, W), jnp.float32)
    # PyTorch Conv2d convention: weight (out_ch, in_ch, kh, kw), bias (out_ch,)
    w1 = 0.1 * jax.random.normal(k2, (C, C, K, K), jnp.float32)
    b1 = 0.1 * jax.random.normal(k3, (C,), jnp.float32)
    w2 = 0.1 * jax.random.normal(k4, (C, C, K, K), jnp.float32)
    b2 = 0.1 * jax.random.normal(k5, (C,), jnp.float32)

    out = jax.block_until_ready(residual_layer(x, w1, b1, w2, b2))
    ref = jax.block_until_ready(reference(x, w1, b1, w2, b2))

    assert out.shape == (B, C, H, W), out.shape
    assert bool(jnp.all(jnp.isfinite(out)))
    err = float(jnp.max(jnp.abs(out - ref)))
    # tolerance allows for reduced-precision MXU passes; real bugs give err >= 0.1
    assert jnp.allclose(out, ref, atol=5e-3, rtol=5e-3), err

    print("KERNEL_OK")
</pallas_src>

<mosaic_0001>
module attributes {stable_mosaic.version = 11 : i64} {
  func.func @residual_layer_kernel(%arg0: memref<4x896xf32, #tpu.memory_space<vmem>>, %arg1: memref<2x4x104xf32, #tpu.memory_space<vmem>>, %arg2: memref<4x768xf32, #tpu.memory_space<vmem>>, %arg3: memref<4x768xf32, #tpu.memory_space<vmem>>, %arg4: memref<104x768xf32, #tpu.memory_space<vmem>>, %arg5: memref<4x896xf32, #tpu.memory_space<vmem>>) attributes {dimension_semantics = [], scalar_prefetch = 0 : i64, scratch_operands = 2 : i64, tpu.core_type = #tpu.core_type<tc>} {
    %cst = arith.constant 1.000000e+00 : f32
    %0 = vector.broadcast %cst : f32 to vector<1x768xf32>
    %c100 = arith.constant 100 : index
    %c0 = arith.constant 0 : index
    %1 = vector.load %arg4[%c100, %c0] : memref<104x768xf32, #tpu.memory_space<vmem>>, vector<1x768xf32>
    tpu.vector_store %arg4[%c100, %c0], %0 {strides = array<i32>} : memref<104x768xf32, #tpu.memory_space<vmem>>, vector<1x768xf32>,
    %cst_0 = arith.constant 0.000000e+00 : f32
    %2 = vector.broadcast %cst_0 : f32 to vector<3x768xf32>
    %c101 = arith.constant 101 : index
    %c0_1 = arith.constant 0 : index
    %3 = vector.load %arg4[%c101, %c0_1] : memref<104x768xf32, #tpu.memory_space<vmem>>, vector<3x768xf32>
    tpu.vector_store %arg4[%c101, %c0_1], %2 {strides = array<i32>} : memref<104x768xf32, #tpu.memory_space<vmem>>, vector<3x768xf32>,
    %c0_2 = arith.constant 0 : index
    %c0_3 = arith.constant 0 : index
    %4 = vector.load %arg0[%c0_2, %c0_3] : memref<4x896xf32, #tpu.memory_space<vmem>>, vector<4x768xf32>
    %c0_4 = arith.constant 0 : index
    %c0_5 = arith.constant 0 : index
    %5 = vector.load %arg4[%c0_4, %c0_5] : memref<104x768xf32, #tpu.memory_space<vmem>>, vector<4x768xf32>
    tpu.vector_store %arg4[%c0_4, %c0_5], %4 {strides = array<i32>} : memref<104x768xf32, #tpu.memory_space<vmem>>, vector<4x768xf32>,
    %c0_6 = arith.constant 0 : index
    %c1 = arith.constant 1 : index
    %6 = vector.load %arg0[%c0_6, %c1] : memref<4x896xf32, #tpu.memory_space<vmem>>, vector<4x768xf32>
    %c4 = arith.constant 4 : index
    %c0_7 = arith.constant 0 : index
    %7 = vector.load %arg4[%c4, %c0_7] : memref<104x768xf32, #tpu.memory_space<vmem>>, vector<4x768xf32>
    tpu.vector_store %arg4[%c4, %c0_7], %6 {strides = array<i32>} : memref<104x768xf32, #tpu.memory_space<vmem>>, vector<4x768xf32>,
    %c0_8 = arith.constant 0 : index
    %c2 = arith.constant 2 : index
    %8 = vector.load %arg0[%c0_8, %c2] : memref<4x896xf32, #tpu.memory_space<vmem>>, vector<4x768xf32>
    %c8 = arith.constant 8 : index
    %c0_9 = arith.constant 0 : index
    %9 = vector.load %arg4[%c8, %c0_9] : memref<104x768xf32, #tpu.memory_space<vmem>>, vector<4x768xf32>
    tpu.vector_store %arg4[%c8, %c0_9], %8 {strides = array<i32>} : memref<104x768xf32, #tpu.memory_space<vmem>>, vector<4x768xf32>,
    %c0_10 = arith.constant 0 : index
    %c3 = arith.constant 3 : index
    %10 = vector.load %arg0[%c0_10, %c3] : memref<4x896xf32, #tpu.memory_space<vmem>>, vector<4x768xf32>
    %c12 = arith.constant 12 : index
    %c0_11 = arith.constant 0 : index
    %11 = vector.load %arg4[%c12, %c0_11] : memref<104x768xf32, #tpu.memory_space<vmem>>, vector<4x768xf32>
    tpu.vector_store %arg4[%c12, %c0_11], %10 {strides = array<i32>} : memref<104x768xf32, #tpu.memory_space<vmem>>, vector<4x768xf32>,
    %c0_12 = arith.constant 0 : index
    %c4_13 = arith.constant 4 : index
    %12 = vector.load %arg0[%c0_12, %c4_13] : memref<4x896xf32, #tpu.memory_space<vmem>>, vector<4x768xf32>
    %c16 = arith.constant 16 : index
    %c0_14 = arith.constant 0 : index
    %13 = vector.load %arg4[%c16, %c0_14] : memref<104x768xf32, #tpu.memory_space<vmem>>, vector<4x768xf32>
    tpu.vector_store %arg4[%c16, %c0_14], %12 {strides = array<i32>} : memref<104x768xf32, #tpu.memory_space<vmem>>, vector<4x768xf32>,
    %c0_15 = arith.constant 0 : index
    %c20 = arith.constant 20 : index
    %14 = vector.load %arg0[%c0_15, %c20] : memref<4x896xf32, #tpu.memory_space<vmem>>, vector<4x768xf32>
    %c20_16 = arith.constant 20 : index
    %c0_17 = arith.constant 0 : index
    %15 = vector.load %arg4[%c20_16, %c0_17] : memref<104x768xf32, #tpu.memory_space<vmem>>, vector<4x768xf32>
    tpu.vector_store %arg4[%c20_16, %c0_17], %14 {strides = array<i32>} : memref<104x768xf32, #tpu.memory_space<vmem>>, vector<4x768xf32>,
    %c0_18 = arith.constant 0 : index
    %c21 = arith.constant 21 : index
    %16 = vector.load %arg0[%c0_18, %c21] : memref<4x896xf32, #tpu.memory_space<vmem>>, vector<4x768xf32>
    %c24 = arith.constant 24 : index
    %c0_19 = arith.constant 0 : index
    %17 = vector.load %arg4[%c24, %c0_19] : memref<104x768xf32, #tpu.memory_space<vmem>>, vector<4x768xf32>
    tpu.vector_store %arg4[%c24, %c0_19], %16 {strides = array<i32>} : memref<104x768xf32, #tpu.memory_space<vmem>>, vector<4x768xf32>,
    %c0_20 = arith.constant 0 : index
    %c22 = arith.constant 22 : index
    %18 = vector.load %arg0[%c0_20, %c22] : memref<4x896xf32, #tpu.memory_space<vmem>>, vector<4x768xf32>
    %c28 = arith.constant 28 : index
    %c0_21 = arith.constant 0 : index
    %19 = vector.load %arg4[%c28, %c0_21] : memref<104x768xf32, #tpu.memory_space<vmem>>, vector<4x768xf32>
    tpu.vector_store %arg4[%c28, %c0_21], %18 {strides = array<i32>} : memref<104x768xf32, #tpu.memory_space<vmem>>, vector<4x768xf32>,
    %c0_22 = arith.constant 0 : index
    %c23 = arith.constant 23 : index
    %20 = vector.load %arg0[%c0_22, %c23] : memref<4x896xf32, #tpu.memory_space<vmem>>, vector<4x768xf32>
    %c32 = arith.constant 32 : index
    %c0_23 = arith.constant 0 : index
    %21 = vector.load %arg4[%c32, %c0_23] : memref<104x768xf32, #tpu.memory_space<vmem>>, vector<4x768xf32>
    tpu.vector_store %arg4[%c32, %c0_23], %20 {strides = array<i32>} : memref<104x768xf32, #tpu.memory_space<vmem>>, vector<4x768xf32>,
    %c0_24 = arith.constant 0 : index
    %c24_25 = arith.constant 24 : index
    %22 = vector.load %arg0[%c0_24, %c24_25] : memref<4x896xf32, #tpu.memory_space<vmem>>, vector<4x768xf32>
    %c36 = arith.constant 36 : index
    %c0_26 = arith.constant 0 : index
    %23 = vector.load %arg4[%c36, %c0_26] : memref<104x768xf32, #tpu.memory_space<vmem>>, vector<4x768xf32>
    tpu.vector_store %arg4[%c36, %c0_26], %22 {strides = array<i32>} : memref<104x768xf32, #tpu.memory_space<vmem>>, vector<4x768xf32>,
    %c0_27 = arith.constant 0 : index
    %c40 = arith.constant 40 : index
    %24 = vector.load %arg0[%c0_27, %c40] : memref<4x896xf32, #tpu.memory_space<vmem>>, vector<4x768xf32>
    %c40_28 = arith.constant 40 : index
    %c0_29 = arith.constant 0 : index
    %25 = vector.load %arg4[%c40_28, %c0_29] : memref<104x768xf32, #tpu.memory_space<vmem>>, vector<4x768xf32>
    tpu.vector_store %arg4[%c40_28, %c0_29], %24 {strides = array<i32>} : memref<104x768xf32, #tpu.memory_space<vmem>>, vector<4x768xf32>,
    %c0_30 = arith.constant 0 : index
    %c41 = arith.constant 41 : index
    %26 = vector.load %arg0[%c0_30, %c41] : memref<4x896xf32, #tpu.memory_space<vmem>>, vector<4x768xf32>
    %c44 = arith.constant 44 : index
    %c0_31 = arith.constant 0 : index
    %27 = vector.load %arg4[%c44, %c0_31] : memref<104x768xf32, #tpu.memory_space<vmem>>, vector<4x768xf32>
    tpu.vector_store %arg4[%c44, %c0_31], %26 {strides = array<i32>} : memref<104x768xf32, #tpu.memory_space<vmem>>, vector<4x768xf32>,
    %c0_32 = arith.constant 0 : index
    %c42 = arith.constant 42 : index
    %28 = vector.load %arg0[%c0_32, %c42] : memref<4x896xf32, #tpu.memory_space<vmem>>, vector<4x768xf32>
    %c48 = arith.constant 48 : index
    %c0_33 = arith.constant 0 : index
    %29 = vector.load %arg4[%c48, %c0_33] : memref<104x768xf32, #tpu.memory_space<vmem>>, vector<4x768xf32>
    tpu.vector_store %arg4[%c48, %c0_33], %28 {strides = array<i32>} : memref<104x768xf32, #tpu.memory_space<vmem>>, vector<4x768xf32>,
    %c0_34 = arith.constant 0 : index
    %c43 = arith.constant 43 : index
    %30 = vector.load %arg0[%c0_34, %c43] : memref<4x896xf32, #tpu.memory_space<vmem>>, vector<4x768xf32>
    %c52 = arith.constant 52 : index
    %c0_35 = arith.constant 0 : index
    %31 = vector.load %arg4[%c52, %c0_35] : memref<104x768xf32, #tpu.memory_space<vmem>>, vector<4x768xf32>
    tpu.vector_store %arg4[%c52, %c0_35], %30 {strides = array<i32>} : memref<104x768xf32, #tpu.memory_space<vmem>>, vector<4x768xf32>,
    %c0_36 = arith.constant 0 : index
    %c44_37 = arith.constant 44 : index
    %32 = vector.load %arg0[%c0_36, %c44_37] : memref<4x896xf32, #tpu.memory_space<vmem>>, vector<4x768xf32>
    %c56 = arith.constant 56 : index
    %c0_38 = arith.constant 0 : index
    %33 = vector.load %arg4[%c56, %c0_38] : memref<104x768xf32, #tpu.memory_space<vmem>>, vector<4x768xf32>
    tpu.vector_store %arg4[%c56, %c0_38], %32 {strides = array<i32>} : memref<104x768xf32, #tpu.memory_space<vmem>>, vector<4x768xf32>,
    %c0_39 = arith.constant 0 : index
    %c60 = arith.constant 60 : index
    %34 = vector.load %arg0[%c0_39, %c60] : memref<4x896xf32, #tpu.memory_space<vmem>>, vector<4x768xf32>
    %c60_40 = arith.constant 60 : index
    %c0_41 = arith.constant 0 : index
    %35 = vector.load %arg4[%c60_40, %c0_41] : memref<104x768xf32, #tpu.memory_space<vmem>>, vector<4x768xf32>
    tpu.vector_store %arg4[%c60_40, %c0_41], %34 {strides = array<i32>} : memref<104x768xf32, #tpu.memory_space<vmem>>, vector<4x768xf32>,
    %c0_42 = arith.constant 0 : index
    %c61 = arith.constant 61 : index
    %36 = vector.load %arg0[%c0_42, %c61] : memref<4x896xf32, #tpu.memory_space<vmem>>, vector<4x768xf32>
    %c64 = arith.constant 64 : index
    %c0_43 = arith.constant 0 : index
    %37 = vector.load %arg4[%c64, %c0_43] : memref<104x768xf32, #tpu.memory_space<vmem>>, vector<4x768xf32>
    tpu.vector_store %arg4[%c64, %c0_43], %36 {strides = array<i32>} : memref<104x768xf32, #tpu.memory_space<vmem>>, vector<4x768xf32>,
    %c0_44 = arith.constant 0 : index
    %c62 = arith.constant 62 : index
    %38 = vector.load %arg0[%c0_44, %c62] : memref<4x896xf32, #tpu.memory_space<vmem>>, vector<4x768xf32>
    %c68 = arith.constant 68 : index
    %c0_45 = arith.constant 0 : index
    %39 = vector.load %arg4[%c68, %c0_45] : memref<104x768xf32, #tpu.memory_space<vmem>>, vector<4x768xf32>
    tpu.vector_store %arg4[%c68, %c0_45], %38 {strides = array<i32>} : memref<104x768xf32, #tpu.memory_space<vmem>>, vector<4x768xf32>,
    %c0_46 = arith.constant 0 : index
    %c63 = arith.constant 63 : index
    %40 = vector.load %arg0[%c0_46, %c63] : memref<4x896xf32, #tpu.memory_space<vmem>>, vector<4x768xf32>
    %c72 = arith.constant 72 : index
    %c0_47 = arith.constant 0 : index
    %41 = vector.load %arg4[%c72, %c0_47] : memref<104x768xf32, #tpu.memory_space<vmem>>, vector<4x768xf32>
    tpu.vector_store %arg4[%c72, %c0_47], %40 {strides = array<i32>} : memref<104x768xf32, #tpu.memory_space<vmem>>, vector<4x768xf32>,
    %c0_48 = arith.constant 0 : index
    %c64_49 = arith.constant 64 : index
    %42 = vector.load %arg0[%c0_48, %c64_49] : memref<4x896xf32, #tpu.memory_space<vmem>>, vector<4x768xf32>
    %c76 = arith.constant 76 : index
    %c0_50 = arith.constant 0 : index
    %43 = vector.load %arg4[%c76, %c0_50] : memref<104x768xf32, #tpu.memory_space<vmem>>, vector<4x768xf32>
    tpu.vector_store %arg4[%c76, %c0_50], %42 {strides = array<i32>} : memref<104x768xf32, #tpu.memory_space<vmem>>, vector<4x768xf32>,
    %c0_51 = arith.constant 0 : index
    %c80 = arith.constant 80 : index
    %44 = vector.load %arg0[%c0_51, %c80] : memref<4x896xf32, #tpu.memory_space<vmem>>, vector<4x768xf32>
    %c80_52 = arith.constant 80 : index
    %c0_53 = arith.constant 0 : index
    %45 = vector.load %arg4[%c80_52, %c0_53] : memref<104x768xf32, #tpu.memory_space<vmem>>, vector<4x768xf32>
    tpu.vector_store %arg4[%c80_52, %c0_53], %44 {strides = array<i32>} : memref<104x768xf32, #tpu.memory_space<vmem>>, vector<4x768xf32>,
    %c0_54 = arith.constant 0 : index
    %c81 = arith.constant 81 : index
    %46 = vector.load %arg0[%c0_54, %c81] : memref<4x896xf32, #tpu.memory_space<vmem>>, vector<4x768xf32>
    %c84 = arith.constant 84 : index
    %c0_55 = arith.constant 0 : index
    %47 = vector.load %arg4[%c84, %c0_55] : memref<104x768xf32, #tpu.memory_space<vmem>>, vector<4x768xf32>
    tpu.vector_store %arg4[%c84, %c0_55], %46 {strides = array<i32>} : memref<104x768xf32, #tpu.memory_space<vmem>>, vector<4x768xf32>,
    %c0_56 = arith.constant 0 : index
    %c82 = arith.constant 82 : index
    %48 = vector.load %arg0[%c0_56, %c82] : memref<4x896xf32, #tpu.memory_space<vmem>>, vector<4x768xf32>
    %c88 = arith.constant 88 : index
    %c0_57 = arith.constant 0 : index
    %49 = vector.load %arg4[%c88, %c0_57] : memref<104x768xf32, #tpu.memory_space<vmem>>, vector<4x768xf32>
    tpu.vector_store %arg4[%c88, %c0_57], %48 {strides = array<i32>} : memref<104x768xf32, #tpu.memory_space<vmem>>, vector<4x768xf32>,
    %c0_58 = arith.constant 0 : index
    %c83 = arith.constant 83 : index
    %50 = vector.load %arg0[%c0_58, %c83] : memref<4x896xf32, #tpu.memory_space<vmem>>, vector<4x768xf32>
    %c92 = arith.constant 92 : index
    %c0_59 = arith.constant 0 : index
    %51 = vector.load %arg4[%c92, %c0_59] : memref<104x768xf32, #tpu.memory_space<vmem>>, vector<4x768xf32>
    tpu.vector_store %arg4[%c92, %c0_59], %50 {strides = array<i32>} : memref<104x768xf32, #tpu.memory_space<vmem>>, vector<4x768xf32>,
    %c0_60 = arith.constant 0 : index
    %c84_61 = arith.constant 84 : index
    %52 = vector.load %arg0[%c0_60, %c84_61] : memref<4x896xf32, #tpu.memory_space<vmem>>, vector<4x768xf32>
    %c96 = arith.constant 96 : index
    %c0_62 = arith.constant 0 : index
    %53 = vector.load %arg4[%c96, %c0_62] : memref<104x768xf32, #tpu.memory_space<vmem>>, vector<4x768xf32>
    tpu.vector_store %arg4[%c96, %c0_62], %52 {strides = array<i32>} : memref<104x768xf32, #tpu.memory_space<vmem>>, vector<4x768xf32>,
    %c0_63 = arith.constant 0 : index
    %c0_64 = arith.constant 0 : index
    %c0_65 = arith.constant 0 : index
    %54 = vector.load %arg1[%c0_63, %c0_64, %c0_65] : memref<2x4x104xf32, #tpu.memory_space<vmem>>, vector<1x4x104xf32>
    %55 = vector.shape_cast %54 : vector<1x4x104xf32> to vector<4x104xf32>
    %c0_66 = arith.constant 0 : index
    %c0_67 = arith.constant 0 : index
    %56 = vector.load %arg4[%c0_66, %c0_67] : memref<104x768xf32, #tpu.memory_space<vmem>>, vector<104x768xf32>
    %cst_68 = arith.constant dense<0.000000e+00> : vector<4x768xf32>
    %57 = tpu.matmul %55, %56, %cst_68 {dimension_numbers = #tpu.dot_dimension_numbers<[1], [0], [0], [1], [0, 0, 1, 1], [], []>} : vector<4x104xf32>, vector<104x768xf32>, vector<4x768xf32> -> vector<4x768xf32>
    %cst_69 = arith.constant 0.000000e+00 : f32
    %58 = vector.broadcast %cst_69 : f32 to vector<4x768xf32>
    %59 = arith.cmpf ogt, %57, %58 : vector<4x768xf32>
    %cst_70 = arith.constant 0.000000e+00 : f32
    %60 = vector.broadcast %cst_70 : f32 to vector<4x768xf32>
    %61 = arith.minimumf %57, %60 : vector<4x768xf32>
    %62 = math.exp %61 : vector<4x768xf32>
    %cst_71 = arith.constant 1.000000e+00 : f32
    %63 = vector.broadcast %cst_71 : f32 to vector<4x768xf32>
    %64 = arith.subf %62, %63 : vector<4x768xf32>
    %cst_72 = arith.constant 1.000000e+00 : f32
    %65 = vector.broadcast %cst_72 : f32 to vector<4x768xf32>
    %66 = arith.mulf %65, %64 : vector<4x768xf32>
    %67 = arith.select %59, %57, %66 : vector<4x768xi1>, vector<4x768xf32>
    %c0_73 = arith.constant 0 : index
    %c0_74 = arith.constant 0 : index
    %68 = vector.load %arg2[%c0_73, %c0_74] : memref<4x768xf32, #tpu.memory_space<vmem>>, vector<4x768xf32>
    %69 = arith.mulf %67, %68 : vector<4x768xf32>
    %cst_75 = arith.constant 0.000000e+00 : f32
    %70 = vector.broadcast %cst_75 : f32 to vector<4x896xf32>
    %c0_76 = arith.constant 0 : index
    %c0_77 = arith.constant 0 : index
    %71 = vector.load %arg5[%c0_76, %c0_77] : memref<4x896xf32, #tpu.memory_space<vmem>>, vector<4x896xf32>
    tpu.vector_store %arg5[%c0_76, %c0_77], %70 {strides = array<i32>} : memref<4x896xf32, #tpu.memory_space<vmem>>, vector<4x896xf32>,
    %c0_78 = arith.constant 0 : index
    %c42_79 = arith.constant 42 : index
    %72 = vector.load %arg5[%c0_78, %c42_79] : memref<4x896xf32, #tpu.memory_space<vmem>>, vector<4x768xf32>
    tpu.vector_store %arg5[%c0_78, %c42_79], %69 {strides = array<i32>} : memref<4x896xf32, #tpu.memory_space<vmem>>, vector<4x768xf32>,
    %c0_80 = arith.constant 0 : index
    %c0_81 = arith.constant 0 : index
    %73 = vector.load %arg5[%c0_80, %c0_81] : memref<4x896xf32, #tpu.memory_space<vmem>>, vector<4x768xf32>
    %c0_82 = arith.constant 0 : index
    %c0_83 = arith.constant 0 : index
    %74 = vector.load %arg4[%c0_82, %c0_83] : memref<104x768xf32, #tpu.memory_space<vmem>>, vector<4x768xf32>
    tpu.vector_store %arg4[%c0_82, %c0_83], %73 {strides = array<i32>} : memref<104x768xf32, #tpu.memory_space<vmem>>, vector<4x768xf32>,
    %c0_84 = arith.constant 0 : index
    %c1_85 = arith.constant 1 : index
    %75 = vector.load %arg5[%c0_84, %c1_85] : memref<4x896xf32, #tpu.memory_space<vmem>>, vector<4x768xf32>
    %c4_86 = arith.constant 4 : index
    %c0_87 = arith.constant 0 : index
    %76 = vector.load %arg4[%c4_86, %c0_87] : memref<104x768xf32, #tpu.memory_space<vmem>>, vector<4x768xf32>
    tpu.vector_store %arg4[%c4_86, %c0_87], %75 {strides = array<i32>} : memref<104x768xf32, #tpu.memory_space<vmem>>, vector<4x768xf32>,
    %c0_88 = arith.constant 0 : index
    %c2_89 = arith.constant 2 : index
    %77 = vector.load %arg5[%c0_88, %c2_89] : memref<4x896xf32, #tpu.memory_space<vmem>>, vector<4x768xf32>
    %c8_90 = arith.constant 8 : index
    %c0_91 = arith.constant 0 : index
    %78 = vector.load %arg4[%c8_90, %c0_91] : memref<104x768xf32, #tpu.memory_space<vmem>>, vector<4x768xf32>
    tpu.vector_store %arg4[%c8_90, %c0_91], %77 {strides = array<i32>} : memref<104x768xf32, #tpu.memory_space<vmem>>, vector<4x768xf32>,
    %c0_92 = arith.constant 0 : index
    %c3_93 = arith.constant 3 : index
    %79 = vector.load %arg5[%c0_92, %c3_93] : memref<4x896xf32, #tpu.memory_space<vmem>>, vector<4x768xf32>
    %c12_94 = arith.constant 12 : index
    %c0_95 = arith.constant 0 : index
    %80 = vector.load %arg4[%c12_94, %c0_95] : memref<104x768xf32, #tpu.memory_space<vmem>>, vector<4x768xf32>
    tpu.vector_store %arg4[%c12_94, %c0_95], %79 {strides = array<i32>} : memref<104x768xf32, #tpu.memory_space<vmem>>, vector<4x768xf32>,
    %c0_96 = arith.constant 0 : index
    %c4_97 = arith.constant 4 : index
    %81 = vector.load %arg5[%c0_96, %c4_97] : memref<4x896xf32, #tpu.memory_space<vmem>>, vector<4x768xf32>
    %c16_98 = arith.constant 16 : index
    %c0_99 = arith.constant 0 : index
    %82 = vector.load %arg4[%c16_98, %c0_99] : memref<104x768xf32, #tpu.memory_space<vmem>>, vector<4x768xf32>
    tpu.vector_store %arg4[%c16_98, %c0_99], %81 {strides = array<i32>} : memref<104x768xf32, #tpu.memory_space<vmem>>, vector<4x768xf32>,
    %c0_100 = arith.constant 0 : index
    %c20_101 = arith.constant 20 : index
    %83 = vector.load %arg5[%c0_100, %c20_101] : memref<4x896xf32, #tpu.memory_space<vmem>>, vector<4x768xf32>
    %c20_102 = arith.constant 20 : index
    %c0_103 = arith.constant 0 : index
    %84 = vector.load %arg4[%c20_102, %c0_103] : memref<104x768xf32, #tpu.memory_space<vmem>>, vector<4x768xf32>
    tpu.vector_store %arg4[%c20_102, %c0_103], %83 {strides = array<i32>} : memref<104x768xf32, #tpu.memory_space<vmem>>, vector<4x768xf32>,
    %c0_104 = arith.constant 0 : index
    %c21_105 = arith.constant 21 : index
    %85 = vector.load %arg5[%c0_104, %c21_105] : memref<4x896xf32, #tpu.memory_space<vmem>>, vector<4x768xf32>
    %c24_106 = arith.constant 24 : index
    %c0_107 = arith.constant 0 : index
    %86 = vector.load %arg4[%c24_106, %c0_107] : memref<104x768xf32, #tpu.memory_space<vmem>>, vector<4x768xf32>
    tpu.vector_store %arg4[%c24_106, %c0_107], %85 {strides = array<i32>} : memref<104x768xf32, #tpu.memory_space<vmem>>, vector<4x768xf32>,
    %c0_108 = arith.constant 0 : index
    %c22_109 = arith.constant 22 : index
    %87 = vector.load %arg5[%c0_108, %c22_109] : memref<4x896xf32, #tpu.memory_space<vmem>>, vector<4x768xf32>
    %c28_110 = arith.constant 28 : index
    %c0_111 = arith.constant 0 : index
    %88 = vector.load %arg4[%c28_110, %c0_111] : memref<104x768xf32, #tpu.memory_space<vmem>>, vector<4x768xf32>
    tpu.vector_store %arg4[%c28_110, %c0_111], %87 {strides = array<i32>} : memref<104x768xf32, #tpu.memory_space<vmem>>, vector<4x768xf32>,
    %c0_112 = arith.constant 0 : index
    %c23_113 = arith.constant 23 : index
    %89 = vector.load %arg5[%c0_112, %c23_113] : memref<4x896xf32, #tpu.memory_space<vmem>>, vector<4x768xf32>
    %c32_114 = arith.constant 32 : index
    %c0_115 = arith.constant 0 : index
    %90 = vector.load %arg4[%c32_114, %c0_115] : memref<104x768xf32, #tpu.memory_space<vmem>>, vector<4x768xf32>
    tpu.vector_store %arg4[%c32_114, %c0_115], %89 {strides = array<i32>} : memref<104x768xf32, #tpu.memory_space<vmem>>, vector<4x768xf32>,
    %c0_116 = arith.constant 0 : index
    %c24_117 = arith.constant 24 : index
    %91 = vector.load %arg5[%c0_116, %c24_117] : memref<4x896xf32, #tpu.memory_space<vmem>>, vector<4x768xf32>
    %c36_118 = arith.constant 36 : index
    %c0_119 = arith.constant 0 : index
    %92 = vector.load %arg4[%c36_118, %c0_119] : memref<104x768xf32, #tpu.memory_space<vmem>>, vector<4x768xf32>
    tpu.vector_store %arg4[%c36_118, %c0_119], %91 {strides = array<i32>} : memref<104x768xf32, #tpu.memory_space<vmem>>, vector<4x768xf32>,
    %c0_120 = arith.constant 0 : index
    %c40_121 = arith.constant 40 : index
    %93 = vector.load %arg5[%c0_120, %c40_121] : memref<4x896xf32, #tpu.memory_space<vmem>>, vector<4x768xf32>
    %c40_122 = arith.constant 40 : index
    %c0_123 = arith.constant 0 : index
    %94 = vector.load %arg4[%c40_122, %c0_123] : memref<104x768xf32, #tpu.memory_space<vmem>>, vector<4x768xf32>
    tpu.vector_store %arg4[%c40_122, %c0_123], %93 {strides = array<i32>} : memref<104x768xf32, #tpu.memory_space<vmem>>, vector<4x768xf32>,
    %c0_124 = arith.constant 0 : index
    %c41_125 = arith.constant 41 : index
    %95 = vector.load %arg5[%c0_124, %c41_125] : memref<4x896xf32, #tpu.memory_space<vmem>>, vector<4x768xf32>
    %c44_126 = arith.constant 44 : index
    %c0_127 = arith.constant 0 : index
    %96 = vector.load %arg4[%c44_126, %c0_127] : memref<104x768xf32, #tpu.memory_space<vmem>>, vector<4x768xf32>
    tpu.vector_store %arg4[%c44_126, %c0_127], %95 {strides = array<i32>} : memref<104x768xf32, #tpu.memory_space<vmem>>, vector<4x768xf32>,
    %c0_128 = arith.constant 0 : index
    %c42_129 = arith.constant 42 : index
    %97 = vector.load %arg5[%c0_128, %c42_129] : memref<4x896xf32, #tpu.memory_space<vmem>>, vector<4x768xf32>
    %c48_130 = arith.constant 48 : index
    %c0_131 = arith.constant 0 : index
    %98 = vector.load %arg4[%c48_130, %c0_131] : memref<104x768xf32, #tpu.memory_space<vmem>>, vector<4x768xf32>
    tpu.vector_store %arg4[%c48_130, %c0_131], %97 {strides = array<i32>} : memref<104x768xf32, #tpu.memory_space<vmem>>, vector<4x768xf32>,
    %c0_132 = arith.constant 0 : index
    %c43_133 = arith.constant 43 : index
    %99 = vector.load %arg5[%c0_132, %c43_133] : memref<4x896xf32, #tpu.memory_space<vmem>>, vector<4x768xf32>
    %c52_134 = arith.constant 52 : index
    %c0_135 = arith.constant 0 : index
    %100 = vector.load %arg4[%c52_134, %c0_135] : memref<104x768xf32, #tpu.memory_space<vmem>>, vector<4x768xf32>
    tpu.vector_store %arg4[%c52_134, %c0_135], %99 {strides = array<i32>} : memref<104x768xf32, #tpu.memory_space<vmem>>, vector<4x768xf32>,
    %c0_136 = arith.constant 0 : index
    %c44_137 = arith.constant 44 : index
    %101 = vector.load %arg5[%c0_136, %c44_137] : memref<4x896xf32, #tpu.memory_space<vmem>>, vector<4x768xf32>
    %c56_138 = arith.constant 56 : index
    %c0_139 = arith.constant 0 : index
    %102 = vector.load %arg4[%c56_138, %c0_139] : memref<104x768xf32, #tpu.memory_space<vmem>>, vector<4x768xf32>
    tpu.vector_store %arg4[%c56_138, %c0_139], %101 {strides = array<i32>} : memref<104x768xf32, #tpu.memory_space<vmem>>, vector<4x768xf32>,
    %c0_140 = arith.constant 0 : index
    %c60_141 = arith.constant 60 : index
    %103 = vector.load %arg5[%c0_140, %c60_141] : memref<4x896xf32, #tpu.memory_space<vmem>>, vector<4x768xf32>
    %c60_142 = arith.constant 60 : index
    %c0_143 = arith.constant 0 : index
    %104 = vector.load %arg4[%c60_142, %c0_143] : memref<104x768xf32, #tpu.memory_space<vmem>>, vector<4x768xf32>
    tpu.vector_store %arg4[%c60_142, %c0_143], %103 {strides = array<i32>} : memref<104x768xf32, #tpu.memory_space<vmem>>, vector<4x768xf32>,
    %c0_144 = arith.constant 0 : index
    %c61_145 = arith.constant 61 : index
    %105 = vector.load %arg5[%c0_144, %c61_145] : memref<4x896xf32, #tpu.memory_space<vmem>>, vector<4x768xf32>
    %c64_146 = arith.constant 64 : index
    %c0_147 = arith.constant 0 : index
    %106 = vector.load %arg4[%c64_146, %c0_147] : memref<104x768xf32, #tpu.memory_space<vmem>>, vector<4x768xf32>
    tpu.vector_store %arg4[%c64_146, %c0_147], %105 {strides = array<i32>} : memref<104x768xf32, #tpu.memory_space<vmem>>, vector<4x768xf32>,
    %c0_148 = arith.constant 0 : index
    %c62_149 = arith.constant 62 : index
    %107 = vector.load %arg5[%c0_148, %c62_149] : memref<4x896xf32, #tpu.memory_space<vmem>>, vector<4x768xf32>
    %c68_150 = arith.constant 68 : index
    %c0_151 = arith.constant 0 : index
    %108 = vector.load %arg4[%c68_150, %c0_151] : memref<104x768xf32, #tpu.memory_space<vmem>>, vector<4x768xf32>
    tpu.vector_store %arg4[%c68_150, %c0_151], %107 {strides = array<i32>} : memref<104x768xf32, #tpu.memory_space<vmem>>, vector<4x768xf32>,
    %c0_152 = arith.constant 0 : index
    %c63_153 = arith.constant 63 : index
    %109 = vector.load %arg5[%c0_152, %c63_153] : memref<4x896xf32, #tpu.memory_space<vmem>>, vector<4x768xf32>
    %c72_154 = arith.constant 72 : index
    %c0_155 = arith.constant 0 : index
    %110 = vector.load %arg4[%c72_154, %c0_155] : memref<104x768xf32, #tpu.memory_space<vmem>>, vector<4x768xf32>
    tpu.vector_store %arg4[%c72_154, %c0_155], %109 {strides = array<i32>} : memref<104x768xf32, #tpu.memory_space<vmem>>, vector<4x768xf32>,
    %c0_156 = arith.constant 0 : index
    %c64_157 = arith.constant 64 : index
    %111 = vector.load %arg5[%c0_156, %c64_157] : memref<4x896xf32, #tpu.memory_space<vmem>>, vector<4x768xf32>
    %c76_158 = arith.constant 76 : index
    %c0_159 = arith.constant 0 : index
    %112 = vector.load %arg4[%c76_158, %c0_159] : memref<104x768xf32, #tpu.memory_space<vmem>>, vector<4x768xf32>
    tpu.vector_store %arg4[%c76_158, %c0_159], %111 {strides = array<i32>} : memref<104x768xf32, #tpu.memory_space<vmem>>, vector<4x768xf32>,
    %c0_160 = arith.constant 0 : index
    %c80_161 = arith.constant 80 : index
    %113 = vector.load %arg5[%c0_160, %c80_161] : memref<4x896xf32, #tpu.memory_space<vmem>>, vector<4x768xf32>
    %c80_162 = arith.constant 80 : index
    %c0_163 = arith.constant 0 : index
    %114 = vector.load %arg4[%c80_162, %c0_163] : memref<104x768xf32, #tpu.memory_space<vmem>>, vector<4x768xf32>
    tpu.vector_store %arg4[%c80_162, %c0_163], %113 {strides = array<i32>} : memref<104x768xf32, #tpu.memory_space<vmem>>, vector<4x768xf32>,
    %c0_164 = arith.constant 0 : index
    %c81_165 = arith.constant 81 : index
    %115 = vector.load %arg5[%c0_164, %c81_165] : memref<4x896xf32, #tpu.memory_space<vmem>>, vector<4x768xf32>
    %c84_166 = arith.constant 84 : index
    %c0_167 = arith.constant 0 : index
    %116 = vector.load %arg4[%c84_166, %c0_167] : memref<104x768xf32, #tpu.memory_space<vmem>>, vector<4x768xf32>
    tpu.vector_store %arg4[%c84_166, %c0_167], %115 {strides = array<i32>} : memref<104x768xf32, #tpu.memory_space<vmem>>, vector<4x768xf32>,
    %c0_168 = arith.constant 0 : index
    %c82_169 = arith.constant 82 : index
    %117 = vector.load %arg5[%c0_168, %c82_169] : memref<4x896xf32, #tpu.memory_space<vmem>>, vector<4x768xf32>
    %c88_170 = arith.constant 88 : index
    %c0_171 = arith.constant 0 : index
    %118 = vector.load %arg4[%c88_170, %c0_171] : memref<104x768xf32, #tpu.memory_space<vmem>>, vector<4x768xf32>
    tpu.vector_store %arg4[%c88_170, %c0_171], %117 {strides = array<i32>} : memref<104x768xf32, #tpu.memory_space<vmem>>, vector<4x768xf32>,
    %c0_172 = arith.constant 0 : index
    %c83_173 = arith.constant 83 : index
    %119 = vector.load %arg5[%c0_172, %c83_173] : memref<4x896xf32, #tpu.memory_space<vmem>>, vector<4x768xf32>
    %c92_174 = arith.constant 92 : index
    %c0_175 = arith.constant 0 : index
    %120 = vector.load %arg4[%c92_174, %c0_175] : memref<104x768xf32, #tpu.memory_space<vmem>>, vector<4x768xf32>
    tpu.vector_store %arg4[%c92_174, %c0_175], %119 {strides = array<i32>} : memref<104x768xf32, #tpu.memory_space<vmem>>, vector<4x768xf32>,
    %c0_176 = arith.constant 0 : index
    %c84_177 = arith.constant 84 : index
    %121 = vector.load %arg5[%c0_176, %c84_177] : memref<4x896xf32, #tpu.memory_space<vmem>>, vector<4x768xf32>
    %c96_178 = arith.constant 96 : index
    %c0_179 = arith.constant 0 : index
    %122 = vector.load %arg4[%c96_178, %c0_179] : memref<104x768xf32, #tpu.memory_space<vmem>>, vector<4x768xf32>
    tpu.vector_store %arg4[%c96_178, %c0_179], %121 {strides = array<i32>} : memref<104x768xf32, #tpu.memory_space<vmem>>, vector<4x768xf32>,
    %c1_180 = arith.constant 1 : index
    %c0_181 = arith.constant 0 : index
    %c0_182 = arith.constant 0 : index
    %123 = vector.load %arg1[%c1_180, %c0_181, %c0_182] : memref<2x4x104xf32, #tpu.memory_space<vmem>>, vector<1x4x104xf32>
    %124 = vector.shape_cast %123 : vector<1x4x104xf32> to vector<4x104xf32>
    %c0_183 = arith.constant 0 : index
    %c0_184 = arith.constant 0 : index
    %125 = vector.load %arg4[%c0_183, %c0_184] : memref<104x768xf32, #tpu.memory_space<vmem>>, vector<104x768xf32>
    %cst_185 = arith.constant dense<0.000000e+00> : vector<4x768xf32>
    %126 = tpu.matmul %124, %125, %cst_185 {dimension_numbers = #tpu.dot_dimension_numbers<[1], [0], [0], [1], [0, 0, 1, 1], [], []>} : vector<4x104xf32>, vector<104x768xf32>, vector<4x768xf32> -> vector<4x768xf32>
    %c0_186 = arith.constant 0 : index
    %c42_187 = arith.constant 42 : index
    %127 = vector.load %arg0[%c0_186, %c42_187] : memref<4x896xf32, #tpu.memory_space<vmem>>, vector<4x768xf32>
    %128 = arith.addf %127, %126 : vector<4x768xf32>
    %c0_188 = arith.constant 0 : index
    %c0_189 = arith.constant 0 : index
    %129 = vector.load %arg3[%c0_188, %c0_189] : memref<4x768xf32, #tpu.memory_space<vmem>>, vector<4x768xf32>
    tpu.vector_store %arg3[%c0_188, %c0_189], %128 {strides = array<i32>} : memref<4x768xf32, #tpu.memory_space<vmem>>, vector<4x768xf32>,
    return
  }
}

</mosaic_0001>

<llo_original>
// kernel: residual_layer.1
$region0: #{residual_layer.1}
  #allocation0 [shape = 'u32[]', space=smem, size = 0x4, offset = 0x4, fixed_abs, tag = 'smem constant byte address 0x4 - core index']
  #allocation1 [shape = 'u32[144,128]{1,0:T(1,128)}', space=vmem, size = 0x12000, scoped, tag = 'internal scratch']
  #allocation2 [shape = 'f32[104,768]{1,0:T(8,128)}', space=vmem, size = 0x4e000, scoped, tag = 'scratch operand']
  #allocation3 [shape = 'f32[4,896]{1,0:T(4,128)}', space=vmem, size = 0x3800, scoped, tag = 'scratch operand']
  %s0 = inlined_call_operand.vmem [shape: f32[4,896], index: 0, kind: input, shape index: {}]
  %s1 = inlined_call_operand.vmem [shape: f32[2,4,104], index: 1, kind: input, shape index: {}]
  %s2 = inlined_call_operand.vmem [shape: f32[4,768], index: 2, kind: input, shape index: {}]
  %s3 = inlined_call_operand.vmem [shape: f32[4,768], index: 3, kind: output, shape index: {}]
  %s4 = sld [smem:[#allocation0]]
  $region22: #{residual_layer.1} parent=0
    _
  %s6 = ssub.s32 1, %s4
  %s7 = scalar_select 0, %s6, %s4
  // Predicated region
  $region2: #{residual_layer.1} parent=0 // pred_check
    _
  $region3: #{residual_layer.1} parent=0 // pred_check_branch
    %9 = sbr.rel (0) target = $region5
  $region4: #{residual_layer.1} parent=0 // pred_region
    _
  $region5: #{residual_layer.1} parent=0 // pred_fallthru
    _
  // Predicated region
  $region6: #{residual_layer.1} parent=0 // pred_check
    _
  $region7: #{residual_layer.1} parent=0 // pred_check_branch
    %11 = sbr.rel (0) target = $region9
  $region8: #{residual_layer.1} parent=0 // pred_region
    _
  $region9: #{residual_layer.1} parent=0 // pred_fallthru
    _
  // Predicated region
  $region10: #{residual_layer.1} parent=0 // pred_check
    _
  $region11: #{residual_layer.1} parent=0 // pred_check_branch
    %13 = sbr.rel (0) target = $region13
  $region12: #{residual_layer.1} parent=0 // pred_region
    _
  $region13: #{residual_layer.1} parent=0 // pred_fallthru
    _
  %v14 = vlaneseq
  %vm15 = vcmp.ge.s32.totalorder %v14, 0
  %vm16 = vcmp.lt.s32.totalorder %v14, 768
  %vm17 = vmand %vm15, %vm16
  %s18 = scalar_lea.vmem [#allocation2], 580
  %19 = vst.msk [vmem:[%s18] ss:$8 sm:$0xf] %vm17, 1.0
  %20 = vst.msk [vmem:[%s18] ss:$8 sm:$0x30] %vm17, 1.0
  %21 = vst [vmem:[#allocation2 + $0x240] sm:$0xe0] 0.0
  %22 = vst [vmem:[#allocation2 + $0x248] sm:$0xe0] 0.0
  %23 = vst [vmem:[#allocation2 + $0x250] sm:$0xe0] 0.0
  %24 = vst [vmem:[#allocation2 + $0x258] sm:$0xe0] 0.0
  %25 = vst [vmem:[#allocation2 + $0x260] sm:$0xe0] 0.0
  %26 = vst [vmem:[#allocation2 + $0x268] sm:$0xe0] 0.0
  %v27 = vld [vmem:[%s0] sm:$0xff]
  %v28 = vld [vmem:[%s0 + $0x8] sm:$0xff]
  %v29 = vld [vmem:[%s0 + $0x10] sm:$0xff]
  %v33 = vcombine.high %v27, %v27
  %v34 = vcombine.high %v28, %v28
  %v35 = vcombine.high %v29, %v29
  %39 = vst [vmem:[#allocation2] sm:$0xf] %v27
  %40 = vst [vmem:[#allocation2 + $0x8] sm:$0xf] %v33
  %41 = vst [vmem:[#allocation2 + $0x10] sm:$0xf] %v28
  %42 = vst [vmem:[#allocation2 + $0x18] sm:$0xf] %v34
  %43 = vst [vmem:[#allocation2 + $0x20] sm:$0xf] %v29
  %44 = vst [vmem:[#allocation2 + $0x28] sm:$0xf] %v35
  %v45 = vld [vmem:[%s0] sm:$0xff]
  %v46 = vld [vmem:[%s0 + $0x8] sm:$0xff]
  %v47 = vld [vmem:[%s0 + $0x10] sm:$0xff]
  %v48 = vld [vmem:[%s0 + $0x18] sm:$0xf]
  %v53 = vcombine.low %v45, %v45
  %v54 = vcombine.low %v46, %v46
  %v55 = vcombine.low %v47, %v47
  %v56 = vcombine.low %v48, %v48
  %57 = vrot.lane.b32.xlu0 %v53, 127
  %v58 = vpop.permute.xlu0 %57
  %59 = vrot.lane.b32.xlu0 %v45, 127
  %v60 = vpop.permute.xlu0 %59
  %61 = vrot.lane.b32.xlu0 %v54, 127
  %v62 = vpop.permute.xlu0 %61
  %63 = vrot.lane.b32.xlu0 %v46, 127
  %v64 = vpop.permute.xlu0 %63
  %65 = vrot.lane.b32.xlu0 %v55, 127
  %v66 = vpop.permute.xlu0 %65
  %67 = vrot.lane.b32.xlu0 %v47, 127
  %v68 = vpop.permute.xlu0 %67
  %69 = vrot.lane.b32.xlu0 %v56, 127
  %v70 = vpop.permute.xlu0 %69
  %vm71 = vcmask 1039360
  %v72 = vsel %vm71, %v58, %v60
  %v73 = vsel %vm71, %v60, %v62
  %v74 = vsel %vm71, %v62, %v64
  %v75 = vsel %vm71, %v64, %v66
  %v76 = vsel %vm71, %v66, %v68
  %v77 = vsel %vm71, %v68, %v70
  %84 = vst [vmem:[#allocation2] sm:$0xf0] %v72
  %85 = vst [vmem:[#allocation2 + $0x8] sm:$0xf0] %v73
  %86 = vst [vmem:[#allocation2 + $0x10] sm:$0xf0] %v74
  %87 = vst [vmem:[#allocation2 + $0x18] sm:$0xf0] %v75
  %88 = vst [vmem:[#allocation2 + $0x20] sm:$0xf0] %v76
  %89 = vst [vmem:[#allocation2 + $0x28] sm:$0xf0] %v77
  %v90 = vld [vmem:[%s0] sm:$0xff]
  %v91 = vld [vmem:[%s0 + $0x8] sm:$0xff]
  %v92 = vld [vmem:[%s0 + $0x10] sm:$0xff]
  %v93 = vld [vmem:[%s0 + $0x18] sm:$0xf]
  %v98 = vcombine.high %v90, %v90
  %v99 = vcombine.high %v91, %v91
  %v100 = vcombine.high %v92, %v92
  %101 = vrot.lane.b32.xlu0 %v90, 126
  %v102 = vpop.permute.xlu0 %101
  %103 = vrot.lane.b32.xlu0 %v98, 126
  %v104 = vpop.permute.xlu0 %103
  %105 = vrot.lane.b32.xlu0 %v91, 126
  %v106 = vpop.permute.xlu0 %105
  %107 = vrot.lane.b32.xlu0 %v99, 126
  %v108 = vpop.permute.xlu0 %107
  %109 = vrot.lane.b32.xlu0 %v92, 126
  %v110 = vpop.permute.xlu0 %109
  %111 = vrot.lane.b32.xlu0 %v100, 126
  %v112 = vpop.permute.xlu0 %111
  %113 = vrot.lane.b32.xlu0 %v93, 126
  %v114 = vpop.permute.xlu0 %113
  %vm115 = vcmask 1031168
  %v116 = vsel %vm115, %v102, %v104
  %v117 = vsel %vm115, %v104, %v106
  %v118 = vsel %vm115, %v106, %v108
  %v119 = vsel %vm115, %v108, %v110
  %v120 = vsel %vm115, %v110, %v112
  %v121 = vsel %vm115, %v112, %v114
  %128 = vst [vmem:[#allocation2 + $0x30] sm:$0xf] %v116
  %129 = vst [vmem:[#allocation2 + $0x38] sm:$0xf] %v117
  %130 = vst [vmem:[#allocation2 + $0x40] sm:$0xf] %v118
  %131 = vst [vmem:[#allocation2 + $0x48] sm:$0xf] %v119
  %132 = vst [vmem:[#allocation2 + $0x50] sm:$0xf] %v120
  %133 = vst [vmem:[#allocation2 + $0x58] sm:$0xf] %v121
  %v134 = vld [vmem:[%s0] sm:$0xff]
  %v135 = vld [vmem:[%s0 + $0x8] sm:$0xff]
  %v136 = vld [vmem:[%s0 + $0x10] sm:$0xff]
  %v137 = vld [vmem:[%s0 + $0x18] sm:$0xf]
  %v142 = vcombine.low %v134, %v134
  %v143 = vcombine.low %v135, %v135
  %v144 = vcombine.low %v136, %v136
  %v145 = vcombine.low %v137, %v137
  %146 = vrot.lane.b32.xlu0 %v142, 125
  %v147 = vpop.permute.xlu0 %146
  %148 = vrot.lane.b32.xlu0 %v134, 125
  %v149 = vpop.permute.xlu0 %148
  %150 = vrot.lane.b32.xlu0 %v143, 125
  %v151 = vpop.permute.xlu0 %150
  %152 = vrot.lane.b32.xlu0 %v135, 125
  %v153 = vpop.permute.xlu0 %152
  %154 = vrot.lane.b32.xlu0 %v144, 125
  %v155 = vpop.permute.xlu0 %154
  %156 = vrot.lane.b32.xlu0 %v136, 125
  %v157 = vpop.permute.xlu0 %156
  %158 = vrot.lane.b32.xlu0 %v145, 125
  %v159 = vpop.permute.xlu0 %158
  %vm160 = vcmask 1022976
  %v161 = vsel %vm160, %v147, %v149
  %v162 = vsel %vm160, %v149, %v151
  %v163 = vsel %vm160, %v151, %v153
  %v164 = vsel %vm160, %v153, %v155
  %v165 = vsel %vm160, %v155, %v157
  %v166 = vsel %vm160, %v157, %v159
  %173 = vst [vmem:[#allocation2 + $0x30] sm:$0xf0] %v161
  %174 = vst [vmem:[#allocation2 + $0x38] sm:$0xf0] %v162
  %175 = vst [vmem:[#allocation2 + $0x40] sm:$0xf0] %v163
  %176 = vst [vmem:[#allocation2 + $0x48] sm:$0xf0] %v164
  %177 = vst [vmem:[#allocation2 + $0x50] sm:$0xf0] %v165
  %178 = vst [vmem:[#allocation2 + $0x58] sm:$0xf0] %v166
  %v179 = vld [vmem:[%s0] sm:$0xff]
  %v180 = vld [vmem:[%s0 + $0x8] sm:$0xff]
  %v181 = vld [vmem:[%s0 + $0x10] sm:$0xff]
  %v182 = vld [vmem:[%s0 + $0x18] sm:$0xf]
  %v187 = vcombine.high %v179, %v179
  %v188 = vcombine.high %v180, %v180
  %v189 = vcombine.high %v181, %v181
  %190 = vrot.lane.b32.xlu0 %v179, 124
  %v191 = vpop.permute.xlu0 %190
  %192 = vrot.lane.b32.xlu0 %v187, 124
  %v193 = vpop.permute.xlu0 %192
  %194 = vrot.lane.b32.xlu0 %v180, 124
  %v195 = vpop.permute.xlu0 %194
  %196 = vrot.lane.b32.xlu0 %v188, 124
  %v197 = vpop.permute.xlu0 %196
  %198 = vrot.lane.b32.xlu0 %v181, 124
  %v199 = vpop.permute.xlu0 %198
  %200 = vrot.lane.b32.xlu0 %v189, 124
  %v201 = vpop.permute.xlu0 %200
  %202 = vrot.lane.b32.xlu0 %v182, 124
  %v203 = vpop.permute.xlu0 %202
  %vm204 = vcmask 1014784
  %v205 = vsel %vm204, %v191, %v193
  %v206 = vsel %vm204, %v193, %v195
  %v207 = vsel %vm204, %v195, %v197
  %v208 = vsel %vm204, %v197, %v199
  %v209 = vsel %vm204, %v199, %v201
  %v210 = vsel %vm204, %v201, %v203
  %217 = vst [vmem:[#allocation2 + $0x60] sm:$0xf] %v205
  %218 = vst [vmem:[#allocation2 + $0x68] sm:$0xf] %v206
  %219 = vst [vmem:[#allocation2 + $0x70] sm:$0xf] %v207
  %220 = vst [vmem:[#allocation2 + $0x78] sm:$0xf] %v208
  %221 = vst [vmem:[#allocation2 + $0x80] sm:$0xf] %v209
  %222 = vst [vmem:[#allocation2 + $0x88] sm:$0xf] %v210
  %v223 = vld [vmem:[%s0] sm:$0xff]
  %v224 = vld [vmem:[%s0 + $0x8] sm:$0xff]
  %v225 = vld [vmem:[%s0 + $0x10] sm:$0xff]
  %v226 = vld [vmem:[%s0 + $0x18] sm:$0xf]
  %v231 = vcombine.low %v223, %v223
  %v232 = vcombine.low %v224, %v224
  %v233 = vcombine.low %v225, %v225
  %v234 = vcombine.low %v226, %v226
  %235 = vrot.lane.b32.xlu0 %v231, 108
  %v236 = vpop.permute.xlu0 %235
  %237 = vrot.lane.b32.xlu0 %v223, 108
  %v238 = vpop.permute.xlu0 %237
  %239 = vrot.lane.b32.xlu0 %v232, 108
  %v240 = vpop.permute.xlu0 %239
  %241 = vrot.lane.b32.xlu0 %v224, 108
  %v242 = vpop.permute.xlu0 %241
  %243 = vrot.lane.b32.xlu0 %v233, 108
  %v244 = vpop.permute.xlu0 %243
  %245 = vrot.lane.b32.xlu0 %v225, 108
  %v246 = vpop.permute.xlu0 %245
  %247 = vrot.lane.b32.xlu0 %v234, 108
  %v248 = vpop.permute.xlu0 %247
  %vm249 = vcmask 883712
  %v250 = vsel %vm249, %v236, %v238
  %v251 = vsel %vm249, %v238, %v240
  %v252 = vsel %vm249, %v240, %v242
  %v253 = vsel %vm249, %v242, %v244
  %v254 = vsel %vm249, %v244, %v246
  %v255 = vsel %vm249, %v246, %v248
  %262 = vst [vmem:[#allocation2 + $0x60] sm:$0xf0] %v250
  %263 = vst [vmem:[#allocation2 + $0x68] sm:$0xf0] %v251
  %264 = vst [vmem:[#allocation2 + $0x70] sm:$0xf0] %v252
  %265 = vst [vmem:[#allocation2 + $0x78] sm:$0xf0] %v253
  %266 = vst [vmem:[#allocation2 + $0x80] sm:$0xf0] %v254
  %267 = vst [vmem:[#allocation2 + $0x88] sm:$0xf0] %v255
  %v268 = vld [vmem:[%s0] sm:$0xff]
  %v269 = vld [vmem:[%s0 + $0x8] sm:$0xff]
  %v270 = vld [vmem:[%s0 + $0x10] sm:$0xff]
  %v271 = vld [vmem:[%s0 + $0x18] sm:$0xf]
  %v276 = vcombine.high %v268, %v268
  %v277 = vcombine.high %v269, %v269
  %v278 = vcombine.high %v270, %v270
  %279 = vrot.lane.b32.xlu0 %v268, 107
  %v280 = vpop.permute.xlu0 %279
  %281 = vrot.lane.b32.xlu0 %v276, 107
  %v282 = vpop.permute.xlu0 %281
  %283 = vrot.lane.b32.xlu0 %v269, 107
  %v284 = vpop.permute.xlu0 %283
  %285 = vrot.lane.b32.xlu0 %v277, 107
  %v286 = vpop.permute.xlu0 %285
  %287 = vrot.lane.b32.xlu0 %v270, 107
  %v288 = vpop.permute.xlu0 %287
  %289 = vrot.lane.b32.xlu0 %v278, 107
  %v290 = vpop.permute.xlu0 %289
  %291 = vrot.lane.b32.xlu0 %v271, 107
  %v292 = vpop.permute.xlu0 %291
  %vm293 = vcmask 875520
  %v294 = vsel %vm293, %v280, %v282
  %v295 = vsel %vm293, %v282, %v284
  %v296 = vsel %vm293, %v284, %v286
  %v297 = vsel %vm293, %v286, %v288
  %v298 = vsel %vm293, %v288, %v290
  %v299 = vsel %vm293, %v290, %v292
  %306 = vst [vmem:[#allocation2 + $0x90] sm:$0xf] %v294
  %307 = vst [vmem:[#allocation2 + $0x98] sm:$0xf] %v295
  %308 = vst [vmem:[#allocation2 + $0xa0] sm:$0xf] %v296
  %309 = vst [vmem:[#allocation2 + $0xa8] sm:$0xf] %v297
  %310 = vst [vmem:[#allocation2 + $0xb0] sm:$0xf] %v298
  %311 = vst [vmem:[#allocation2 + $0xb8] sm:$0xf] %v299
  %v312 = vld [vmem:[%s0] sm:$0xff]
  %v313 = vld [vmem:[%s0 + $0x8] sm:$0xff]
  %v314 = vld [vmem:[%s0 + $0x10] sm:$0xff]
  %v315 = vld [vmem:[%s0 + $0x18] sm:$0xf]
  %v320 = vcombine.low %v312, %v312
  %v321 = vcombine.low %v313, %v313
  %v322 = vcombine.low %v314, %v314
  %v323 = vcombine.low %v315, %v315
  %324 = vrot.lane.b32.xlu0 %v320, 106
  %v325 = vpop.permute.xlu0 %324
  %326 = vrot.lane.b32.xlu0 %v312, 106
  %v327 = vpop.permute.xlu0 %326
  %328 = vrot.lane.b32.xlu0 %v321, 106
  %v329 = vpop.permute.xlu0 %328
  %330 = vrot.lane.b32.xlu0 %v313, 106
  %v331 = vpop.permute.xlu0 %330
  %332 = vrot.lane.b32.xlu0 %v322, 106
  %v333 = vpop.permute.xlu0 %332
  %334 = vrot.lane.b32.xlu0 %v314, 106
  %v335 = vpop.permute.xlu0 %334
  %336 = vrot.lane.b32.xlu0 %v323, 106
  %v337 = vpop.permute.xlu0 %336
  %vm338 = vcmask 867328
  %v339 = vsel %vm338, %v325, %v327
  %v340 = vsel %vm338, %v327, %v329
  %v341 = vsel %vm338, %v329, %v331
  %v342 = vsel %vm338, %v331, %v333
  %v343 = vsel %vm338, %v333, %v335
  %v344 = vsel %vm338, %v335, %v337
  %351 = vst [vmem:[#allocation2 + $0x90] sm:$0xf0] %v339
  %352 = vst [vmem:[#allocation2 + $0x98] sm:$0xf0] %v340
  %353 = vst [vmem:[#allocation2 + $0xa0] sm:$0xf0] %v341
  %354 = vst [vmem:[#allocation2 + $0xa8] sm:$0xf0] %v342
  %355 = vst [vmem:[#allocation2 + $0xb0] sm:$0xf0] %v343
  %356 = vst [vmem:[#allocation2 + $0xb8] sm:$0xf0] %v344
  %v357 = vld [vmem:[%s0] sm:$0xff]
  %v358 = vld [vmem:[%s0 + $0x8] sm:$0xff]
  %v359 = vld [vmem:[%s0 + $0x10] sm:$0xff]
  %v360 = vld [vmem:[%s0 + $0x18] sm:$0xf]
  %v365 = vcombine.high %v357, %v357
  %v366 = vcombine.high %v358, %v358
  %v367 = vcombine.high %v359, %v359
  %368 = vrot.lane.b32.xlu0 %v357, 105
  %v369 = vpop.permute.xlu0 %368
  %370 = vrot.lane.b32.xlu0 %v365, 105
  %v371 = vpop.permute.xlu0 %370
  %372 = vrot.lane.b32.xlu0 %v358, 105
  %v373 = vpop.permute.xlu0 %372
  %374 = vrot.lane.b32.xlu0 %v366, 105
  %v375 = vpop.permute.xlu0 %374
  %376 = vrot.lane.b32.xlu0 %v359, 105
  %v377 = vpop.permute.xlu0 %376
  %378 = vrot.lane.b32.xlu0 %v367, 105
  %v379 = vpop.permute.xlu0 %378
  %380 = vrot.lane.b32.xlu0 %v360, 105
  %v381 = vpop.permute.xlu0 %380
  %vm382 = vcmask 859136
  %v383 = vsel %vm382, %v369, %v371
  %v384 = vsel %vm382, %v371, %v373
  %v385 = vsel %vm382, %v373, %v375
  %v386 = vsel %vm382, %v375, %v377
  %v387 = vsel %vm382, %v377, %v379
  %v388 = vsel %vm382, %v379, %v381
  %395 = vst [vmem:[#allocation2 + $0xc0] sm:$0xf] %v383
  %396 = vst [vmem:[#allocation2 + $0xc8] sm:$0xf] %v384
  %397 = vst [vmem:[#allocation2 + $0xd0] sm:$0xf] %v385
  %398 = vst [vmem:[#allocation2 + $0xd8] sm:$0xf] %v386
  %399 = vst [vmem:[#allocation2 + $0xe0] sm:$0xf] %v387
  %400 = vst [vmem:[#allocation2 + $0xe8] sm:$0xf] %v388
  %v401 = vld [vmem:[%s0] sm:$0xff]
  %v402 = vld [vmem:[%s0 + $0x8] sm:$0xff]
  %v403 = vld [vmem:[%s0 + $0x10] sm:$0xff]
  %v404 = vld [vmem:[%s0 + $0x18] sm:$0xf]
  %v409 = vcombine.low %v401, %v401
  %v410 = vcombine.low %v402, %v402
  %v411 = vcombine.low %v403, %v403
  %v412 = vcombine.low %v404, %v404
  %413 = vrot.lane.b32.xlu0 %v409, 104
  %v414 = vpop.permute.xlu0 %413
  %415 = vrot.lane.b32.xlu0 %v401, 104
  %v416 = vpop.permute.xlu0 %415
  %417 = vrot.lane.b32.xlu0 %v410, 104
  %v418 = vpop.permute.xlu0 %417
  %419 = vrot.lane.b32.xlu0 %v402, 104
  %v420 = vpop.permute.xlu0 %419
  %421 = vrot.lane.b32.xlu0 %v411, 104
  %v422 = vpop.permute.xlu0 %421
  %423 = vrot.lane.b32.xlu0 %v403, 104
  %v424 = vpop.permute.xlu0 %423
  %425 = vrot.lane.b32.xlu0 %v412, 104
  %v426 = vpop.permute.xlu0 %425
  %vm427 = vcmask 850944
  %v428 = vsel %vm427, %v414, %v416
  %v429 = vsel %vm427, %v416, %v418
  %v430 = vsel %vm427, %v418, %v420
  %v431 = vsel %vm427, %v420, %v422
  %v432 = vsel %vm427, %v422, %v424
  %v433 = vsel %vm427, %v424, %v426
  %440 = vst [vmem:[#allocation2 + $0xc0] sm:$0xf0] %v428
  %441 = vst [vmem:[#allocation2 + $0xc8] sm:$0xf0] %v429
  %442 = vst [vmem:[#allocation2 + $0xd0] sm:$0xf0] %v430
  %443 = vst [vmem:[#allocation2 + $0xd8] sm:$0xf0] %v431
  %444 = vst [vmem:[#allocation2 + $0xe0] sm:$0xf0] %v432
  %445 = vst [vmem:[#allocation2 + $0xe8] sm:$0xf0] %v433
  %v446 = vld [vmem:[%s0] sm:$0xff]
  %v447 = vld [vmem:[%s0 + $0x8] sm:$0xff]
  %v448 = vld [vmem:[%s0 + $0x10] sm:$0xff]
  %v449 = vld [vmem:[%s0 + $0x18] sm:$0xf]
  %v454 = vcombine.high %v446, %v446
  %v455 = vcombine.high %v447, %v447
  %v456 = vcombine.high %v448, %v448
  %457 = vrot.lane.b32.xlu0 %v446, 88
  %v458 = vpop.permute.xlu0 %457
  %459 = vrot.lane.b32.xlu0 %v454, 88
  %v460 = vpop.permute.xlu0 %459
  %461 = vrot.lane.b32.xlu0 %v447, 88
  %v462 = vpop.permute.xlu0 %461
  %463 = vrot.lane.b32.xlu0 %v455, 88
  %v464 = vpop.permute.xlu0 %463
  %465 = vrot.lane.b32.xlu0 %v448, 88
  %v466 = vpop.permute.xlu0 %465
  %467 = vrot.lane.b32.xlu0 %v456, 88
  %v468 = vpop.permute.xlu0 %467
  %469 = vrot.lane.b32.xlu0 %v449, 88
  %v470 = vpop.permute.xlu0 %469
  %vm471 = vcmask 719872
  %v472 = vsel %vm471, %v458, %v460
  %v473 = vsel %vm471, %v460, %v462
  %v474 = vsel %vm471, %v462, %v464
  %v475 = vsel %vm471, %v464, %v466
  %v476 = vsel %vm471, %v466, %v468
  %v477 = vsel %vm471, %v468, %v470
  %484 = vst [vmem:[#allocation2 + $0xf0] sm:$0xf] %v472
  %485 = vst [vmem:[#allocation2 + $0xf8] sm:$0xf] %v473
  %486 = vst [vmem:[#allocation2 + $0x100] sm:$0xf] %v474
  %487 = vst [vmem:[#allocation2 + $0x108] sm:$0xf] %v475
  %488 = vst [vmem:[#allocation2 + $0x110] sm:$0xf] %v476
  %489 = vst [vmem:[#allocation2 + $0x118] sm:$0xf] %v477
  %v490 = vld [vmem:[%s0] sm:$0xff]
  %v491 = vld [vmem:[%s0 + $0x8] sm:$0xff]
  %v492 = vld [vmem:[%s0 + $0x10] sm:$0xff]
  %v493 = vld [vmem:[%s0 + $0x18] sm:$0xf]
  %v498 = vcombine.low %v490, %v490
  %v499 = vcombine.low %v491, %v491
  %v500 = vcombine.low %v492, %v492
  %v501 = vcombine.low %v493, %v493
  %502 = vrot.lane.b32.xlu0 %v498, 87
  %v503 = vpop.permute.xlu0 %502
  %504 = vrot.lane.b32.xlu0 %v490, 87
  %v505 = vpop.permute.xlu0 %504
  %506 = vrot.lane.b32.xlu0 %v499, 87
  %v507 = vpop.permute.xlu0 %506
  %508 = vrot.lane.b32.xlu0 %v491, 87
  %v509 = vpop.permute.xlu0 %508
  %510 = vrot.lane.b32.xlu0 %v500, 87
  %v511 = vpop.permute.xlu0 %510
  %512 = vrot.lane.b32.xlu0 %v492, 87
  %v513 = vpop.permute.xlu0 %512
  %514 = vrot.lane.b32.xlu0 %v501, 87
  %v515 = vpop.permute.xlu0 %514
  %vm516 = vcmask 711680
  %v517 = vsel %vm516, %v503, %v505
  %v518 = vsel %vm516, %v505, %v507
  %v519 = vsel %vm516, %v507, %v509
  %v520 = vsel %vm516, %v509, %v511
  %v521 = vsel %vm516, %v511, %v513
  %v522 = vsel %vm516, %v513, %v515
  %529 = vst [vmem:[#allocation2 + $0xf0] sm:$0xf0] %v517
  %530 = vst [vmem:[#allocation2 + $0xf8] sm:$0xf0] %v518
  %531 = vst [vmem:[#allocation2 + $0x100] sm:$0xf0] %v519
  %532 = vst [vmem:[#allocation2 + $0x108] sm:$0xf0] %v520
  %533 = vst [vmem:[#allocation2 + $0x110] sm:$0xf0] %v521
  %534 = vst [vmem:[#allocation2 + $0x118] sm:$0xf0] %v522
  %v535 = vld [vmem:[%s0] sm:$0xff]
  %v536 = vld [vmem:[%s0 + $0x8] sm:$0xff]
  %v537 = vld [vmem:[%s0 + $0x10] sm:$0xff]
  %v538 = vld [vmem:[%s0 + $0x18] sm:$0xf]
  %v543 = vcombine.high %v535, %v535
  %v544 = vcombine.high %v536, %v536
  %v545 = vcombine.high %v537, %v537
  %546 = vrot.lane.b32.xlu0 %v535, 86
  %v547 = vpop.permute.xlu0 %546
  %548 = vrot.lane.b32.xlu0 %v543, 86
  %v549 = vpop.permute.xlu0 %548
  %550 = vrot.lane.b32.xlu0 %v536, 86
  %v551 = vpop.permute.xlu0 %550
  %552 = vrot.lane.b32.xlu0 %v544, 86
  %v553 = vpop.permute.xlu0 %552
  %554 = vrot.lane.b32.xlu0 %v537, 86
  %v555 = vpop.permute.xlu0 %554
  %556 = vrot.lane.b32.xlu0 %v545, 86
  %v557 = vpop.permute.xlu0 %556
  %558 = vrot.lane.b32.xlu0 %v538, 86
  %v559 = vpop.permute.xlu0 %558
  %vm560 = vcmask 703488
  %v561 = vsel %vm560, %v547, %v549
  %v562 = vsel %vm560, %v549, %v551
  %v563 = vsel %vm560, %v551, %v553
  %v564 = vsel %vm560, %v553, %v555
  %v565 = vsel %vm560, %v555, %v557
  %v566 = vsel %vm560, %v557, %v559
  %573 = vst [vmem:[#allocation2 + $0x120] sm:$0xf] %v561
  %574 = vst [vmem:[#allocation2 + $0x128] sm:$0xf] %v562
  %575 = vst [vmem:[#allocation2 + $0x130] sm:$0xf] %v563
  %576 = vst [vmem:[#allocation2 + $0x138] sm:$0xf] %v564
  %577 = vst [vmem:[#allocation2 + $0x140] sm:$0xf] %v565
  %578 = vst [vmem:[#allocation2 + $0x148] sm:$0xf] %v566
  %v579 = vld [vmem:[%s0] sm:$0xff]
  %v580 = vld [vmem:[%s0 + $0x8] sm:$0xff]
  %v581 = vld [vmem:[%s0 + $0x10] sm:$0xff]
  %v582 = vld [vmem:[%s0 + $0x18] sm:$0xf]
  %v587 = vcombine.low %v579, %v579
  %v588 = vcombine.low %v580, %v580
  %v589 = vcombine.low %v581, %v581
  %v590 = vcombine.low %v582, %v582
  %591 = vrot.lane.b32.xlu0 %v587, 85
  %v592 = vpop.permute.xlu0 %591
  %593 = vrot.lane.b32.xlu0 %v579, 85
  %v594 = vpop.permute.xlu0 %593
  %595 = vrot.lane.b32.xlu0 %v588, 85
  %v596 = vpop.permute.xlu0 %595
  %597 = vrot.lane.b32.xlu0 %v580, 85
  %v598 = vpop.permute.xlu0 %597
  %599 = vrot.lane.b32.xlu0 %v589, 85
  %v600 = vpop.permute.xlu0 %599
  %601 = vrot.lane.b32.xlu0 %v581, 85
  %v602 = vpop.permute.xlu0 %601
  %603 = vrot.lane.b32.xlu0 %v590, 85
  %v604 = vpop.permute.xlu0 %603
  %vm605 = vcmask 695296
  %v606 = vsel %vm605, %v592, %v594
  %v607 = vsel %vm605, %v594, %v596
  %v608 = vsel %vm605, %v596, %v598
  %v609 = vsel %vm605, %v598, %v600
  %v610 = vsel %vm605, %v600, %v602
  %v611 = vsel %vm605, %v602, %v604
  %618 = vst [vmem:[#allocation2 + $0x120] sm:$0xf0] %v606
  %619 = vst [vmem:[#allocation2 + $0x128] sm:$0xf0] %v607
  %620 = vst [vmem:[#allocation2 + $0x130] sm:$0xf0] %v608
  %621 = vst [vmem:[#allocation2 + $0x138] sm:$0xf0] %v609
  %622 = vst [vmem:[#allocation2 + $0x140] sm:$0xf0] %v610
  %623 = vst [vmem:[#allocation2 + $0x148] sm:$0xf0] %v611
  %v624 = vld [vmem:[%s0] sm:$0xff]
  %v625 = vld [vmem:[%s0 + $0x8] sm:$0xff]
  %v626 = vld [vmem:[%s0 + $0x10] sm:$0xff]
  %v627 = vld [vmem:[%s0 + $0x18] sm:$0xf]
  %v632 = vcombine.high %v624, %v624
  %v633 = vcombine.high %v625, %v625
  %v634 = vcombine.high %v626, %v626
  %635 = vrot.lane.b32.xlu0 %v624, 84
  %v636 = vpop.permute.xlu0 %635
  %637 = vrot.lane.b32.xlu0 %v632, 84
  %v638 = vpop.permute.xlu0 %637
  %639 = vrot.lane.b32.xlu0 %v625, 84
  %v640 = vpop.permute.xlu0 %639
  %641 = vrot.lane.b32.xlu0 %v633, 84
  %v642 = vpop.permute.xlu0 %641
  %643 = vrot.lane.b32.xlu0 %v626, 84
  %v644 = vpop.permute.xlu0 %643
  %645 = vrot.lane.b32.xlu0 %v634, 84
  %v646 = vpop.permute.xlu0 %645
  %647 = vrot.lane.b32.xlu0 %v627, 84
  %v648 = vpop.permute.xlu0 %647
  %vm649 = vcmask 687104
  %v650 = vsel %vm649, %v636, %v638
  %v651 = vsel %vm649, %v638, %v640
  %v652 = vsel %vm649, %v640, %v642
  %v653 = vsel %vm649, %v642, %v644
  %v654 = vsel %vm649, %v644, %v646
  %v655 = vsel %vm649, %v646, %v648
  %662 = vst [vmem:[#allocation2 + $0x150] sm:$0xf] %v650
  %663 = vst [vmem:[#allocation2 + $0x158] sm:$0xf] %v651
  %664 = vst [vmem:[#allocation2 + $0x160] sm:$0xf] %v652
  %665 = vst [vmem:[#allocation2 + $0x168] sm:$0xf] %v653
  %666 = vst [vmem:[#allocation2 + $0x170] sm:$0xf] %v654
  %667 = vst [vmem:[#allocation2 + $0x178] sm:$0xf] %v655
  %v668 = vld [vmem:[%s0] sm:$0xff]
  %v669 = vld [vmem:[%s0 + $0x8] sm:$0xff]
  %v670 = vld [vmem:[%s0 + $0x10] sm:$0xff]
  %v671 = vld [vmem:[%s0 + $0x18] sm:$0xf]
  %v676 = vcombine.low %v668, %v668
  %v677 = vcombine.low %v669, %v669
  %v678 = vcombine.low %v670, %v670
  %v679 = vcombine.low %v671, %v671
  %680 = vrot.lane.b32.xlu0 %v676, 68
  %v681 = vpop.permute.xlu0 %680
  %682 = vrot.lane.b32.xlu0 %v668, 68
  %v683 = vpop.permute.xlu0 %682
  %684 = vrot.lane.b32.xlu0 %v677, 68
  %v685 = vpop.permute.xlu0 %684
  %686 = vrot.lane.b32.xlu0 %v669, 68
  %v687 = vpop.permute.xlu0 %686
  %688 = vrot.lane.b32.xlu0 %v678, 68
  %v689 = vpop.permute.xlu0 %688
  %690 = vrot.lane.b32.xlu0 %v670, 68
  %v691 = vpop.permute.xlu0 %690
  %692 = vrot.lane.b32.xlu0 %v679, 68
  %v693 = vpop.permute.xlu0 %692
  %vm694 = vcmask 556032
  %v695 = vsel %vm694, %v681, %v683
  %v696 = vsel %vm694, %v683, %v685
  %v697 = vsel %vm694, %v685, %v687
  %v698 = vsel %vm694, %v687, %v689
  %v699 = vsel %vm694, %v689, %v691
  %v700 = vsel %vm694, %v691, %v693
  %707 = vst [vmem:[#allocation2 + $0x150] sm:$0xf0] %v695
  %708 = vst [vmem:[#allocation2 + $0x158] sm:$0xf0] %v696
  %709 = vst [vmem:[#allocation2 + $0x160] sm:$0xf0] %v697
  %710 = vst [vmem:[#allocation2 + $0x168] sm:$0xf0] %v698
  %711 = vst [vmem:[#allocation2 + $0x170] sm:$0xf0] %v699
  %712 = vst [vmem:[#allocation2 + $0x178] sm:$0xf0] %v700
  %v713 = vld [vmem:[%s0] sm:$0xff]
  %v714 = vld [vmem:[%s0 + $0x8] sm:$0xff]
  %v715 = vld [vmem:[%s0 + $0x10] sm:$0xff]
  %v716 = vld [vmem:[%s0 + $0x18] sm:$0xf]
  %v721 = vcombine.high %v713, %v713
  %v722 = vcombine.high %v714, %v714
  %v723 = vcombine.high %v715, %v715
  %724 = vrot.lane.b32.xlu0 %v713, 67
  %v725 = vpop.permute.xlu0 %724
  %726 = vrot.lane.b32.xlu0 %v721, 67
  %v727 = vpop.permute.xlu0 %726
  %728 = vrot.lane.b32.xlu0 %v714, 67
  %v729 = vpop.permute.xlu0 %728
  %730 = vrot.lane.b32.xlu0 %v722, 67
  %v731 = vpop.permute.xlu0 %730
  %732 = vrot.lane.b32.xlu0 %v715, 67
  %v733 = vpop.permute.xlu0 %732
  %734 = vrot.lane.b32.xlu0 %v723, 67
  %v735 = vpop.permute.xlu0 %734
  %736 = vrot.lane.b32.xlu0 %v716, 67
  %v737 = vpop.permute.xlu0 %736
  %vm738 = vcmask 547840
  %v739 = vsel %vm738, %v725, %v727
  %v740 = vsel %vm738, %v727, %v729
  %v741 = vsel %vm738, %v729, %v731
  %v742 = vsel %vm738, %v731, %v733
  %v743 = vsel %vm738, %v733, %v735
  %v744 = vsel %vm738, %v735, %v737
  %751 = vst [vmem:[#allocation2 + $0x180] sm:$0xf] %v739
  %752 = vst [vmem:[#allocation2 + $0x188] sm:$0xf] %v740
  %753 = vst [vmem:[#allocation2 + $0x190] sm:$0xf] %v741
  %754 = vst [vmem:[#allocation2 + $0x198] sm:$0xf] %v742
  %755 = vst [vmem:[#allocation2 + $0x1a0] sm:$0xf] %v743
  %756 = vst [vmem:[#allocation2 + $0x1a8] sm:$0xf] %v744
  %v757 = vld [vmem:[%s0] sm:$0xff]
  %v758 = vld [vmem:[%s0 + $0x8] sm:$0xff]
  %v759 = vld [vmem:[%s0 + $0x10] sm:$0xff]
  %v760 = vld [vmem:[%s0 + $0x18] sm:$0xf]
  %v765 = vcombine.low %v757, %v757
  %v766 = vcombine.low %v758, %v758
  %v767 = vcombine.low %v759, %v759
  %v768 = vcombine.low %v760, %v760
  %769 = vrot.lane.b32.xlu0 %v765, 66
  %v770 = vpop.permute.xlu0 %769
  %771 = vrot.lane.b32.xlu0 %v757, 66
  %v772 = vpop.permute.xlu0 %771
  %773 = vrot.lane.b32.xlu0 %v766, 66
  %v774 = vpop.permute.xlu0 %773
  %775 = vrot.lane.b32.xlu0 %v758, 66
  %v776 = vpop.permute.xlu0 %775
  %777 = vrot.lane.b32.xlu0 %v767, 66
  %v778 = vpop.permute.xlu0 %777
  %779 = vrot.lane.b32.xlu0 %v759, 66
  %v780 = vpop.permute.xlu0 %779
  %781 = vrot.lane.b32.xlu0 %v768, 66
  %v782 = vpop.permute.xlu0 %781
  %vm783 = vcmask 539648
  %v784 = vsel %vm783, %v770, %v772
  %v785 = vsel %vm783, %v772, %v774
  %v786 = vsel %vm783, %v774, %v776
  %v787 = vsel %vm783, %v776, %v778
  %v788 = vsel %vm783, %v778, %v780
  %v789 = vsel %vm783, %v780, %v782
  %796 = vst [vmem:[#allocation2 + $0x180] sm:$0xf0] %v784
  %797 = vst [vmem:[#allocation2 + $0x188] sm:$0xf0] %v785
  %798 = vst [vmem:[#allocation2 + $0x190] sm:$0xf0] %v786
  %799 = vst [vmem:[#allocation2 + $0x198] sm:$0xf0] %v787
  %800 = vst [vmem:[#allocation2 + $0x1a0] sm:$0xf0] %v788
  %801 = vst [vmem:[#allocation2 + $0x1a8] sm:$0xf0] %v789
  %v802 = vld [vmem:[%s0] sm:$0xff]
  %v803 = vld [vmem:[%s0 + $0x8] sm:$0xff]
  %v804 = vld [vmem:[%s0 + $0x10] sm:$0xff]
  %v805 = vld [vmem:[%s0 + $0x18] sm:$0xf]
  %v810 = vcombine.high %v802, %v802
  %v811 = vcombine.high %v803, %v803
  %v812 = vcombine.high %v804, %v804
  %813 = vrot.lane.b32.xlu0 %v802, 65
  %v814 = vpop.permute.xlu0 %813
  %815 = vrot.lane.b32.xlu0 %v810, 65
  %v816 = vpop.permute.xlu0 %815
  %817 = vrot.lane.b32.xlu0 %v803, 65
  %v818 = vpop.permute.xlu0 %817
  %819 = vrot.lane.b32.xlu0 %v811, 65
  %v820 = vpop.permute.xlu0 %819
  %821 = vrot.lane.b32.xlu0 %v804, 65
  %v822 = vpop.permute.xlu0 %821
  %823 = vrot.lane.b32.xlu0 %v812, 65
  %v824 = vpop.permute.xlu0 %823
  %825 = vrot.lane.b32.xlu0 %v805, 65
  %v826 = vpop.permute.xlu0 %825
  %vm827 = vcmask 531456
  %v828 = vsel %vm827, %v814, %v816
  %v829 = vsel %vm827, %v816, %v818
  %v830 = vsel %vm827, %v818, %v820
  %v831 = vsel %vm827, %v820, %v822
  %v832 = vsel %vm827, %v822, %v824
  %v833 = vsel %vm827, %v824, %v826
  %840 = vst [vmem:[#allocation2 + $0x1b0] sm:$0xf] %v828
  %841 = vst [vmem:[#allocation2 + $0x1b8] sm:$0xf] %v829
  %842 = vst [vmem:[#allocation2 + $0x1c0] sm:$0xf] %v830
  %843 = vst [vmem:[#allocation2 + $0x1c8] sm:$0xf] %v831
  %844 = vst [vmem:[#allocation2 + $0x1d0] sm:$0xf] %v832
  %845 = vst [vmem:[#allocation2 + $0x1d8] sm:$0xf] %v833
  %v846 = vld [vmem:[%s0] sm:$0xff]
  %v847 = vld [vmem:[%s0 + $0x8] sm:$0xff]
  %v848 = vld [vmem:[%s0 + $0x10] sm:$0xff]
  %v849 = vld [vmem:[%s0 + $0x18] sm:$0xf]
  %v854 = vcombine.low %v846, %v846
  %v855 = vcombine.low %v847, %v847
  %v856 = vcombine.low %v848, %v848
  %v857 = vcombine.low %v849, %v849
  %858 = vrot.lane.b32.xlu0 %v854, 64
  %v859 = vpop.permute.xlu0 %858
  %860 = vrot.lane.b32.xlu0 %v846, 64
  %v861 = vpop.permute.xlu0 %860
  %862 = vrot.lane.b32.xlu0 %v855, 64
  %v863 = vpop.permute.xlu0 %862
  %864 = vrot.lane.b32.xlu0 %v847, 64
  %v865 = vpop.permute.xlu0 %864
  %866 = vrot.lane.b32.xlu0 %v856, 64
  %v867 = vpop.permute.xlu0 %866
  %868 = vrot.lane.b32.xlu0 %v848, 64
  %v869 = vpop.permute.xlu0 %868
  %870 = vrot.lane.b32.xlu0 %v857, 64
  %v871 = vpop.permute.xlu0 %870
  %vm872 = vcmask 523264
  %v873 = vsel %vm872, %v859, %v861
  %v874 = vsel %vm872, %v861, %v863
  %v875 = vsel %vm872, %v863, %v865
  %v876 = vsel %vm872, %v865, %v867
  %v877 = vsel %vm872, %v867, %v869
  %v878 = vsel %vm872, %v869, %v871
  %885 = vst [vmem:[#allocation2 + $0x1b0] sm:$0xf0] %v873
  %886 = vst [vmem:[#allocation2 + $0x1b8] sm:$0xf0] %v874
  %887 = vst [vmem:[#allocation2 + $0x1c0] sm:$0xf0] %v875
  %888 = vst [vmem:[#allocation2 + $0x1c8] sm:$0xf0] %v876
  %889 = vst [vmem:[#allocation2 + $0x1d0] sm:$0xf0] %v877
  %890 = vst [vmem:[#allocation2 + $0x1d8] sm:$0xf0] %v878
  %v891 = vld [vmem:[%s0] sm:$0xff]
  %v892 = vld [vmem:[%s0 + $0x8] sm:$0xff]
  %v893 = vld [vmem:[%s0 + $0x10] sm:$0xff]
  %v894 = vld [vmem:[%s0 + $0x18] sm:$0xf]
  %v899 = vcombine.high %v891, %v891
  %v900 = vcombine.high %v892, %v892
  %v901 = vcombine.high %v893, %v893
  %902 = vrot.lane.b32.xlu0 %v891, 48
  %v903 = vpop.permute.xlu0 %902
  %904 = vrot.lane.b32.xlu0 %v899, 48
  %v905 = vpop.permute.xlu0 %904
  %906 = vrot.lane.b32.xlu0 %v892, 48
  %v907 = vpop.permute.xlu0 %906
  %908 = vrot.lane.b32.xlu0 %v900, 48
  %v909 = vpop.permute.xlu0 %908
  %910 = vrot.lane.b32.xlu0 %v893, 48
  %v911 = vpop.permute.xlu0 %910
  %912 = vrot.lane.b32.xlu0 %v901, 48
  %v913 = vpop.permute.xlu0 %912
  %914 = vrot.lane.b32.xlu0 %v894, 48
  %v915 = vpop.permute.xlu0 %914
  %vm916 = vcmask 392192
  %v917 = vsel %vm916, %v903, %v905
  %v918 = vsel %vm916, %v905, %v907
  %v919 = vsel %vm916, %v907, %v909
  %v920 = vsel %vm916, %v909, %v911
  %v921 = vsel %vm916, %v911, %v913
  %v922 = vsel %vm916, %v913, %v915
  %929 = vst [vmem:[#allocation2 + $0x1e0] sm:$0xf] %v917
  %930 = vst [vmem:[#allocation2 + $0x1e8] sm:$0xf] %v918
  %931 = vst [vmem:[#allocation2 + $0x1f0] sm:$0xf] %v919
  %932 = vst [vmem:[#allocation2 + $0x1f8] sm:$0xf] %v920
  %933 = vst [vmem:[#allocation2 + $0x200] sm:$0xf] %v921
  %934 = vst [vmem:[#allocation2 + $0x208] sm:$0xf] %v922
  %v935 = vld [vmem:[%s0] sm:$0xff]
  %v936 = vld [vmem:[%s0 + $0x8] sm:$0xff]
  %v937 = vld [vmem:[%s0 + $0x10] sm:$0xff]
  %v938 = vld [vmem:[%s0 + $0x18] sm:$0xf]
  %v943 = vcombine.low %v935, %v935
  %v944 = vcombine.low %v936, %v936
  %v945 = vcombine.low %v937, %v937
  %v946 = vcombine.low %v938, %v938
  %947 = vrot.lane.b32.xlu0 %v943, 47
  %v948 = vpop.permute.xlu0 %947
  %949 = vrot.lane.b32.xlu0 %v935, 47
  %v950 = vpop.permute.xlu0 %949
  %951 = vrot.lane.b32.xlu0 %v944, 47
  %v952 = vpop.permute.xlu0 %951
  %953 = vrot.lane.b32.xlu0 %v936, 47
  %v954 = vpop.permute.xlu0 %953
  %955 = vrot.lane.b32.xlu0 %v945, 47
  %v956 = vpop.permute.xlu0 %955
  %957 = vrot.lane.b32.xlu0 %v937, 47
  %v958 = vpop.permute.xlu0 %957
  %959 = vrot.lane.b32.xlu0 %v946, 47
  %v960 = vpop.permute.xlu0 %959
  %vm961 = vcmask 384000
  %v962 = vsel %vm961, %v948, %v950
  %v963 = vsel %vm961, %v950, %v952
  %v964 = vsel %vm961, %v952, %v954
  %v965 = vsel %vm961, %v954, %v956
  %v966 = vsel %vm961, %v956, %v958
  %v967 = vsel %vm961, %v958, %v960
  %974 = vst [vmem:[#allocation2 + $0x1e0] sm:$0xf0] %v962
  %975 = vst [vmem:[#allocation2 + $0x1e8] sm:$0xf0] %v963
  %976 = vst [vmem:[#allocation2 + $0x1f0] sm:$0xf0] %v964
  %977 = vst [vmem:[#allocation2 + $0x1f8] sm:$0xf0] %v965
  %978 = vst [vmem:[#allocation2 + $0x200] sm:$0xf0] %v966
  %979 = vst [vmem:[#allocation2 + $0x208] sm:$0xf0] %v967
  %v980 = vld [vmem:[%s0] sm:$0xff]
  %v981 = vld [vmem:[%s0 + $0x8] sm:$0xff]
  %v982 = vld [vmem:[%s0 + $0x10] sm:$0xff]
  %v983 = vld [vmem:[%s0 + $0x18] sm:$0xf]
  %v988 = vcombine.high %v980, %v980
  %v989 = vcombine.high %v981, %v981
  %v990 = vcombine.high %v982, %v982
  %991 = vrot.lane.b32.xlu0 %v980, 46
  %v992 = vpop.permute.xlu0 %991
  %993 = vrot.lane.b32.xlu0 %v988, 46
  %v994 = vpop.permute.xlu0 %993
  %995 = vrot.lane.b32.xlu0 %v981, 46
  %v996 = vpop.permute.xlu0 %995
  %997 = vrot.lane.b32.xlu0 %v989, 46
  %v998 = vpop.permute.xlu0 %997
  %999 = vrot.lane.b32.xlu0 %v982, 46
  %v1000 = vpop.permute.xlu0 %999
  %1001 = vrot.lane.b32.xlu0 %v990, 46
  %v1002 = vpop.permute.xlu0 %1001
  %1003 = vrot.lane.b32.xlu0 %v983, 46
  %v1004 = vpop.permute.xlu0 %1003
  %vm1005 = vcmask 375808
  %v1006 = vsel %vm1005, %v992, %v994
  %v1007 = vsel %vm1005, %v994, %v996
  %v1008 = vsel %vm1005, %v996, %v998
  %v1009 = vsel %vm1005, %v998, %v1000
  %v1010 = vsel %vm1005, %v1000, %v1002
  %v1011 = vsel %vm1005, %v1002, %v1004
  %1018 = vst [vmem:[#allocation2 + $0x210] sm:$0xf] %v1006
  %1019 = vst [vmem:[#allocation2 + $0x218] sm:$0xf] %v1007
  %1020 = vst [vmem:[#allocation2 + $0x220] sm:$0xf] %v1008
  %1021 = vst [vmem:[#allocation2 + $0x228] sm:$0xf] %v1009
  %1022 = vst [vmem:[#allocation2 + $0x230] sm:$0xf] %v1010
  %1023 = vst [vmem:[#allocation2 + $0x238] sm:$0xf] %v1011
  %v1024 = vld [vmem:[%s0] sm:$0xff]
  %v1025 = vld [vmem:[%s0 + $0x8] sm:$0xff]
  %v1026 = vld [vmem:[%s0 + $0x10] sm:$0xff]
  %v1027 = vld [vmem:[%s0 + $0x18] sm:$0xf]
  %v1032 = vcombine.low %v1024, %v1024
  %v1033 = vcombine.low %v1025, %v1025
  %v1034 = vcombine.low %v1026, %v1026
  %v1035 = vcombine.low %v1027, %v1027
  %1036 = vrot.lane.b32.xlu0 %v1032, 45
  %v1037 = vpop.permute.xlu0 %1036
  %1038 = vrot.lane.b32.xlu0 %v1024, 45
  %v1039 = vpop.permute.xlu0 %1038
  %1040 = vrot.lane.b32.xlu0 %v1033, 45
  %v1041 = vpop.permute.xlu0 %1040
  %1042 = vrot.lane.b32.xlu0 %v1025, 45
  %v1043 = vpop.permute.xlu0 %1042
  %1044 = vrot.lane.b32.xlu0 %v1034, 45
  %v1045 = vpop.permute.xlu0 %1044
  %1046 = vrot.lane.b32.xlu0 %v1026, 45
  %v1047 = vpop.permute.xlu0 %1046
  %1048 = vrot.lane.b32.xlu0 %v1035, 45
  %v1049 = vpop.permute.xlu0 %1048
  %vm1050 = vcmask 367616
  %v1051 = vsel %vm1050, %v1037, %v1039
  %v1052 = vsel %vm1050, %v1039, %v1041
  %v1053 = vsel %vm1050, %v1041, %v1043
  %v1054 = vsel %vm1050, %v1043, %v1045
  %v1055 = vsel %vm1050, %v1045, %v1047
  %v1056 = vsel %vm1050, %v1047, %v1049
  %1063 = vst [vmem:[#allocation2 + $0x210] sm:$0xf0] %v1051
  %1064 = vst [vmem:[#allocation2 + $0x218] sm:$0xf0] %v1052
  %1065 = vst [vmem:[#allocation2 + $0x220] sm:$0xf0] %v1053
  %1066 = vst [vmem:[#allocation2 + $0x228] sm:$0xf0] %v1054
  %1067 = vst [vmem:[#allocation2 + $0x230] sm:$0xf0] %v1055
  %1068 = vst [vmem:[#allocation2 + $0x238] sm:$0xf0] %v1056
  %v1069 = vld [vmem:[%s0] sm:$0xff]
  %v1070 = vld [vmem:[%s0 + $0x8] sm:$0xff]
  %v1071 = vld [vmem:[%s0 + $0x10] sm:$0xff]
  %v1072 = vld [vmem:[%s0 + $0x18] sm:$0xf]
  %v1077 = vcombine.high %v1069, %v1069
  %v1078 = vcombine.high %v1070, %v1070
  %v1079 = vcombine.high %v1071, %v1071
  %1080 = vrot.lane.b32.xlu0 %v1069, 44
  %v1081 = vpop.permute.xlu0 %1080
  %1082 = vrot.lane.b32.xlu0 %v1077, 44
  %v1083 = vpop.permute.xlu0 %1082
  %1084 = vrot.lane.b32.xlu0 %v1070, 44
  %v1085 = vpop.permute.xlu0 %1084
  %1086 = vrot.lane.b32.xlu0 %v1078, 44
  %v1087 = vpop.permute.xlu0 %1086
  %1088 = vrot.lane.b32.xlu0 %v1071, 44
  %v1089 = vpop.permute.xlu0 %1088
  %1090 = vrot.lane.b32.xlu0 %v1079, 44
  %v1091 = vpop.permute.xlu0 %1090
  %1092 = vrot.lane.b32.xlu0 %v1072, 44
  %v1093 = vpop.permute.xlu0 %1092
  %vm1094 = vcmask 359424
  %v1095 = vsel %vm1094, %v1081, %v1083
  %v1096 = vsel %vm1094, %v1083, %v1085
  %v1097 = vsel %vm1094, %v1085, %v1087
  %v1098 = vsel %vm1094, %v1087, %v1089
  %v1099 = vsel %vm1094, %v1089, %v1091
  %v1100 = vsel %vm1094, %v1091, %v1093
  %1107 = vst [vmem:[#allocation2 + $0x240] sm:$0xf] %v1095
  %1108 = vst [vmem:[#allocation2 + $0x248] sm:$0xf] %v1096
  %1109 = vst [vmem:[#allocation2 + $0x250] sm:$0xf] %v1097
  %1110 = vst [vmem:[#allocation2 + $0x258] sm:$0xf] %v1098
  %1111 = vst [vmem:[#allocation2 + $0x260] sm:$0xf] %v1099
  %1112 = vst [vmem:[#allocation2 + $0x268] sm:$0xf] %v1100
  %v1113 = vld [vmem:[%s1] sm:$0xf]
  %v1114 = vld [vmem:[#allocation2] sm:$0xff]
  %v1115 = vld [vmem:[#allocation2 + $0x8] sm:$0xff]
  %v1116 = vld [vmem:[#allocation2 + $0x10] sm:$0xff]
  %v1117 = vld [vmem:[#allocation2 + $0x18] sm:$0xff]
  %v1118 = vld [vmem:[#allocation2 + $0x20] sm:$0xff]
  %v1119 = vld [vmem:[#allocation2 + $0x28] sm:$0xff]
  %v1120 = vld [vmem:[#allocation2 + $0x30] sm:$0xff]
  %v1121 = vld [vmem:[#allocation2 + $0x38] sm:$0xff]
  %v1122 = vld [vmem:[#allocation2 + $0x40] sm:$0xff]
  %v1123 = vld [vmem:[#allocation2 + $0x48] sm:$0xff]
  %v1124 = vld [vmem:[#allocation2 + $0x50] sm:$0xff]
  %v1125 = vld [vmem:[#allocation2 + $0x58] sm:$0xff]
  %v1126 = vld [vmem:[#allocation2 + $0x60] sm:$0xff]
  %v1127 = vld [vmem:[#allocation2 + $0x68] sm:$0xff]
  %v1128 = vld [vmem:[#allocation2 + $0x70] sm:$0xff]
  %v1129 = vld [vmem:[#allocation2 + $0x78] sm:$0xff]
  %v1130 = vld [vmem:[#allocation2 + $0x80] sm:$0xff]
  %v1131 = vld [vmem:[#allocation2 + $0x88] sm:$0xff]
  %v1132 = vld [vmem:[#allocation2 + $0x90] sm:$0xff]
  %v1133 = vld [vmem:[#allocation2 + $0x98] sm:$0xff]
  %v1134 = vld [vmem:[#allocation2 + $0xa0] sm:$0xff]
  %v1135 = vld [vmem:[#allocation2 + $0xa8] sm:$0xff]
  %v1136 = vld [vmem:[#allocation2 + $0xb0] sm:$0xff]
  %v1137 = vld [vmem:[#allocation2 + $0xb8] sm:$0xff]
  %v1138 = vld [vmem:[#allocation2 + $0xc0] sm:$0xff]
  %v1139 = vld [vmem:[#allocation2 + $0xc8] sm:$0xff]
  %v1140 = vld [vmem:[#allocation2 + $0xd0] sm:$0xff]
  %v1141 = vld [vmem:[#allocation2 + $0xd8] sm:$0xff]
  %v1142 = vld [vmem:[#allocation2 + $0xe0] sm:$0xff]
  %v1143 = vld [vmem:[#allocation2 + $0xe8] sm:$0xff]
  %v1144 = vld [vmem:[#allocation2 + $0xf0] sm:$0xff]
  %v1145 = vld [vmem:[#allocation2 + $0xf8] sm:$0xff]
  %v1146 = vld [vmem:[#allocation2 + $0x100] sm:$0xff]
  %v1147 = vld [vmem:[#allocation2 + $0x108] sm:$0xff]
  %v1148 = vld [vmem:[#allocation2 + $0x110] sm:$0xff]
  %v1149 = vld [vmem:[#allocation2 + $0x118] sm:$0xff]
  %v1150 = vld [vmem:[#allocation2 + $0x120] sm:$0xff]
  %v1151 = vld [vmem:[#allocation2 + $0x128] sm:$0xff]
  %v1152 = vld [vmem:[#allocation2 + $0x130] sm:$0xff]
  %v1153 = vld [vmem:[#allocation2 + $0x138] sm:$0xff]
  %v1154 = vld [vmem:[#allocation2 + $0x140] sm:$0xff]
  %v1155 = vld [vmem:[#allocation2 + $0x148] sm:$0xff]
  %v1156 = vld [vmem:[#allocation2 + $0x150] sm:$0xff]
  %v1157 = vld [vmem:[#allocation2 + $0x158] sm:$0xff]
  %v1158 = vld [vmem:[#allocation2 + $0x160] sm:$0xff]
  %v1159 = vld [vmem:[#allocation2 + $0x168] sm:$0xff]
  %v1160 = vld [vmem:[#allocation2 + $0x170] sm:$0xff]
  %v1161 = vld [vmem:[#allocation2 + $0x178] sm:$0xff]
  %v1162 = vld [vmem:[#allocation2 + $0x180] sm:$0xff]
  %v1163 = vld [vmem:[#allocation2 + $0x188] sm:$0xff]
  %v1164 = vld [vmem:[#allocation2 + $0x190] sm:$0xff]
  %v1165 = vld [vmem:[#allocation2 + $0x198] sm:$0xff]
  %v1166 = vld [vmem:[#allocation2 + $0x1a0] sm:$0xff]
  %v1167 = vld [vmem:[#allocation2 + $0x1a8] sm:$0xff]
  %v1168 = vld [vmem:[#allocation2 + $0x1b0] sm:$0xff]
  %v1169 = vld [vmem:[#allocation2 + $0x1b8] sm:$0xff]
  %v1170 = vld [vmem:[#allocation2 + $0x1c0] sm:$0xff]
  %v1171 = vld [vmem:[#allocation2 + $0x1c8] sm:$0xff]
  %v1172 = vld [vmem:[#allocation2 + $0x1d0] sm:$0xff]
  %v1173 = vld [vmem:[#allocation2 + $0x1d8] sm:$0xff]
  %v1174 = vld [vmem:[#allocation2 + $0x1e0] sm:$0xff]
  %v1175 = vld [vmem:[#allocation2 + $0x1e8] sm:$0xff]
  %v1176 = vld [vmem:[#allocation2 + $0x1f0] sm:$0xff]
  %v1177 = vld [vmem:[#allocation2 + $0x1f8] sm:$0xff]
  %v1178 = vld [vmem:[#allocation2 + $0x200] sm:$0xff]
  %v1179 = vld [vmem:[#allocation2 + $0x208] sm:$0xff]
  %v1180 = vld [vmem:[#allocation2 + $0x210] sm:$0xff]
  %v1181 = vld [vmem:[#allocation2 + $0x218] sm:$0xff]
  %v1182 = vld [vmem:[#allocation2 + $0x220] sm:$0xff]
  %v1183 = vld [vmem:[#allocation2 + $0x228] sm:$0xff]
  %v1184 = vld [vmem:[#allocation2 + $0x230] sm:$0xff]
  %v1185 = vld [vmem:[#allocation2 + $0x238] sm:$0xff]
  %v1186 = vld [vmem:[#allocation2 + $0x240] sm:$0xff]
  %v1187 = vld [vmem:[#allocation2 + $0x248] sm:$0xff]
  %v1188 = vld [vmem:[#allocation2 + $0x250] sm:$0xff]
  %v1189 = vld [vmem:[#allocation2 + $0x258] sm:$0xff]
  %v1190 = vld [vmem:[#allocation2 + $0x260] sm:$0xff]
  %v1191 = vld [vmem:[#allocation2 + $0x268] sm:$0xff]
  %v1193 = vsel %vm427, %v1113, 0
  %1195 = vmatprep.subr.mxu0 %v1115
  %1196 = vmatpush1.msra.mxu0 %v1114
  %1197 = vmatprep.subr.mxu0 %v1121
  %1198 = vmatpush1.msra.mxu0 %v1120
  %1199 = vmatprep.subr.mxu0 %v1127
  %1200 = vmatpush1.msra.mxu0 %v1126
  %1201 = vmatprep.subr.mxu0 %v1133
  %1202 = vmatpush1.msra.mxu0 %v1132
  %1203 = vmatprep.subr.mxu0 %v1139
  %1204 = vmatpush1.msra.mxu0 %v1138
  %1205 = vmatprep.subr.mxu0 %v1145
  %1206 = vmatpush1.msra.mxu0 %v1144
  %1207 = vmatprep.subr.mxu0 %v1151
  %1208 = vmatpush1.msra.mxu0 %v1150
  %1209 = vmatprep.subr.mxu0 %v1157
  %1210 = vmatpush1.msra.mxu0 %v1156
  %1211 = vmatprep.subr.mxu0 %v1163
  %1212 = vmatpush1.msra.mxu0 %v1162
  %1213 = vmatprep.subr.mxu0 %v1169
  %1214 = vmatpush1.msra.mxu0 %v1168
  %1215 = vmatprep.subr.mxu0 %v1175
  %1216 = vmatpush1.msra.mxu0 %v1174
  %1217 = vmatprep.subr.mxu0 %v1181
  %1218 = vmatpush1.msra.mxu0 %v1180
  %1219 = vmatprep.subr.mxu0 %v1187
  %1220 = vmatpush1.msra.mxu0 %v1186
  %1221 = vmatprep.subr.mxu0 0.0
  %1222 = vmatpush1.msra.mxu0 0.0
  %1223 = vmatprep.subr.mxu0 0.0
  %1224 = vmatpush1.msra.mxu0 0.0
  %1225 = vmatprep.subr.mxu0 0.0
  %1226 = vmatpush1.msra.mxu0 0.0
  %1227 = vmatprep.subr.mxu0 0.0
  %1228 = vmatpush1.msra.mxu0 0.0
  %1229 = vmatprep.subr.mxu0 0.0
  %1230 = vmatpush1.msra.mxu0 0.0
  %1231 = vmatprep.subr.mxu0 0.0
  %1232 = vmatpush1.msra.mxu0 0.0
  %1233 = vmatprep.subr.mxu0 0.0
  %1234 = vmatpush1.msra.mxu0 0.0
  %1235 = vmatprep.subr.mxu0 0.0
  %1236 = vmatpush1.msra.mxu0 0.0
  %1237 = vmatprep.subr.mxu0 0.0
  %1238 = vmatpush1.msra.mxu0 0.0
  %1239 = vmatprep.subr.mxu0 0.0
  %1240 = vmatpush1.msra.mxu0 0.0
  %1241 = vmatprep.subr.mxu0 0.0
  %1242 = vmatpush1.msra.mxu0 0.0
  %1243 = vmatprep.subr.mxu0 0.0
  %1244 = vmatpush1.msra.mxu0 0.0
  %1245 = vmatprep.subr.mxu0 0.0
  %1246 = vmatpush1.msra.mxu0 0.0
  %1247 = vmatprep.subr.mxu0 0.0
  %1248 = vmatpush1.msra.mxu0 0.0
  %1249 = vmatprep.subr.mxu0 0.0
  %1250 = vmatpush1.msra.mxu0 0.0
  %1251 = vmatprep.subr.mxu0 0.0
  %1252 = vmatpush1.msra.mxu0 0.0
  %1253 = vmatprep.subr.mxu0 0.0
  %1254 = vmatpush1.msra.mxu0 0.0
  %1255 = vmatprep.subr.mxu0 0.0
  %1256 = vmatpush1.msra.mxu0 0.0
  %1257 = vmatprep.subr.mxu0 0.0
  %1258 = vmatpush1.msra.mxu0 0.0
  %1259 = vmatprep.mubr.f32.mxu0 0.0
  %1260 = vmatmul.mubr.f32.gmra.mrb[0].mxu0 %v1193
  %v1261 = vpop.f32.mrb[0].mxu0
  %v1262 = vadd.f32 0.0, %v1261
  %v1263 = vpop.f32.mrb[0].mxu0
  %v1264 = vadd.f32 0.0, %v1263
  %1265 = vdwg.mxu0
  %1266 = vmatprep.subr.mxu0 %v1117
  %1267 = vmatpush1.msra.mxu0 %v1116
  %1268 = vmatprep.subr.mxu0 %v1123
  %1269 = vmatpush1.msra.mxu0 %v1122
  %1270 = vmatprep.subr.mxu0 %v1129
  %1271 = vmatpush1.msra.mxu0 %v1128
  %1272 = vmatprep.subr.mxu0 %v1135
  %1273 = vmatpush1.msra.mxu0 %v1134
  %1274 = vmatprep.subr.mxu0 %v1141
  %1275 = vmatpush1.msra.mxu0 %v1140
  %1276 = vmatprep.subr.mxu0 %v1147
  %1277 = vmatpush1.msra.mxu0 %v1146
  %1278 = vmatprep.subr.mxu0 %v1153
  %1279 = vmatpush1.msra.mxu0 %v1152
  %1280 = vmatprep.subr.mxu0 %v1159
  %1281 = vmatpush1.msra.mxu0 %v1158
  %1282 = vmatprep.subr.mxu0 %v1165
  %1283 = vmatpush1.msra.mxu0 %v1164
  %1284 = vmatprep.subr.mxu0 %v1171
  %1285 = vmatpush1.msra.mxu0 %v1170
  %1286 = vmatprep.subr.mxu0 %v1177
  %1287 = vmatpush1.msra.mxu0 %v1176
  %1288 = vmatprep.subr.mxu0 %v1183
  %1289 = vmatpush1.msra.mxu0 %v1182
  %1290 = vmatprep.subr.mxu0 %v1189
  %1291 = vmatpush1.msra.mxu0 %v1188
  %1292 = vmatprep.subr.mxu0 0.0
  %1293 = vmatpush1.msra.mxu0 0.0
  %1294 = vmatprep.subr.mxu0 0.0
  %1295 = vmatpush1.msra.mxu0 0.0
  %1296 = vmatprep.subr.mxu0 0.0
  %1297 = vmatpush1.msra.mxu0 0.0
  %1298 = vmatprep.subr.mxu0 0.0
  %1299 = vmatpush1.msra.mxu0 0.0
  %1300 = vmatprep.subr.mxu0 0.0
  %1301 = vmatpush1.msra.mxu0 0.0
  %1302 = vmatprep.subr.mxu0 0.0
  %1303 = vmatpush1.msra.mxu0 0.0
  %1304 = vmatprep.subr.mxu0 0.0
  %1305 = vmatpush1.msra.mxu0 0.0
  %1306 = vmatprep.subr.mxu0 0.0
  %1307 = vmatpush1.msra.mxu0 0.0
  %1308 = vmatprep.subr.mxu0 0.0
  %1309 = vmatpush1.msra.mxu0 0.0
  %1310 = vmatprep.subr.mxu0 0.0
  %1311 = vmatpush1.msra.mxu0 0.0
  %1312 = vmatprep.subr.mxu0 0.0
  %1313 = vmatpush1.msra.mxu0 0.0
  %1314 = vmatprep.subr.mxu0 0.0
  %1315 = vmatpush1.msra.mxu0 0.0
  %1316 = vmatprep.subr.mxu0 0.0
  %1317 = vmatpush1.msra.mxu0 0.0
  %1318 = vmatprep.subr.mxu0 0.0
  %1319 = vmatpush1.msra.mxu0 0.0
  %1320 = vmatprep.subr.mxu0 0.0
  %1321 = vmatpush1.msra.mxu0 0.0
  %1322 = vmatprep.subr.mxu0 0.0
  %1323 = vmatpush1.msra.mxu0 0.0
  %1324 = vmatprep.subr.mxu0 0.0
  %1325 = vmatpush1.msra.mxu0 0.0
  %1326 = vmatprep.subr.mxu0 0.0
  %1327 = vmatpush1.msra.mxu0 0.0
  %1328 = vmatprep.subr.mxu0 0.0
  %1329 = vmatpush1.msra.mxu0 0.0
  %1330 = vmatprep.mubr.f32.mxu0 0.0
  %1331 = vmatmul.mubr.f32.gmra.mrb[0].mxu0 %v1193
  %v1332 = vpop.f32.mrb[0].mxu0
  %v1333 = vadd.f32 0.0, %v1332
  %v1334 = vpop.f32.mrb[0].mxu0
  %v1335 = vadd.f32 0.0, %v1334
  %1336 = vdwg.mxu0
  %1337 = vmatprep.subr.mxu0 %v1119
  %1338 = vmatpush1.msra.mxu0 %v1118
  %1339 = vmatprep.subr.mxu0 %v1125
  %1340 = vmatpush1.msra.mxu0 %v1124
  %1341 = vmatprep.subr.mxu0 %v1131
  %1342 = vmatpush1.msra.mxu0 %v1130
  %1343 = vmatprep.subr.mxu0 %v1137
  %1344 = vmatpush1.msra.mxu0 %v1136
  %1345 = vmatprep.subr.mxu0 %v1143
  %1346 = vmatpush1.msra.mxu0 %v1142
  %1347 = vmatprep.subr.mxu0 %v1149
  %1348 = vmatpush1.msra.mxu0 %v1148
  %1349 = vmatprep.subr.mxu0 %v1155
  %1350 = vmatpush1.msra.mxu0 %v1154
  %1351 = vmatprep.subr.mxu0 %v1161
  %1352 = vmatpush1.msra.mxu0 %v1160
  %1353 = vmatprep.subr.mxu0 %v1167
  %1354 = vmatpush1.msra.mxu0 %v1166
  %1355 = vmatprep.subr.mxu0 %v1173
  %1356 = vmatpush1.msra.mxu0 %v1172
  %1357 = vmatprep.subr.mxu0 %v1179
  %1358 = vmatpush1.msra.mxu0 %v1178
  %1359 = vmatprep.subr.mxu0 %v1185
  %1360 = vmatpush1.msra.mxu0 %v1184
  %1361 = vmatprep.subr.mxu0 %v1191
  %1362 = vmatpush1.msra.mxu0 %v1190
  %1363 = vmatprep.subr.mxu0 0.0
  %1364 = vmatpush1.msra.mxu0 0.0
  %1365 = vmatprep.subr.mxu0 0.0
  %1366 = vmatpush1.msra.mxu0 0.0
  %1367 = vmatprep.subr.mxu0 0.0
  %1368 = vmatpush1.msra.mxu0 0.0
  %1369 = vmatprep.subr.mxu0 0.0
  %1370 = vmatpush1.msra.mxu0 0.0
  %1371 = vmatprep.subr.mxu0 0.0
  %1372 = vmatpush1.msra.mxu0 0.0
  %1373 = vmatprep.subr.mxu0 0.0
  %1374 = vmatpush1.msra.mxu0 0.0
  %1375 = vmatprep.subr.mxu0 0.0
  %1376 = vmatpush1.msra.mxu0 0.0
  %1377 = vmatprep.subr.mxu0 0.0
  %1378 = vmatpush1.msra.mxu0 0.0
  %1379 = vmatprep.subr.mxu0 0.0
  %1380 = vmatpush1.msra.mxu0 0.0
  %1381 = vmatprep.subr.mxu0 0.0
  %1382 = vmatpush1.msra.mxu0 0.0
  %1383 = vmatprep.subr.mxu0 0.0
  %1384 = vmatpush1.msra.mxu0 0.0
  %1385 = vmatprep.subr.mxu0 0.0
  %1386 = vmatpush1.msra.mxu0 0.0
  %1387 = vmatprep.subr.mxu0 0.0
  %1388 = vmatpush1.msra.mxu0 0.0
  %1389 = vmatprep.subr.mxu0 0.0
  %1390 = vmatpush1.msra.mxu0 0.0
  %1391 = vmatprep.subr.mxu0 0.0
  %1392 = vmatpush1.msra.mxu0 0.0
  %1393 = vmatprep.subr.mxu0 0.0
  %1394 = vmatpush1.msra.mxu0 0.0
  %1395 = vmatprep.subr.mxu0 0.0
  %1396 = vmatpush1.msra.mxu0 0.0
  %1397 = vmatprep.subr.mxu0 0.0
  %1398 = vmatpush1.msra.mxu0 0.0
  %1399 = vmatprep.subr.mxu0 0.0
  %1400 = vmatpush1.msra.mxu0 0.0
  %1401 = vmatprep.mubr.f32.mxu0 0.0
  %1402 = vmatmul.mubr.f32.gmra.mrb[0].mxu0 %v1193
  %v1403 = vpop.f32.mrb[0].mxu0
  %v1404 = vadd.f32 0.0, %v1403
  %v1405 = vpop.f32.mrb[0].mxu0
  %v1406 = vadd.f32 0.0, %v1405
  %1407 = vdwg.mxu0
  %vm1408 = vcmp.gt.f32.partialorder %v1262, 0.0
  %vm1409 = vcmp.gt.f32.partialorder %v1264, 0.0
  %vm1410 = vcmp.gt.f32.partialorder %v1333, 0.0
  %vm1411 = vcmp.gt.f32.partialorder %v1335, 0.0
  %vm1412 = vcmp.gt.f32.partialorder %v1404, 0.0
  %vm1413 = vcmp.gt.f32.partialorder %v1406, 0.0
  %v1414 = vmin.f32 %v1262, 0.0
  %v1415 = vmin.f32 %v1264, 0.0
  %v1416 = vmin.f32 %v1333, 0.0
  %v1417 = vmin.f32 %v1335, 0.0
  %v1418 = vmin.f32 %v1404, 0.0
  %v1419 = vmin.f32 %v1406, 0.0
  %v1420 = vmul.f32 %v1414, 1.442695
  %v1421 = vpow.pop %v1420
  %v1422 = vmul.f32 %v1415, 1.442695
  %v1423 = vpow.pop %v1422
  %v1424 = vmul.f32 %v1416, 1.442695
  %v1425 = vpow.pop %v1424
  %v1426 = vmul.f32 %v1417, 1.442695
  %v1427 = vpow.pop %v1426
  %v1428 = vmul.f32 %v1418, 1.442695
  %v1429 = vpow.pop %v1428
  %v1430 = vmul.f32 %v1419, 1.442695
  %v1431 = vpow.pop %v1430
  %v1432 = vsub.f32 %v1421, 1.0
  %v1433 = vsub.f32 %v1423, 1.0
  %v1434 = vsub.f32 %v1425, 1.0
  %v1435 = vsub.f32 %v1427, 1.0
  %v1436 = vsub.f32 %v1429, 1.0
  %v1437 = vsub.f32 %v1431, 1.0
  %v1438 = vsel %vm1408, %v1262, %v1432
  %v1439 = vsel %vm1409, %v1264, %v1433
  %v1440 = vsel %vm1410, %v1333, %v1434
  %v1441 = vsel %vm1411, %v1335, %v1435
  %v1442 = vsel %vm1412, %v1404, %v1436
  %v1443 = vsel %vm1413, %v1406, %v1437
  %v1444 = vld [vmem:[%s2] sm:$0xff]
  %v1445 = vld [vmem:[%s2 + $0x8] sm:$0xff]
  %v1446 = vld [vmem:[%s2 + $0x10] sm:$0xff]
  %v1450 = vcombine.high %v1444, %v1444
  %v1451 = vcombine.high %v1445, %v1445
  %v1452 = vcombine.high %v1446, %v1446
  %v1456 = vmul.f32 %v1438, %v1444
  %v1457 = vmul.f32 %v1439, %v1450
  %v1458 = vmul.f32 %v1440, %v1445
  %v1459 = vmul.f32 %v1441, %v1451
  %v1460 = vmul.f32 %v1442, %v1446
  %v1461 = vmul.f32 %v1443, %v1452
  %1462 = vst [vmem:[#allocation3] sm:$0xff] 0.0
  %1463 = vst [vmem:[#allocation3 + $0x8] sm:$0xff] 0.0
  %1464 = vst [vmem:[#allocation3 + $0x10] sm:$0xff] 0.0
  %1465 = vst [vmem:[#allocation3 + $0x18] sm:$0xf] 0.0
  %v1472 = vcombine.low %v1456, %v1457
  %v1473 = vcombine.low %v1458, %v1459
  %v1474 = vcombine.low %v1460, %v1461
  %1475 = vrot.lane.b32.xlu0 %v1472, 42
  %v1476 = vpop.permute.xlu0 %1475
  %1477 = vrot.lane.b32.xlu0 %v1473, 42
  %v1478 = vpop.permute.xlu0 %1477
  %1479 = vrot.lane.b32.xlu0 %v1474, 42
  %v1480 = vpop.permute.xlu0 %1479
  %v1481 = vrot.slane %v1476, 4
  %v1482 = vrot.slane %v1478, 4
  %v1483 = vrot.slane %v1480, 4
  %vm1484 = vcmask 343040
  %v1485 = vsel %vm1484, %v1481, %v1476
  %vm1486 = vcmask 1043456
  %v1487 = vsel %vm1486, %v1481, %v1482
  %v1488 = vsel %vm1484, %v1487, %v1478
  %v1489 = vsel %vm1486, %v1482, %v1483
  %v1490 = vsel %vm1484, %v1489, %v1480
  %vm1495 = vcmask 1043792
  %vm1496 = vcmask 1047556
  %vm1497 = vmor %vm1496, %vm1495
  %1498 = vst.msk [vmem:[#allocation3] sm:$0xff] %vm1497, %v1485
  %1499 = vst [vmem:[#allocation3 + $0x8] sm:$0xff] %v1488
  %1500 = vst [vmem:[#allocation3 + $0x10] sm:$0xff] %v1490
  %vm1501 = vcmask 338944
  %1502 = vst.msk [vmem:[#allocation3 + $0x18] sm:$0xf] %vm1501, %v1483
  %v1503 = vld [vmem:[#allocation3] sm:$0xff]
  %v1504 = vld [vmem:[#allocation3 + $0x8] sm:$0xff]
  %v1505 = vld [vmem:[#allocation3 + $0x10] sm:$0xff]
  %v1509 = vcombine.high %v1503, %v1503
  %v1510 = vcombine.high %v1504, %v1504
  %v1511 = vcombine.high %v1505, %v1505
  %1515 = vst [vmem:[#allocation2] sm:$0xf] %v1503
  %1516 = vst [vmem:[#allocation2 + $0x8] sm:$0xf] %v1509
  %1517 = vst [vmem:[#allocation2 + $0x10] sm:$0xf] %v1504
  %1518 = vst [vmem:[#allocation2 + $0x18] sm:$0xf] %v1510
  %1519 = vst [vmem:[#allocation2 + $0x20] sm:$0xf] %v1505
  %1520 = vst [vmem:[#allocation2 + $0x28] sm:$0xf] %v1511
  %v1521 = vld [vmem:[#allocation3] sm:$0xff]
  %v1522 = vld [vmem:[#allocation3 + $0x8] sm:$0xff]
  %v1523 = vld [vmem:[#allocation3 + $0x10] sm:$0xff]
  %v1524 = vld [vmem:[#allocation3 + $0x18] sm:$0xf]
  %v1529 = vcombine.low %v1521, %v1521
  %v1530 = vcombine.low %v1522, %v1522
  %v1531 = vcombine.low %v1523, %v1523
  %v1532 = vcombine.low %v1524, %v1524
  %1533 = vrot.lane.b32.xlu0 %v1529, 127
  %v1534 = vpop.permute.xlu0 %1533
  %1535 = vrot.lane.b32.xlu0 %v1521, 127
  %v1536 = vpop.permute.xlu0 %1535
  %1537 = vrot.lane.b32.xlu0 %v1530, 127
  %v1538 = vpop.permute.xlu0 %1537
  %1539 = vrot.lane.b32.xlu0 %v1522, 127
  %v1540 = vpop.permute.xlu0 %1539
  %1541 = vrot.lane.b32.xlu0 %v1531, 127
  %v1542 = vpop.permute.xlu0 %1541
  %1543 = vrot.lane.b32.xlu0 %v1523, 127
  %v1544 = vpop.permute.xlu0 %1543
  %1545 = vrot.lane.b32.xlu0 %v1532, 127
  %v1546 = vpop.permute.xlu0 %1545
  %v1547 = vsel %vm71, %v1534, %v1536
  %v1548 = vsel %vm71, %v1536, %v1538
  %v1549 = vsel %vm71, %v1538, %v1540
  %v1550 = vsel %vm71, %v1540, %v1542
  %v1551 = vsel %vm71, %v1542, %v1544
  %v1552 = vsel %vm71, %v1544, %v1546
  %1559 = vst [vmem:[#allocation2] sm:$0xf0] %v1547
  %1560 = vst [vmem:[#allocation2 + $0x8] sm:$0xf0] %v1548
  %1561 = vst [vmem:[#allocation2 + $0x10] sm:$0xf0] %v1549
  %1562 = vst [vmem:[#allocation2 + $0x18] sm:$0xf0] %v1550
  %1563 = vst [vmem:[#allocation2 + $0x20] sm:$0xf0] %v1551
  %1564 = vst [vmem:[#allocation2 + $0x28] sm:$0xf0] %v1552
  %v1565 = vld [vmem:[#allocation3] sm:$0xff]
  %v1566 = vld [vmem:[#allocation3 + $0x8] sm:$0xff]
  %v1567 = vld [vmem:[#allocation3 + $0x10] sm:$0xff]
  %v1568 = vld [vmem:[#allocation3 + $0x18] sm:$0xf]
  %v1573 = vcombine.high %v1565, %v1565
  %v1574 = vcombine.high %v1566, %v1566
  %v1575 = vcombine.high %v1567, %v1567
  %1576 = vrot.lane.b32.xlu0 %v1565, 126
  %v1577 = vpop.permute.xlu0 %1576
  %1578 = vrot.lane.b32.xlu0 %v1573, 126
  %v1579 = vpop.permute.xlu0 %1578
  %1580 = vrot.lane.b32.xlu0 %v1566, 126
  %v1581 = vpop.permute.xlu0 %1580
  %1582 = vrot.lane.b32.xlu0 %v1574, 126
  %v1583 = vpop.permute.xlu0 %1582
  %1584 = vrot.lane.b32.xlu0 %v1567, 126
  %v1585 = vpop.permute.xlu0 %1584
  %1586 = vrot.lane.b32.xlu0 %v1575, 126
  %v1587 = vpop.permute.xlu0 %1586
  %1588 = vrot.lane.b32.xlu0 %v1568, 126
  %v1589 = vpop.permute.xlu0 %1588
  %v1590 = vsel %vm115, %v1577, %v1579
  %v1591 = vsel %vm115, %v1579, %v1581
  %v1592 = vsel %vm115, %v1581, %v1583
  %v1593 = vsel %vm115, %v1583, %v1585
  %v1594 = vsel %vm115, %v1585, %v1587
  %v1595 = vsel %vm115, %v1587, %v1589
  %1602 = vst [vmem:[#allocation2 + $0x30] sm:$0xf] %v1590
  %1603 = vst [vmem:[#allocation2 + $0x38] sm:$0xf] %v1591
  %1604 = vst [vmem:[#allocation2 + $0x40] sm:$0xf] %v1592
  %1605 = vst [vmem:[#allocation2 + $0x48] sm:$0xf] %v1593
  %1606 = vst [vmem:[#allocation2 + $0x50] sm:$0xf] %v1594
  %1607 = vst [vmem:[#allocation2 + $0x58] sm:$0xf] %v1595
  %v1608 = vld [vmem:[#allocation3] sm:$0xff]
  %v1609 = vld [vmem:[#allocation3 + $0x8] sm:$0xff]
  %v1610 = vld [vmem:[#allocation3 + $0x10] sm:$0xff]
  %v1611 = vld [vmem:[#allocation3 + $0x18] sm:$0xf]
  %v1616 = vcombine.low %v1608, %v1608
  %v1617 = vcombine.low %v1609, %v1609
  %v1618 = vcombine.low %v1610, %v1610
  %v1619 = vcombine.low %v1611, %v1611
  %1620 = vrot.lane.b32.xlu0 %v1616, 125
  %v1621 = vpop.permute.xlu0 %1620
  %1622 = vrot.lane.b32.xlu0 %v1608, 125
  %v1623 = vpop.permute.xlu0 %1622
  %1624 = vrot.lane.b32.xlu0 %v1617, 125
  %v1625 = vpop.permute.xlu0 %1624
  %1626 = vrot.lane.b32.xlu0 %v1609, 125
  %v1627 = vpop.permute.xlu0 %1626
  %1628 = vrot.lane.b32.xlu0 %v1618, 125
  %v1629 = vpop.permute.xlu0 %1628
  %1630 = vrot.lane.b32.xlu0 %v1610, 125
  %v1631 = vpop.permute.xlu0 %1630
  %1632 = vrot.lane.b32.xlu0 %v1619, 125
  %v1633 = vpop.permute.xlu0 %1632
  %v1634 = vsel %vm160, %v1621, %v1623
  %v1635 = vsel %vm160, %v1623, %v1625
  %v1636 = vsel %vm160, %v1625, %v1627
  %v1637 = vsel %vm160, %v1627, %v1629
  %v1638 = vsel %vm160, %v1629, %v1631
  %v1639 = vsel %vm160, %v1631, %v1633
  %1646 = vst [vmem:[#allocation2 + $0x30] sm:$0xf0] %v1634
  %1647 = vst [vmem:[#allocation2 + $0x38] sm:$0xf0] %v1635
  %1648 = vst [vmem:[#allocation2 + $0x40] sm:$0xf0] %v1636
  %1649 = vst [vmem:[#allocation2 + $0x48] sm:$0xf0] %v1637
  %1650 = vst [vmem:[#allocation2 + $0x50] sm:$0xf0] %v1638
  %1651 = vst [vmem:[#allocation2 + $0x58] sm:$0xf0] %v1639
  %v1652 = vld [vmem:[#allocation3] sm:$0xff]
  %v1653 = vld [vmem:[#allocation3 + $0x8] sm:$0xff]
  %v1654 = vld [vmem:[#allocation3 + $0x10] sm:$0xff]
  %v1655 = vld [vmem:[#allocation3 + $0x18] sm:$0xf]
  %v1660 = vcombine.high %v1652, %v1652
  %v1661 = vcombine.high %v1653, %v1653
  %v1662 = vcombine.high %v1654, %v1654
  %1663 = vrot.lane.b32.xlu0 %v1652, 124
  %v1664 = vpop.permute.xlu0 %1663
  %1665 = vrot.lane.b32.xlu0 %v1660, 124
  %v1666 = vpop.permute.xlu0 %1665
  %1667 = vrot.lane.b32.xlu0 %v1653, 124
  %v1668 = vpop.permute.xlu0 %1667
  %1669 = vrot.lane.b32.xlu0 %v1661, 124
  %v1670 = vpop.permute.xlu0 %1669
  %1671 = vrot.lane.b32.xlu0 %v1654, 124
  %v1672 = vpop.permute.xlu0 %1671
  %1673 = vrot.lane.b32.xlu0 %v1662, 124
  %v1674 = vpop.permute.xlu0 %1673
  %1675 = vrot.lane.b32.xlu0 %v1655, 124
  %v1676 = vpop.permute.xlu0 %1675
  %v1677 = vsel %vm204, %v1664, %v1666
  %v1678 = vsel %vm204, %v1666, %v1668
  %v1679 = vsel %vm204, %v1668, %v1670
  %v1680 = vsel %vm204, %v1670, %v1672
  %v1681 = vsel %vm204, %v1672, %v1674
  %v1682 = vsel %vm204, %v1674, %v1676
  %1689 = vst [vmem:[#allocation2 + $0x60] sm:$0xf] %v1677
  %1690 = vst [vmem:[#allocation2 + $0x68] sm:$0xf] %v1678
  %1691 = vst [vmem:[#allocation2 + $0x70] sm:$0xf] %v1679
  %1692 = vst [vmem:[#allocation2 + $0x78] sm:$0xf] %v1680
  %1693 = vst [vmem:[#allocation2 + $0x80] sm:$0xf] %v1681
  %1694 = vst [vmem:[#allocation2 + $0x88] sm:$0xf] %v1682
  %v1695 = vld [vmem:[#allocation3] sm:$0xff]
  %v1696 = vld [vmem:[#allocation3 + $0x8] sm:$0xff]
  %v1697 = vld [vmem:[#allocation3 + $0x10] sm:$0xff]
  %v1698 = vld [vmem:[#allocation3 + $0x18] sm:$0xf]
  %v1703 = vcombine.low %v1695, %v1695
  %v1704 = vcombine.low %v1696, %v1696
  %v1705 = vcombine.low %v1697, %v1697
  %v1706 = vcombine.low %v1698, %v1698
  %1707 = vrot.lane.b32.xlu0 %v1703, 108
  %v1708 = vpop.permute.xlu0 %1707
  %1709 = vrot.lane.b32.xlu0 %v1695, 108
  %v1710 = vpop.permute.xlu0 %1709
  %1711 = vrot.lane.b32.xlu0 %v1704, 108
  %v1712 = vpop.permute.xlu0 %1711
  %1713 = vrot.lane.b32.xlu0 %v1696, 108
  %v1714 = vpop.permute.xlu0 %1713
  %1715 = vrot.lane.b32.xlu0 %v1705, 108
  %v1716 = vpop.permute.xlu0 %1715
  %1717 = vrot.lane.b32.xlu0 %v1697, 108
  %v1718 = vpop.permute.xlu0 %1717
  %1719 = vrot.lane.b32.xlu0 %v1706, 108
  %v1720 = vpop.permute.xlu0 %1719
  %v1721 = vsel %vm249, %v1708, %v1710
  %v1722 = vsel %vm249, %v1710, %v1712
  %v1723 = vsel %vm249, %v1712, %v1714
  %v1724 = vsel %vm249, %v1714, %v1716
  %v1725 = vsel %vm249, %v1716, %v1718
  %v1726 = vsel %vm249, %v1718, %v1720
  %1733 = vst [vmem:[#allocation2 + $0x60] sm:$0xf0] %v1721
  %1734 = vst [vmem:[#allocation2 + $0x68] sm:$0xf0] %v1722
  %1735 = vst [vmem:[#allocation2 + $0x70] sm:$0xf0] %v1723
  %1736 = vst [vmem:[#allocation2 + $0x78] sm:$0xf0] %v1724
  %1737 = vst [vmem:[#allocation2 + $0x80] sm:$0xf0] %v1725
  %1738 = vst [vmem:[#allocation2 + $0x88] sm:$0xf0] %v1726
  %v1739 = vld [vmem:[#allocation3] sm:$0xff]
  %v1740 = vld [vmem:[#allocation3 + $0x8] sm:$0xff]
  %v1741 = vld [vmem:[#allocation3 + $0x10] sm:$0xff]
  %v1742 = vld [vmem:[#allocation3 + $0x18] sm:$0xf]
  %v1747 = vcombine.high %v1739, %v1739
  %v1748 = vcombine.high %v1740, %v1740
  %v1749 = vcombine.high %v1741, %v1741
  %1750 = vrot.lane.b32.xlu0 %v1739, 107
  %v1751 = vpop.permute.xlu0 %1750
  %1752 = vrot.lane.b32.xlu0 %v1747, 107
  %v1753 = vpop.permute.xlu0 %1752
  %1754 = vrot.lane.b32.xlu0 %v1740, 107
  %v1755 = vpop.permute.xlu0 %1754
  %1756 = vrot.lane.b32.xlu0 %v1748, 107
  %v1757 = vpop.permute.xlu0 %1756
  %1758 = vrot.lane.b32.xlu0 %v1741, 107
  %v1759 = vpop.permute.xlu0 %1758
  %1760 = vrot.lane.b32.xlu0 %v1749, 107
  %v1761 = vpop.permute.xlu0 %1760
  %1762 = vrot.lane.b32.xlu0 %v1742, 107
  %v1763 = vpop.permute.xlu0 %1762
  %v1764 = vsel %vm293, %v1751, %v1753
  %v1765 = vsel %vm293, %v1753, %v1755
  %v1766 = vsel %vm293, %v1755, %v1757
  %v1767 = vsel %vm293, %v1757, %v1759
  %v1768 = vsel %vm293, %v1759, %v1761
  %v1769 = vsel %vm293, %v1761, %v1763
  %1776 = vst [vmem:[#allocation2 + $0x90] sm:$0xf] %v1764
  %1777 = vst [vmem:[#allocation2 + $0x98] sm:$0xf] %v1765
  %1778 = vst [vmem:[#allocation2 + $0xa0] sm:$0xf] %v1766
  %1779 = vst [vmem:[#allocation2 + $0xa8] sm:$0xf] %v1767
  %1780 = vst [vmem:[#allocation2 + $0xb0] sm:$0xf] %v1768
  %1781 = vst [vmem:[#allocation2 + $0xb8] sm:$0xf] %v1769
  %v1782 = vld [vmem:[#allocation3] sm:$0xff]
  %v1783 = vld [vmem:[#allocation3 + $0x8] sm:$0xff]
  %v1784 = vld [vmem:[#allocation3 + $0x10] sm:$0xff]
  %v1785 = vld [vmem:[#allocation3 + $0x18] sm:$0xf]
  %v1790 = vcombine.low %v1782, %v1782
  %v1791 = vcombine.low %v1783, %v1783
  %v1792 = vcombine.low %v1784, %v1784
  %v1793 = vcombine.low %v1785, %v1785
  %1794 = vrot.lane.b32.xlu0 %v1790, 106
  %v1795 = vpop.permute.xlu0 %1794
  %1796 = vrot.lane.b32.xlu0 %v1782, 106
  %v1797 = vpop.permute.xlu0 %1796
  %1798 = vrot.lane.b32.xlu0 %v1791, 106
  %v1799 = vpop.permute.xlu0 %1798
  %1800 = vrot.lane.b32.xlu0 %v1783, 106
  %v1801 = vpop.permute.xlu0 %1800
  %1802 = vrot.lane.b32.xlu0 %v1792, 106
  %v1803 = vpop.permute.xlu0 %1802
  %1804 = vrot.lane.b32.xlu0 %v1784, 106
  %v1805 = vpop.permute.xlu0 %1804
  %1806 = vrot.lane.b32.xlu0 %v1793, 106
  %v1807 = vpop.permute.xlu0 %1806
  %v1808 = vsel %vm338, %v1795, %v1797
  %v1809 = vsel %vm338, %v1797, %v1799
  %v1810 = vsel %vm338, %v1799, %v1801
  %v1811 = vsel %vm338, %v1801, %v1803
  %v1812 = vsel %vm338, %v1803, %v1805
  %v1813 = vsel %vm338, %v1805, %v1807
  %1820 = vst [vmem:[#allocation2 + $0x90] sm:$0xf0] %v1808
  %1821 = vst [vmem:[#allocation2 + $0x98] sm:$0xf0] %v1809
  %1822 = vst [vmem:[#allocation2 + $0xa0] sm:$0xf0] %v1810
  %1823 = vst [vmem:[#allocation2 + $0xa8] sm:$0xf0] %v1811
  %1824 = vst [vmem:[#allocation2 + $0xb0] sm:$0xf0] %v1812
  %1825 = vst [vmem:[#allocation2 + $0xb8] sm:$0xf0] %v1813
  %v1826 = vld [vmem:[#allocation3] sm:$0xff]
  %v1827 = vld [vmem:[#allocation3 + $0x8] sm:$0xff]
  %v1828 = vld [vmem:[#allocation3 + $0x10] sm:$0xff]
  %v1829 = vld [vmem:[#allocation3 + $0x18] sm:$0xf]
  %v1834 = vcombine.high %v1826, %v1826
  %v1835 = vcombine.high %v1827, %v1827
  %v1836 = vcombine.high %v1828, %v1828
  %1837 = vrot.lane.b32.xlu0 %v1826, 105
  %v1838 = vpop.permute.xlu0 %1837
  %1839 = vrot.lane.b32.xlu0 %v1834, 105
  %v1840 = vpop.permute.xlu0 %1839
  %1841 = vrot.lane.b32.xlu0 %v1827, 105
  %v1842 = vpop.permute.xlu0 %1841
  %1843 = vrot.lane.b32.xlu0 %v1835, 105
  %v1844 = vpop.permute.xlu0 %1843
  %1845 = vrot.lane.b32.xlu0 %v1828, 105
  %v1846 = vpop.permute.xlu0 %1845
  %1847 = vrot.lane.b32.xlu0 %v1836, 105
  %v1848 = vpop.permute.xlu0 %1847
  %1849 = vrot.lane.b32.xlu0 %v1829, 105
  %v1850 = vpop.permute.xlu0 %1849
  %v1851 = vsel %vm382, %v1838, %v1840
  %v1852 = vsel %vm382, %v1840, %v1842
  %v1853 = vsel %vm382, %v1842, %v1844
  %v1854 = vsel %vm382, %v1844, %v1846
  %v1855 = vsel %vm382, %v1846, %v1848
  %v1856 = vsel %vm382, %v1848, %v1850
  %1863 = vst [vmem:[#allocation2 + $0xc0] sm:$0xf] %v1851
  %1864 = vst [vmem:[#allocation2 + $0xc8] sm:$0xf] %v1852
  %1865 = vst [vmem:[#allocation2 + $0xd0] sm:$0xf] %v1853
  %1866 = vst [vmem:[#allocation2 + $0xd8] sm:$0xf] %v1854
  %1867 = vst [vmem:[#allocation2 + $0xe0] sm:$0xf] %v1855
  %1868 = vst [vmem:[#allocation2 + $0xe8] sm:$0xf] %v1856
  %v1869 = vld [vmem:[#allocation3] sm:$0xff]
  %v1870 = vld [vmem:[#allocation3 + $0x8] sm:$0xff]
  %v1871 = vld [vmem:[#allocation3 + $0x10] sm:$0xff]
  %v1872 = vld [vmem:[#allocation3 + $0x18] sm:$0xf]
  %v1877 = vcombine.low %v1869, %v1869
  %v1878 = vcombine.low %v1870, %v1870
  %v1879 = vcombine.low %v1871, %v1871
  %v1880 = vcombine.low %v1872, %v1872
  %1881 = vrot.lane.b32.xlu0 %v1877, 104
  %v1882 = vpop.permute.xlu0 %1881
  %1883 = vrot.lane.b32.xlu0 %v1869, 104
  %v1884 = vpop.permute.xlu0 %1883
  %1885 = vrot.lane.b32.xlu0 %v1878, 104
  %v1886 = vpop.permute.xlu0 %1885
  %1887 = vrot.lane.b32.xlu0 %v1870, 104
  %v1888 = vpop.permute.xlu0 %1887
  %1889 = vrot.lane.b32.xlu0 %v1879, 104
  %v1890 = vpop.permute.xlu0 %1889
  %1891 = vrot.lane.b32.xlu0 %v1871, 104
  %v1892 = vpop.permute.xlu0 %1891
  %1893 = vrot.lane.b32.xlu0 %v1880, 104
  %v1894 = vpop.permute.xlu0 %1893
  %v1895 = vsel %vm427, %v1882, %v1884
  %v1896 = vsel %vm427, %v1884, %v1886
  %v1897 = vsel %vm427, %v1886, %v1888
  %v1898 = vsel %vm427, %v1888, %v1890
  %v1899 = vsel %vm427, %v1890, %v1892
  %v1900 = vsel %vm427, %v1892, %v1894
  %1907 = vst [vmem:[#allocation2 + $0xc0] sm:$0xf0] %v1895
  %1908 = vst [vmem:[#allocation2 + $0xc8] sm:$0xf0] %v1896
  %1909 = vst [vmem:[#allocation2 + $0xd0] sm:$0xf0] %v1897
  %1910 = vst [vmem:[#allocation2 + $0xd8] sm:$0xf0] %v1898
  %1911 = vst [vmem:[#allocation2 + $0xe0] sm:$0xf0] %v1899
  %1912 = vst [vmem:[#allocation2 + $0xe8] sm:$0xf0] %v1900
  %v1913 = vld [vmem:[#allocation3] sm:$0xff]
  %v1914 = vld [vmem:[#allocation3 + $0x8] sm:$0xff]
  %v1915 = vld [vmem:[#allocation3 + $0x10] sm:$0xff]
  %v1916 = vld [vmem:[#allocation3 + $0x18] sm:$0xf]
  %v1921 = vcombine.high %v1913, %v1913
  %v1922 = vcombine.high %v1914, %v1914
  %v1923 = vcombine.high %v1915, %v1915
  %1924 = vrot.lane.b32.xlu0 %v1913, 88
  %v1925 = vpop.permute.xlu0 %1924
  %1926 = vrot.lane.b32.xlu0 %v1921, 88
  %v1927 = vpop.permute.xlu0 %1926
  %1928 = vrot.lane.b32.xlu0 %v1914, 88
  %v1929 = vpop.permute.xlu0 %1928
  %1930 = vrot.lane.b32.xlu0 %v1922, 88
  %v1931 = vpop.permute.xlu0 %1930
  %1932 = vrot.lane.b32.xlu0 %v1915, 88
  %v1933 = vpop.permute.xlu0 %1932
  %1934 = vrot.lane.b32.xlu0 %v1923, 88
  %v1935 = vpop.permute.xlu0 %1934
  %1936 = vrot.lane.b32.xlu0 %v1916, 88
  %v1937 = vpop.permute.xlu0 %1936
  %v1938 = vsel %vm471, %v1925, %v1927
  %v1939 = vsel %vm471, %v1927, %v1929
  %v1940 = vsel %vm471, %v1929, %v1931
  %v1941 = vsel %vm471, %v1931, %v1933
  %v1942 = vsel %vm471, %v1933, %v1935
  %v1943 = vsel %vm471, %v1935, %v1937
  %1950 = vst [vmem:[#allocation2 + $0xf0] sm:$0xf] %v1938
  %1951 = vst [vmem:[#allocation2 + $0xf8] sm:$0xf] %v1939
  %1952 = vst [vmem:[#allocation2 + $0x100] sm:$0xf] %v1940
  %1953 = vst [vmem:[#allocation2 + $0x108] sm:$0xf] %v1941
  %1954 = vst [vmem:[#allocation2 + $0x110] sm:$0xf] %v1942
  %1955 = vst [vmem:[#allocation2 + $0x118] sm:$0xf] %v1943
  %v1956 = vld [vmem:[#allocation3] sm:$0xff]
  %v1957 = vld [vmem:[#allocation3 + $0x8] sm:$0xff]
  %v1958 = vld [vmem:[#allocation3 + $0x10] sm:$0xff]
  %v1959 = vld [vmem:[#allocation3 + $0x18] sm:$0xf]
  %v1964 = vcombine.low %v1956, %v1956
  %v1965 = vcombine.low %v1957, %v1957
  %v1966 = vcombine.low %v1958, %v1958
  %v1967 = vcombine.low %v1959, %v1959
  %1968 = vrot.lane.b32.xlu0 %v1964, 87
  %v1969 = vpop.permute.xlu0 %1968
  %1970 = vrot.lane.b32.xlu0 %v1956, 87
  %v1971 = vpop.permute.xlu0 %1970
  %1972 = vrot.lane.b32.xlu0 %v1965, 87
  %v1973 = vpop.permute.xlu0 %1972
  %1974 = vrot.lane.b32.xlu0 %v1957, 87
  %v1975 = vpop.permute.xlu0 %1974
  %1976 = vrot.lane.b32.xlu0 %v1966, 87
  %v1977 = vpop.permute.xlu0 %1976
  %1978 = vrot.lane.b32.xlu0 %v1958, 87
  %v1979 = vpop.permute.xlu0 %1978
  %1980 = vrot.lane.b32.xlu0 %v1967, 87
  %v1981 = vpop.permute.xlu0 %1980
  %v1982 = vsel %vm516, %v1969, %v1971
  %v1983 = vsel %vm516, %v1971, %v1973
  %v1984 = vsel %vm516, %v1973, %v1975
  %v1985 = vsel %vm516, %v1975, %v1977
  %v1986 = vsel %vm516, %v1977, %v1979
  %v1987 = vsel %vm516, %v1979, %v1981
  %1994 = vst [vmem:[#allocation2 + $0xf0] sm:$0xf0] %v1982
  %1995 = vst [vmem:[#allocation2 + $0xf8] sm:$0xf0] %v1983
  %1996 = vst [vmem:[#allocation2 + $0x100] sm:$0xf0] %v1984
  %1997 = vst [vmem:[#allocation2 + $0x108] sm:$0xf0] %v1985
  %1998 = vst [vmem:[#allocation2 + $0x110] sm:$0xf0] %v1986
  %1999 = vst [vmem:[#allocation2 + $0x118] sm:$0xf0] %v1987
  %v2000 = vld [vmem:[#allocation3] sm:$0xff]
  %v2001 = vld [vmem:[#allocation3 + $0x8] sm:$0xff]
  %v2002 = vld [vmem:[#allocation3 + $0x10] sm:$0xff]
  %v2003 = vld [vmem:[#allocation3 + $0x18] sm:$0xf]
  %v2008 = vcombine.high %v2000, %v2000
  %v2009 = vcombine.high %v2001, %v2001
  %v2010 = vcombine.high %v2002, %v2002
  %2011 = vrot.lane.b32.xlu0 %v2000, 86
  %v2012 = vpop.permute.xlu0 %2011
  %2013 = vrot.lane.b32.xlu0 %v2008, 86
  %v2014 = vpop.permute.xlu0 %2013
  %2015 = vrot.lane.b32.xlu0 %v2001, 86
  %v2016 = vpop.permute.xlu0 %2015
  %2017 = vrot.lane.b32.xlu0 %v2009, 86
  %v2018 = vpop.permute.xlu0 %2017
  %2019 = vrot.lane.b32.xlu0 %v2002, 86
  %v2020 = vpop.permute.xlu0 %2019
  %2021 = vrot.lane.b32.xlu0 %v2010, 86
  %v2022 = vpop.permute.xlu0 %2021
  %2023 = vrot.lane.b32.xlu0 %v2003, 86
  %v2024 = vpop.permute.xlu0 %2023
  %v2025 = vsel %vm560, %v2012, %v2014
  %v2026 = vsel %vm560, %v2014, %v2016
  %v2027 = vsel %vm560, %v2016, %v2018
  %v2028 = vsel %vm560, %v2018, %v2020
  %v2029 = vsel %vm560, %v2020, %v2022
  %v2030 = vsel %vm560, %v2022, %v2024
  %2037 = vst [vmem:[#allocation2 + $0x120] sm:$0xf] %v2025
  %2038 = vst [vmem:[#allocation2 + $0x128] sm:$0xf] %v2026
  %2039 = vst [vmem:[#allocation2 + $0x130] sm:$0xf] %v2027
  %2040 = vst [vmem:[#allocation2 + $0x138] sm:$0xf] %v2028
  %2041 = vst [vmem:[#allocation2 + $0x140] sm:$0xf] %v2029
  %2042 = vst [vmem:[#allocation2 + $0x148] sm:$0xf] %v2030
  %v2043 = vld [vmem:[#allocation3] sm:$0xff]
  %v2044 = vld [vmem:[#allocation3 + $0x8] sm:$0xff]
  %v2045 = vld [vmem:[#allocation3 + $0x10] sm:$0xff]
  %v2046 = vld [vmem:[#allocation3 + $0x18] sm:$0xf]
  %v2051 = vcombine.low %v2043, %v2043
  %v2052 = vcombine.low %v2044, %v2044
  %v2053 = vcombine.low %v2045, %v2045
  %v2054 = vcombine.low %v2046, %v2046
  %2055 = vrot.lane.b32.xlu0 %v2051, 85
  %v2056 = vpop.permute.xlu0 %2055
  %2057 = vrot.lane.b32.xlu0 %v2043, 85
  %v2058 = vpop.permute.xlu0 %2057
  %2059 = vrot.lane.b32.xlu0 %v2052, 85
  %v2060 = vpop.permute.xlu0 %2059
  %2061 = vrot.lane.b32.xlu0 %v2044, 85
  %v2062 = vpop.permute.xlu0 %2061
  %2063 = vrot.lane.b32.xlu0 %v2053, 85
  %v2064 = vpop.permute.xlu0 %2063
  %2065 = vrot.lane.b32.xlu0 %v2045, 85
  %v2066 = vpop.permute.xlu0 %2065
  %2067 = vrot.lane.b32.xlu0 %v2054, 85
  %v2068 = vpop.permute.xlu0 %2067
  %v2069 = vsel %vm605, %v2056, %v2058
  %v2070 = vsel %vm605, %v2058, %v2060
  %v2071 = vsel %vm605, %v2060, %v2062
  %v2072 = vsel %vm605, %v2062, %v2064
  %v2073 = vsel %vm605, %v2064, %v2066
  %v2074 = vsel %vm605, %v2066, %v2068
  %2081 = vst [vmem:[#allocation2 + $0x120] sm:$0xf0] %v2069
  %2082 = vst [vmem:[#allocation2 + $0x128] sm:$0xf0] %v2070
  %2083 = vst [vmem:[#allocation2 + $0x130] sm:$0xf0] %v2071
  %2084 = vst [vmem:[#allocation2 + $0x138] sm:$0xf0] %v2072
  %2085 = vst [vmem:[#allocation2 + $0x140] sm:$0xf0] %v2073
  %2086 = vst [vmem:[#allocation2 + $0x148] sm:$0xf0] %v2074
  %v2087 = vld [vmem:[#allocation3] sm:$0xff]
  %v2088 = vld [vmem:[#allocation3 + $0x8] sm:$0xff]
  %v2089 = vld [vmem:[#allocation3 + $0x10] sm:$0xff]
  %v2090 = vld [vmem:[#allocation3 + $0x18] sm:$0xf]
  %v2095 = vcombine.high %v2087, %v2087
  %v2096 = vcombine.high %v2088, %v2088
  %v2097 = vcombine.high %v2089, %v2089
  %2098 = vrot.lane.b32.xlu0 %v2087, 84
  %v2099 = vpop.permute.xlu0 %2098
  %2100 = vrot.lane.b32.xlu0 %v2095, 84
  %v2101 = vpop.permute.xlu0 %2100
  %2102 = vrot.lane.b32.xlu0 %v2088, 84
  %v2103 = vpop.permute.xlu0 %2102
  %2104 = vrot.lane.b32.xlu0 %v2096, 84
  %v2105 = vpop.permute.xlu0 %2104
  %2106 = vrot.lane.b32.xlu0 %v2089, 84
  %v2107 = vpop.permute.xlu0 %2106
  %2108 = vrot.lane.b32.xlu0 %v2097, 84
  %v2109 = vpop.permute.xlu0 %2108
  %2110 = vrot.lane.b32.xlu0 %v2090, 84
  %v2111 = vpop.permute.xlu0 %2110
  %v2112 = vsel %vm649, %v2099, %v2101
  %v2113 = vsel %vm649, %v2101, %v2103
  %v2114 = vsel %vm649, %v2103, %v2105
  %v2115 = vsel %vm649, %v2105, %v2107
  %v2116 = vsel %vm649, %v2107, %v2109
  %v2117 = vsel %vm649, %v2109, %v2111
  %2124 = vst [vmem:[#allocation2 + $0x150] sm:$0xf] %v2112
  %2125 = vst [vmem:[#allocation2 + $0x158] sm:$0xf] %v2113
  %2126 = vst [vmem:[#allocation2 + $0x160] sm:$0xf] %v2114
  %2127 = vst [vmem:[#allocation2 + $0x168] sm:$0xf] %v2115
  %2128 = vst [vmem:[#allocation2 + $0x170] sm:$0xf] %v2116
  %2129 = vst [vmem:[#allocation2 + $0x178] sm:$0xf] %v2117
  %v2130 = vld [vmem:[#allocation3] sm:$0xff]
  %v2131 = vld [vmem:[#allocation3 + $0x8] sm:$0xff]
  %v2132 = vld [vmem:[#allocation3 + $0x10] sm:$0xff]
  %v2133 = vld [vmem:[#allocation3 + $0x18] sm:$0xf]
  %v2138 = vcombine.low %v2130, %v2130
  %v2139 = vcombine.low %v2131, %v2131
  %v2140 = vcombine.low %v2132, %v2132
  %v2141 = vcombine.low %v2133, %v2133
  %2142 = vrot.lane.b32.xlu0 %v2138, 68
  %v2143 = vpop.permute.xlu0 %2142
  %2144 = vrot.lane.b32.xlu0 %v2130, 68
  %v2145 = vpop.permute.xlu0 %2144
  %2146 = vrot.lane.b32.xlu0 %v2139, 68
  %v2147 = vpop.permute.xlu0 %2146
  %2148 = vrot.lane.b32.xlu0 %v2131, 68
  %v2149 = vpop.permute.xlu0 %2148
  %2150 = vrot.lane.b32.xlu0 %v2140, 68
  %v2151 = vpop.permute.xlu0 %2150
  %2152 = vrot.lane.b32.xlu0 %v2132, 68
  %v2153 = vpop.permute.xlu0 %2152
  %2154 = vrot.lane.b32.xlu0 %v2141, 68
  %v2155 = vpop.permute.xlu0 %2154
  %v2156 = vsel %vm694, %v2143, %v2145
  %v2157 = vsel %vm694, %v2145, %v2147
  %v2158 = vsel %vm694, %v2147, %v2149
  %v2159 = vsel %vm694, %v2149, %v2151
  %v2160 = vsel %vm694, %v2151, %v2153
  %v2161 = vsel %vm694, %v2153, %v2155
  %2168 = vst [vmem:[#allocation2 + $0x150] sm:$0xf0] %v2156
  %2169 = vst [vmem:[#allocation2 + $0x158] sm:$0xf0] %v2157
  %2170 = vst [vmem:[#allocation2 + $0x160] sm:$0xf0] %v2158
  %2171 = vst [vmem:[#allocation2 + $0x168] sm:$0xf0] %v2159
  %2172 = vst [vmem:[#allocation2 + $0x170] sm:$0xf0] %v2160
  %2173 = vst [vmem:[#allocation2 + $0x178] sm:$0xf0] %v2161
  %v2174 = vld [vmem:[#allocation3] sm:$0xff]
  %v2175 = vld [vmem:[#allocation3 + $0x8] sm:$0xff]
  %v2176 = vld [vmem:[#allocation3 + $0x10] sm:$0xff]
  %v2177 = vld [vmem:[#allocation3 + $0x18] sm:$0xf]
  %v2182 = vcombine.high %v2174, %v2174
  %v2183 = vcombine.high %v2175, %v2175
  %v2184 = vcombine.high %v2176, %v2176
  %2185 = vrot.lane.b32.xlu0 %v2174, 67
  %v2186 = vpop.permute.xlu0 %2185
  %2187 = vrot.lane.b32.xlu0 %v2182, 67
  %v2188 = vpop.permute.xlu0 %2187
  %2189 = vrot.lane.b32.xlu0 %v2175, 67
  %v2190 = vpop.permute.xlu0 %2189
  %2191 = vrot.lane.b32.xlu0 %v2183, 67
  %v2192 = vpop.permute.xlu0 %2191
  %2193 = vrot.lane.b32.xlu0 %v2176, 67
  %v2194 = vpop.permute.xlu0 %2193
  %2195 = vrot.lane.b32.xlu0 %v2184, 67
  %v2196 = vpop.permute.xlu0 %2195
  %2197 = vrot.lane.b32.xlu0 %v2177, 67
  %v2198 = vpop.permute.xlu0 %2197
  %v2199 = vsel %vm738, %v2186, %v2188
  %v2200 = vsel %vm738, %v2188, %v2190
  %v2201 = vsel %vm738, %v2190, %v2192
  %v2202 = vsel %vm738, %v2192, %v2194
  %v2203 = vsel %vm738, %v2194, %v2196
  %v2204 = vsel %vm738, %v2196, %v2198
  %2211 = vst [vmem:[#allocation2 + $0x180] sm:$0xf] %v2199
  %2212 = vst [vmem:[#allocation2 + $0x188] sm:$0xf] %v2200
  %2213 = vst [vmem:[#allocation2 + $0x190] sm:$0xf] %v2201
  %2214 = vst [vmem:[#allocation2 + $0x198] sm:$0xf] %v2202
  %2215 = vst [vmem:[#allocation2 + $0x1a0] sm:$0xf] %v2203
  %2216 = vst [vmem:[#allocation2 + $0x1a8] sm:$0xf] %v2204
  %v2217 = vld [vmem:[#allocation3] sm:$0xff]
  %v2218 = vld [vmem:[#allocation3 + $0x8] sm:$0xff]
  %v2219 = vld [vmem:[#allocation3 + $0x10] sm:$0xff]
  %v2220 = vld [vmem:[#allocation3 + $0x18] sm:$0xf]
  %v2225 = vcombine.low %v2217, %v2217
  %v2226 = vcombine.low %v2218, %v2218
  %v2227 = vcombine.low %v2219, %v2219
  %v2228 = vcombine.low %v2220, %v2220
  %2229 = vrot.lane.b32.xlu0 %v2225, 66
  %v2230 = vpop.permute.xlu0 %2229
  %2231 = vrot.lane.b32.xlu0 %v2217, 66
  %v2232 = vpop.permute.xlu0 %2231
  %2233 = vrot.lane.b32.xlu0 %v2226, 66
  %v2234 = vpop.permute.xlu0 %2233
  %2235 = vrot.lane.b32.xlu0 %v2218, 66
  %v2236 = vpop.permute.xlu0 %2235
  %2237 = vrot.lane.b32.xlu0 %v2227, 66
  %v2238 = vpop.permute.xlu0 %2237
  %2239 = vrot.lane.b32.xlu0 %v2219, 66
  %v2240 = vpop.permute.xlu0 %2239
  %2241 = vrot.lane.b32.xlu0 %v2228, 66
  %v2242 = vpop.permute.xlu0 %2241
  %v2243 = vsel %vm783, %v2230, %v2232
  %v2244 = vsel %vm783, %v2232, %v2234
  %v2245 = vsel %vm783, %v2234, %v2236
  %v2246 = vsel %vm783, %v2236, %v2238
  %v2247 = vsel %vm783, %v2238, %v2240
  %v2248 = vsel %vm783, %v2240, %v2242
  %2255 = vst [vmem:[#allocation2 + $0x180] sm:$0xf0] %v2243
  %2256 = vst [vmem:[#allocation2 + $0x188] sm:$0xf0] %v2244
  %2257 = vst [vmem:[#allocation2 + $0x190] sm:$0xf0] %v2245
  %2258 = vst [vmem:[#allocation2 + $0x198] sm:$0xf0] %v2246
  %2259 = vst [vmem:[#allocation2 + $0x1a0] sm:$0xf0] %v2247
  %2260 = vst [vmem:[#allocation2 + $0x1a8] sm:$0xf0] %v2248
  %v2261 = vld [vmem:[#allocation3] sm:$0xff]
  %v2262 = vld [vmem:[#allocation3 + $0x8] sm:$0xff]
  %v2263 = vld [vmem:[#allocation3 + $0x10] sm:$0xff]
  %v2264 = vld [vmem:[#allocation3 + $0x18] sm:$0xf]
  %v2269 = vcombine.high %v2261, %v2261
  %v2270 = vcombine.high %v2262, %v2262
  %v2271 = vcombine.high %v2263, %v2263
  %2272 = vrot.lane.b32.xlu0 %v2261, 65
  %v2273 = vpop.permute.xlu0 %2272
  %2274 = vrot.lane.b32.xlu0 %v2269, 65
  %v2275 = vpop.permute.xlu0 %2274
  %2276 = vrot.lane.b32.xlu0 %v2262, 65
  %v2277 = vpop.permute.xlu0 %2276
  %2278 = vrot.lane.b32.xlu0 %v2270, 65
  %v2279 = vpop.permute.xlu0 %2278
  %2280 = vrot.lane.b32.xlu0 %v2263, 65
  %v2281 = vpop.permute.xlu0 %2280
  %2282 = vrot.lane.b32.xlu0 %v2271, 65
  %v2283 = vpop.permute.xlu0 %2282
  %2284 = vrot.lane.b32.xlu0 %v2264, 65
  %v2285 = vpop.permute.xlu0 %2284
  %v2286 = vsel %vm827, %v2273, %v2275
  %v2287 = vsel %vm827, %v2275, %v2277
  %v2288 = vsel %vm827, %v2277, %v2279
  %v2289 = vsel %vm827, %v2279, %v2281
  %v2290 = vsel %vm827, %v2281, %v2283
  %v2291 = vsel %vm827, %v2283, %v2285
  %2298 = vst [vmem:[#allocation2 + $0x1b0] sm:$0xf] %v2286
  %2299 = vst [vmem:[#allocation2 + $0x1b8] sm:$0xf] %v2287
  %2300 = vst [vmem:[#allocation2 + $0x1c0] sm:$0xf] %v2288
  %2301 = vst [vmem:[#allocation2 + $0x1c8] sm:$0xf] %v2289
  %2302 = vst [vmem:[#allocation2 + $0x1d0] sm:$0xf] %v2290
  %2303 = vst [vmem:[#allocation2 + $0x1d8] sm:$0xf] %v2291
  %v2304 = vld [vmem:[#allocation3] sm:$0xff]
  %v2305 = vld [vmem:[#allocation3 + $0x8] sm:$0xff]
  %v2306 = vld [vmem:[#allocation3 + $0x10] sm:$0xff]
  %v2307 = vld [vmem:[#allocation3 + $0x18] sm:$0xf]
  %v2312 = vcombine.low %v2304, %v2304
  %v2313 = vcombine.low %v2305, %v2305
  %v2314 = vcombine.low %v2306, %v2306
  %v2315 = vcombine.low %v2307, %v2307
  %2316 = vrot.lane.b32.xlu0 %v2312, 64
  %v2317 = vpop.permute.xlu0 %2316
  %2318 = vrot.lane.b32.xlu0 %v2304, 64
  %v2319 = vpop.permute.xlu0 %2318
  %2320 = vrot.lane.b32.xlu0 %v2313, 64
  %v2321 = vpop.permute.xlu0 %2320
  %2322 = vrot.lane.b32.xlu0 %v2305, 64
  %v2323 = vpop.permute.xlu0 %2322
  %2324 = vrot.lane.b32.xlu0 %v2314, 64
  %v2325 = vpop.permute.xlu0 %2324
  %2326 = vrot.lane.b32.xlu0 %v2306, 64
  %v2327 = vpop.permute.xlu0 %2326
  %2328 = vrot.lane.b32.xlu0 %v2315, 64
  %v2329 = vpop.permute.xlu0 %2328
  %v2330 = vsel %vm872, %v2317, %v2319
  %v2331 = vsel %vm872, %v2319, %v2321
  %v2332 = vsel %vm872, %v2321, %v2323
  %v2333 = vsel %vm872, %v2323, %v2325
  %v2334 = vsel %vm872, %v2325, %v2327
  %v2335 = vsel %vm872, %v2327, %v2329
  %2342 = vst [vmem:[#allocation2 + $0x1b0] sm:$0xf0] %v2330
  %2343 = vst [vmem:[#allocation2 + $0x1b8] sm:$0xf0] %v2331
  %2344 = vst [vmem:[#allocation2 + $0x1c0] sm:$0xf0] %v2332
  %2345 = vst [vmem:[#allocation2 + $0x1c8] sm:$0xf0] %v2333
  %2346 = vst [vmem:[#allocation2 + $0x1d0] sm:$0xf0] %v2334
  %2347 = vst [vmem:[#allocation2 + $0x1d8] sm:$0xf0] %v2335
  %v2348 = vld [vmem:[#allocation3] sm:$0xff]
  %v2349 = vld [vmem:[#allocation3 + $0x8] sm:$0xff]
  %v2350 = vld [vmem:[#allocation3 + $0x10] sm:$0xff]
  %v2351 = vld [vmem:[#allocation3 + $0x18] sm:$0xf]
  %v2356 = vcombine.high %v2348, %v2348
  %v2357 = vcombine.high %v2349, %v2349
  %v2358 = vcombine.high %v2350, %v2350
  %2359 = vrot.lane.b32.xlu0 %v2348, 48
  %v2360 = vpop.permute.xlu0 %2359
  %2361 = vrot.lane.b32.xlu0 %v2356, 48
  %v2362 = vpop.permute.xlu0 %2361
  %2363 = vrot.lane.b32.xlu0 %v2349, 48
  %v2364 = vpop.permute.xlu0 %2363
  %2365 = vrot.lane.b32.xlu0 %v2357, 48
  %v2366 = vpop.permute.xlu0 %2365
  %2367 = vrot.lane.b32.xlu0 %v2350, 48
  %v2368 = vpop.permute.xlu0 %2367
  %2369 = vrot.lane.b32.xlu0 %v2358, 48
  %v2370 = vpop.permute.xlu0 %2369
  %2371 = vrot.lane.b32.xlu0 %v2351, 48
  %v2372 = vpop.permute.xlu0 %2371
  %v2373 = vsel %vm916, %v2360, %v2362
  %v2374 = vsel %vm916, %v2362, %v2364
  %v2375 = vsel %vm916, %v2364, %v2366
  %v2376 = vsel %vm916, %v2366, %v2368
  %v2377 = vsel %vm916, %v2368, %v2370
  %v2378 = vsel %vm916, %v2370, %v2372
  %2385 = vst [vmem:[#allocation2 + $0x1e0] sm:$0xf] %v2373
  %2386 = vst [vmem:[#allocation2 + $0x1e8] sm:$0xf] %v2374
  %2387 = vst [vmem:[#allocation2 + $0x1f0] sm:$0xf] %v2375
  %2388 = vst [vmem:[#allocation2 + $0x1f8] sm:$0xf] %v2376
  %2389 = vst [vmem:[#allocation2 + $0x200] sm:$0xf] %v2377
  %2390 = vst [vmem:[#allocation2 + $0x208] sm:$0xf] %v2378
  %v2391 = vld [vmem:[#allocation3] sm:$0xff]
  %v2392 = vld [vmem:[#allocation3 + $0x8] sm:$0xff]
  %v2393 = vld [vmem:[#allocation3 + $0x10] sm:$0xff]
  %v2394 = vld [vmem:[#allocation3 + $0x18] sm:$0xf]
  %v2399 = vcombine.low %v2391, %v2391
  %v2400 = vcombine.low %v2392, %v2392
  %v2401 = vcombine.low %v2393, %v2393
  %v2402 = vcombine.low %v2394, %v2394
  %2403 = vrot.lane.b32.xlu0 %v2399, 47
  %v2404 = vpop.permute.xlu0 %2403
  %2405 = vrot.lane.b32.xlu0 %v2391, 47
  %v2406 = vpop.permute.xlu0 %2405
  %2407 = vrot.lane.b32.xlu0 %v2400, 47
  %v2408 = vpop.permute.xlu0 %2407
  %2409 = vrot.lane.b32.xlu0 %v2392, 47
  %v2410 = vpop.permute.xlu0 %2409
  %2411 = vrot.lane.b32.xlu0 %v2401, 47
  %v2412 = vpop.permute.xlu0 %2411
  %2413 = vrot.lane.b32.xlu0 %v2393, 47
  %v2414 = vpop.permute.xlu0 %2413
  %2415 = vrot.lane.b32.xlu0 %v2402, 47
  %v2416 = vpop.permute.xlu0 %2415
  %v2417 = vsel %vm961, %v2404, %v2406
  %v2418 = vsel %vm961, %v2406, %v2408
  %v2419 = vsel %vm961, %v2408, %v2410
  %v2420 = vsel %vm961, %v2410, %v2412
  %v2421 = vsel %vm961, %v2412, %v2414
  %v2422 = vsel %vm961, %v2414, %v2416
  %2429 = vst [vmem:[#allocation2 + $0x1e0] sm:$0xf0] %v2417
  %2430 = vst [vmem:[#allocation2 + $0x1e8] sm:$0xf0] %v2418
  %2431 = vst [vmem:[#allocation2 + $0x1f0] sm:$0xf0] %v2419
  %2432 = vst [vmem:[#allocation2 + $0x1f8] sm:$0xf0] %v2420
  %2433 = vst [vmem:[#allocation2 + $0x200] sm:$0xf0] %v2421
  %2434 = vst [vmem:[#allocation2 + $0x208] sm:$0xf0] %v2422
  %v2435 = vld [vmem:[#allocation3] sm:$0xff]
  %v2436 = vld [vmem:[#allocation3 + $0x8] sm:$0xff]
  %v2437 = vld [vmem:[#allocation3 + $0x10] sm:$0xff]
  %v2438 = vld [vmem:[#allocation3 + $0x18] sm:$0xf]
  %v2443 = vcombine.high %v2435, %v2435
  %v2444 = vcombine.high %v2436, %v2436
  %v2445 = vcombine.high %v2437, %v2437
  %2446 = vrot.lane.b32.xlu0 %v2435, 46
  %v2447 = vpop.permute.xlu0 %2446
  %2448 = vrot.lane.b32.xlu0 %v2443, 46
  %v2449 = vpop.permute.xlu0 %2448
  %2450 = vrot.lane.b32.xlu0 %v2436, 46
  %v2451 = vpop.permute.xlu0 %2450
  %2452 = vrot.lane.b32.xlu0 %v2444, 46
  %v2453 = vpop.permute.xlu0 %2452
  %2454 = vrot.lane.b32.xlu0 %v2437, 46
  %v2455 = vpop.permute.xlu0 %2454
  %2456 = vrot.lane.b32.xlu0 %v2445, 46
  %v2457 = vpop.permute.xlu0 %2456
  %2458 = vrot.lane.b32.xlu0 %v2438, 46
  %v2459 = vpop.permute.xlu0 %2458
  %v2460 = vsel %vm1005, %v2447, %v2449
  %v2461 = vsel %vm1005, %v2449, %v2451
  %v2462 = vsel %vm1005, %v2451, %v2453
  %v2463 = vsel %vm1005, %v2453, %v2455
  %v2464 = vsel %vm1005, %v2455, %v2457
  %v2465 = vsel %vm1005, %v2457, %v2459
  %2472 = vst [vmem:[#allocation2 + $0x210] sm:$0xf] %v2460
  %2473 = vst [vmem:[#allocation2 + $0x218] sm:$0xf] %v2461
  %2474 = vst [vmem:[#allocation2 + $0x220] sm:$0xf] %v2462
  %2475 = vst [vmem:[#allocation2 + $0x228] sm:$0xf] %v2463
  %2476 = vst [vmem:[#allocation2 + $0x230] sm:$0xf] %v2464
  %2477 = vst [vmem:[#allocation2 + $0x238] sm:$0xf] %v2465
  %v2478 = vld [vmem:[#allocation3] sm:$0xff]
  %v2479 = vld [vmem:[#allocation3 + $0x8] sm:$0xff]
  %v2480 = vld [vmem:[#allocation3 + $0x10] sm:$0xff]
  %v2481 = vld [vmem:[#allocation3 + $0x18] sm:$0xf]
  %v2486 = vcombine.low %v2478, %v2478
  %v2487 = vcombine.low %v2479, %v2479
  %v2488 = vcombine.low %v2480, %v2480
  %v2489 = vcombine.low %v2481, %v2481
  %2490 = vrot.lane.b32.xlu0 %v2486, 45
  %v2491 = vpop.permute.xlu0 %2490
  %2492 = vrot.lane.b32.xlu0 %v2478, 45
  %v2493 = vpop.permute.xlu0 %2492
  %2494 = vrot.lane.b32.xlu0 %v2487, 45
  %v2495 = vpop.permute.xlu0 %2494
  %2496 = vrot.lane.b32.xlu0 %v2479, 45
  %v2497 = vpop.permute.xlu0 %2496
  %2498 = vrot.lane.b32.xlu0 %v2488, 45
  %v2499 = vpop.permute.xlu0 %2498
  %2500 = vrot.lane.b32.xlu0 %v2480, 45
  %v2501 = vpop.permute.xlu0 %2500
  %2502 = vrot.lane.b32.xlu0 %v2489, 45
  %v2503 = vpop.permute.xlu0 %2502
  %v2504 = vsel %vm1050, %v2491, %v2493
  %v2505 = vsel %vm1050, %v2493, %v2495
  %v2506 = vsel %vm1050, %v2495, %v2497
  %v2507 = vsel %vm1050, %v2497, %v2499
  %v2508 = vsel %vm1050, %v2499, %v2501
  %v2509 = vsel %vm1050, %v2501, %v2503
  %2516 = vst [vmem:[#allocation2 + $0x210] sm:$0xf0] %v2504
  %2517 = vst [vmem:[#allocation2 + $0x218] sm:$0xf0] %v2505
  %2518 = vst [vmem:[#allocation2 + $0x220] sm:$0xf0] %v2506
  %2519 = vst [vmem:[#allocation2 + $0x228] sm:$0xf0] %v2507
  %2520 = vst [vmem:[#allocation2 + $0x230] sm:$0xf0] %v2508
  %2521 = vst [vmem:[#allocation2 + $0x238] sm:$0xf0] %v2509
  %v2522 = vld [vmem:[#allocation3] sm:$0xff]
  %v2523 = vld [vmem:[#allocation3 + $0x8] sm:$0xff]
  %v2524 = vld [vmem:[#allocation3 + $0x10] sm:$0xff]
  %v2525 = vld [vmem:[#allocation3 + $0x18] sm:$0xf]
  %v2530 = vcombine.high %v2522, %v2522
  %v2531 = vcombine.high %v2523, %v2523
  %v2532 = vcombine.high %v2524, %v2524
  %2533 = vrot.lane.b32.xlu0 %v2522, 44
  %v2534 = vpop.permute.xlu0 %2533
  %2535 = vrot.lane.b32.xlu0 %v2530, 44
  %v2536 = vpop.permute.xlu0 %2535
  %2537 = vrot.lane.b32.xlu0 %v2523, 44
  %v2538 = vpop.permute.xlu0 %2537
  %2539 = vrot.lane.b32.xlu0 %v2531, 44
  %v2540 = vpop.permute.xlu0 %2539
  %2541 = vrot.lane.b32.xlu0 %v2524, 44
  %v2542 = vpop.permute.xlu0 %2541
  %2543 = vrot.lane.b32.xlu0 %v2532, 44
  %v2544 = vpop.permute.xlu0 %2543
  %2545 = vrot.lane.b32.xlu0 %v2525, 44
  %v2546 = vpop.permute.xlu0 %2545
  %v2547 = vsel %vm1094, %v2534, %v2536
  %v2548 = vsel %vm1094, %v2536, %v2538
  %v2549 = vsel %vm1094, %v2538, %v2540
  %v2550 = vsel %vm1094, %v2540, %v2542
  %v2551 = vsel %vm1094, %v2542, %v2544
  %v2552 = vsel %vm1094, %v2544, %v2546
  %2559 = vst [vmem:[#allocation2 + $0x240] sm:$0xf] %v2547
  %2560 = vst [vmem:[#allocation2 + $0x248] sm:$0xf] %v2548
  %2561 = vst [vmem:[#allocation2 + $0x250] sm:$0xf] %v2549
  %2562 = vst [vmem:[#allocation2 + $0x258] sm:$0xf] %v2550
  %2563 = vst [vmem:[#allocation2 + $0x260] sm:$0xf] %v2551
  %2564 = vst [vmem:[#allocation2 + $0x268] sm:$0xf] %v2552
  %s2565 = scalar_lea.vmem %s1, 4
  %v2566 = vld [vmem:[%s2565] sm:$0xf]
  %v2567 = vld [vmem:[#allocation2] sm:$0xff]
  %v2568 = vld [vmem:[#allocation2 + $0x8] sm:$0xff]
  %v2569 = vld [vmem:[#allocation2 + $0x10] sm:$0xff]
  %v2570 = vld [vmem:[#allocation2 + $0x18] sm:$0xff]
  %v2571 = vld [vmem:[#allocation2 + $0x20] sm:$0xff]
  %v2572 = vld [vmem:[#allocation2 + $0x28] sm:$0xff]
  %v2573 = vld [vmem:[#allocation2 + $0x30] sm:$0xff]
  %v2574 = vld [vmem:[#allocation2 + $0x38] sm:$0xff]
  %v2575 = vld [vmem:[#allocation2 + $0x40] sm:$0xff]
  %v2576 = vld [vmem:[#allocation2 + $0x48] sm:$0xff]
  %v2577 = vld [vmem:[#allocation2 + $0x50] sm:$0xff]
  %v2578 = vld [vmem:[#allocation2 + $0x58] sm:$0xff]
  %v2579 = vld [vmem:[#allocation2 + $0x60] sm:$0xff]
  %v2580 = vld [vmem:[#allocation2 + $0x68] sm:$0xff]
  %v2581 = vld [vmem:[#allocation2 + $0x70] sm:$0xff]
  %v2582 = vld [vmem:[#allocation2 + $0x78] sm:$0xff]
  %v2583 = vld [vmem:[#allocation2 + $0x80] sm:$0xff]
  %v2584 = vld [vmem:[#allocation2 + $0x88] sm:$0xff]
  %v2585 = vld [vmem:[#allocation2 + $0x90] sm:$0xff]
  %v2586 = vld [vmem:[#allocation2 + $0x98] sm:$0xff]
  %v2587 = vld [vmem:[#allocation2 + $0xa0] sm:$0xff]
  %v2588 = vld [vmem:[#allocation2 + $0xa8] sm:$0xff]
  %v2589 = vld [vmem:[#allocation2 + $0xb0] sm:$0xff]
  %v2590 = vld [vmem:[#allocation2 + $0xb8] sm:$0xff]
  %v2591 = vld [vmem:[#allocation2 + $0xc0] sm:$0xff]
  %v2592 = vld [vmem:[#allocation2 + $0xc8] sm:$0xff]
  %v2593 = vld [vmem:[#allocation2 + $0xd0] sm:$0xff]
  %v2594 = vld [vmem:[#allocation2 + $0xd8] sm:$0xff]
  %v2595 = vld [vmem:[#allocation2 + $0xe0] sm:$0xff]
  %v2596 = vld [vmem:[#allocation2 + $0xe8] sm:$0xff]
  %v2597 = vld [vmem:[#allocation2 + $0xf0] sm:$0xff]
  %v2598 = vld [vmem:[#allocation2 + $0xf8] sm:$0xff]
  %v2599 = vld [vmem:[#allocation2 + $0x100] sm:$0xff]
  %v2600 = vld [vmem:[#allocation2 + $0x108] sm:$0xff]
  %v2601 = vld [vmem:[#allocation2 + $0x110] sm:$0xff]
  %v2602 = vld [vmem:[#allocation2 + $0x118] sm:$0xff]
  %v2603 = vld [vmem:[#allocation2 + $0x120] sm:$0xff]
  %v2604 = vld [vmem:[#allocation2 + $0x128] sm:$0xff]
  %v2605 = vld [vmem:[#allocation2 + $0x130] sm:$0xff]
  %v2606 = vld [vmem:[#allocation2 + $0x138] sm:$0xff]
  %v2607 = vld [vmem:[#allocation2 + $0x140] sm:$0xff]
  %v2608 = vld [vmem:[#allocation2 + $0x148] sm:$0xff]
  %v2609 = vld [vmem:[#allocation2 + $0x150] sm:$0xff]
  %v2610 = vld [vmem:[#allocation2 + $0x158] sm:$0xff]
  %v2611 = vld [vmem:[#allocation2 + $0x160] sm:$0xff]
  %v2612 = vld [vmem:[#allocation2 + $0x168] sm:$0xff]
  %v2613 = vld [vmem:[#allocation2 + $0x170] sm:$0xff]
  %v2614 = vld [vmem:[#allocation2 + $0x178] sm:$0xff]
  %v2615 = vld [vmem:[#allocation2 + $0x180] sm:$0xff]
  %v2616 = vld [vmem:[#allocation2 + $0x188] sm:$0xff]
  %v2617 = vld [vmem:[#allocation2 + $0x190] sm:$0xff]
  %v2618 = vld [vmem:[#allocation2 + $0x198] sm:$0xff]
  %v2619 = vld [vmem:[#allocation2 + $0x1a0] sm:$0xff]
  %v2620 = vld [vmem:[#allocation2 + $0x1a8] sm:$0xff]
  %v2621 = vld [vmem:[#allocation2 + $0x1b0] sm:$0xff]
  %v2622 = vld [vmem:[#allocation2 + $0x1b8] sm:$0xff]
  %v2623 = vld [vmem:[#allocation2 + $0x1c0] sm:$0xff]
  %v2624 = vld [vmem:[#allocation2 + $0x1c8] sm:$0xff]
  %v2625 = vld [vmem:[#allocation2 + $0x1d0] sm:$0xff]
  %v2626 = vld [vmem:[#allocation2 + $0x1d8] sm:$0xff]
  %v2627 = vld [vmem:[#allocation2 + $0x1e0] sm:$0xff]
  %v2628 = vld [vmem:[#allocation2 + $0x1e8] sm:$0xff]
  %v2629 = vld [vmem:[#allocation2 + $0x1f0] sm:$0xff]
  %v2630 = vld [vmem:[#allocation2 + $0x1f8] sm:$0xff]
  %v2631 = vld [vmem:[#allocation2 + $0x200] sm:$0xff]
  %v2632 = vld [vmem:[#allocation2 + $0x208] sm:$0xff]
  %v2633 = vld [vmem:[#allocation2 + $0x210] sm:$0xff]
  %v2634 = vld [vmem:[#allocation2 + $0x218] sm:$0xff]
  %v2635 = vld [vmem:[#allocation2 + $0x220] sm:$0xff]
  %v2636 = vld [vmem:[#allocation2 + $0x228] sm:$0xff]
  %v2637 = vld [vmem:[#allocation2 + $0x230] sm:$0xff]
  %v2638 = vld [vmem:[#allocation2 + $0x238] sm:$0xff]
  %v2639 = vld [vmem:[#allocation2 + $0x240] sm:$0xff]
  %v2640 = vld [vmem:[#allocation2 + $0x248] sm:$0xff]
  %v2641 = vld [vmem:[#allocation2 + $0x250] sm:$0xff]
  %v2642 = vld [vmem:[#allocation2 + $0x258] sm:$0xff]
  %v2643 = vld [vmem:[#allocation2 + $0x260] sm:$0xff]
  %v2644 = vld [vmem:[#allocation2 + $0x268] sm:$0xff]
  %v2646 = vsel %vm427, %v2566, 0
  %2648 = vmatprep.subr.mxu0 %v2568
  %2649 = vmatpush1.msra.mxu0 %v2567
  %2650 = vmatprep.subr.mxu0 %v2574
  %2651 = vmatpush1.msra.mxu0 %v2573
  %2652 = vmatprep.subr.mxu0 %v2580
  %2653 = vmatpush1.msra.mxu0 %v2579
  %2654 = vmatprep.subr.mxu0 %v2586
  %2655 = vmatpush1.msra.mxu0 %v2585
  %2656 = vmatprep.subr.mxu0 %v2592
  %2657 = vmatpush1.msra.mxu0 %v2591
  %2658 = vmatprep.subr.mxu0 %v2598
  %2659 = vmatpush1.msra.mxu0 %v2597
  %2660 = vmatprep.subr.mxu0 %v2604
  %2661 = vmatpush1.msra.mxu0 %v2603
  %2662 = vmatprep.subr.mxu0 %v2610
  %2663 = vmatpush1.msra.mxu0 %v2609
  %2664 = vmatprep.subr.mxu0 %v2616
  %2665 = vmatpush1.msra.mxu0 %v2615
  %2666 = vmatprep.subr.mxu0 %v2622
  %2667 = vmatpush1.msra.mxu0 %v2621
  %2668 = vmatprep.subr.mxu0 %v2628
  %2669 = vmatpush1.msra.mxu0 %v2627
  %2670 = vmatprep.subr.mxu0 %v2634
  %2671 = vmatpush1.msra.mxu0 %v2633
  %2672 = vmatprep.subr.mxu0 %v2640
  %2673 = vmatpush1.msra.mxu0 %v2639
  %2674 = vmatprep.subr.mxu0 0.0
  %2675 = vmatpush1.msra.mxu0 0.0
  %2676 = vmatprep.subr.mxu0 0.0
  %2677 = vmatpush1.msra.mxu0 0.0
  %2678 = vmatprep.subr.mxu0 0.0
  %2679 = vmatpush1.msra.mxu0 0.0
  %2680 = vmatprep.subr.mxu0 0.0
  %2681 = vmatpush1.msra.mxu0 0.0
  %2682 = vmatprep.subr.mxu0 0.0
  %2683 = vmatpush1.msra.mxu0 0.0
  %2684 = vmatprep.subr.mxu0 0.0
  %2685 = vmatpush1.msra.mxu0 0.0
  %2686 = vmatprep.subr.mxu0 0.0
  %2687 = vmatpush1.msra.mxu0 0.0
  %2688 = vmatprep.subr.mxu0 0.0
  %2689 = vmatpush1.msra.mxu0 0.0
  %2690 = vmatprep.subr.mxu0 0.0
  %2691 = vmatpush1.msra.mxu0 0.0
  %2692 = vmatprep.subr.mxu0 0.0
  %2693 = vmatpush1.msra.mxu0 0.0
  %2694 = vmatprep.subr.mxu0 0.0
  %2695 = vmatpush1.msra.mxu0 0.0
  %2696 = vmatprep.subr.mxu0 0.0
  %2697 = vmatpush1.msra.mxu0 0.0
  %2698 = vmatprep.subr.mxu0 0.0
  %2699 = vmatpush1.msra.mxu0 0.0
  %2700 = vmatprep.subr.mxu0 0.0
  %2701 = vmatpush1.msra.mxu0 0.0
  %2702 = vmatprep.subr.mxu0 0.0
  %2703 = vmatpush1.msra.mxu0 0.0
  %2704 = vmatprep.subr.mxu0 0.0
  %2705 = vmatpush1.msra.mxu0 0.0
  %2706 = vmatprep.subr.mxu0 0.0
  %2707 = vmatpush1.msra.mxu0 0.0
  %2708 = vmatprep.subr.mxu0 0.0
  %2709 = vmatpush1.msra.mxu0 0.0
  %2710 = vmatprep.subr.mxu0 0.0
  %2711 = vmatpush1.msra.mxu0 0.0
  %2712 = vmatprep.mubr.f32.mxu0 0.0
  %2713 = vmatmul.mubr.f32.gmra.mrb[0].mxu0 %v2646
  %v2714 = vpop.f32.mrb[0].mxu0
  %v2715 = vadd.f32 0.0, %v2714
  %v2716 = vpop.f32.mrb[0].mxu0
  %v2717 = vadd.f32 0.0, %v2716
  %2718 = vdwg.mxu0
  %2719 = vmatprep.subr.mxu0 %v2570
  %2720 = vmatpush1.msra.mxu0 %v2569
  %2721 = vmatprep.subr.mxu0 %v2576
  %2722 = vmatpush1.msra.mxu0 %v2575
  %2723 = vmatprep.subr.mxu0 %v2582
  %2724 = vmatpush1.msra.mxu0 %v2581
  %2725 = vmatprep.subr.mxu0 %v2588
  %2726 = vmatpush1.msra.mxu0 %v2587
  %2727 = vmatprep.subr.mxu0 %v2594
  %2728 = vmatpush1.msra.mxu0 %v2593
  %2729 = vmatprep.subr.mxu0 %v2600
  %2730 = vmatpush1.msra.mxu0 %v2599
  %2731 = vmatprep.subr.mxu0 %v2606
  %2732 = vmatpush1.msra.mxu0 %v2605
  %2733 = vmatprep.subr.mxu0 %v2612
  %2734 = vmatpush1.msra.mxu0 %v2611
  %2735 = vmatprep.subr.mxu0 %v2618
  %2736 = vmatpush1.msra.mxu0 %v2617
  %2737 = vmatprep.subr.mxu0 %v2624
  %2738 = vmatpush1.msra.mxu0 %v2623
  %2739 = vmatprep.subr.mxu0 %v2630
  %2740 = vmatpush1.msra.mxu0 %v2629
  %2741 = vmatprep.subr.mxu0 %v2636
  %2742 = vmatpush1.msra.mxu0 %v2635
  %2743 = vmatprep.subr.mxu0 %v2642
  %2744 = vmatpush1.msra.mxu0 %v2641
  %2745 = vmatprep.subr.mxu0 0.0
  %2746 = vmatpush1.msra.mxu0 0.0
  %2747 = vmatprep.subr.mxu0 0.0
  %2748 = vmatpush1.msra.mxu0 0.0
  %2749 = vmatprep.subr.mxu0 0.0
  %2750 = vmatpush1.msra.mxu0 0.0
  %2751 = vmatprep.subr.mxu0 0.0
  %2752 = vmatpush1.msra.mxu0 0.0
  %2753 = vmatprep.subr.mxu0 0.0
  %2754 = vmatpush1.msra.mxu0 0.0
  %2755 = vmatprep.subr.mxu0 0.0
  %2756 = vmatpush1.msra.mxu0 0.0
  %2757 = vmatprep.subr.mxu0 0.0
  %2758 = vmatpush1.msra.mxu0 0.0
  %2759 = vmatprep.subr.mxu0 0.0
  %2760 = vmatpush1.msra.mxu0 0.0
  %2761 = vmatprep.subr.mxu0 0.0
  %2762 = vmatpush1.msra.mxu0 0.0
  %2763 = vmatprep.subr.mxu0 0.0
  %2764 = vmatpush1.msra.mxu0 0.0
  %2765 = vmatprep.subr.mxu0 0.0
  %2766 = vmatpush1.msra.mxu0 0.0
  %2767 = vmatprep.subr.mxu0 0.0
  %2768 = vmatpush1.msra.mxu0 0.0
  %2769 = vmatprep.subr.mxu0 0.0
  %2770 = vmatpush1.msra.mxu0 0.0
  %2771 = vmatprep.subr.mxu0 0.0
  %2772 = vmatpush1.msra.mxu0 0.0
  %2773 = vmatprep.subr.mxu0 0.0
  %2774 = vmatpush1.msra.mxu0 0.0
  %2775 = vmatprep.subr.mxu0 0.0
  %2776 = vmatpush1.msra.mxu0 0.0
  %2777 = vmatprep.subr.mxu0 0.0
  %2778 = vmatpush1.msra.mxu0 0.0
  %2779 = vmatprep.subr.mxu0 0.0
  %2780 = vmatpush1.msra.mxu0 0.0
  %2781 = vmatprep.subr.mxu0 0.0
  %2782 = vmatpush1.msra.mxu0 0.0
  %2783 = vmatprep.mubr.f32.mxu0 0.0
  %2784 = vmatmul.mubr.f32.gmra.mrb[0].mxu0 %v2646
  %v2785 = vpop.f32.mrb[0].mxu0
  %v2786 = vadd.f32 0.0, %v2785
  %v2787 = vpop.f32.mrb[0].mxu0
  %v2788 = vadd.f32 0.0, %v2787
  %2789 = vdwg.mxu0
  %2790 = vmatprep.subr.mxu0 %v2572
  %2791 = vmatpush1.msra.mxu0 %v2571
  %2792 = vmatprep.subr.mxu0 %v2578
  %2793 = vmatpush1.msra.mxu0 %v2577
  %2794 = vmatprep.subr.mxu0 %v2584
  %2795 = vmatpush1.msra.mxu0 %v2583
  %2796 = vmatprep.subr.mxu0 %v2590
  %2797 = vmatpush1.msra.mxu0 %v2589
  %2798 = vmatprep.subr.mxu0 %v2596
  %2799 = vmatpush1.msra.mxu0 %v2595
  %2800 = vmatprep.subr.mxu0 %v2602
  %2801 = vmatpush1.msra.mxu0 %v2601
  %2802 = vmatprep.subr.mxu0 %v2608
  %2803 = vmatpush1.msra.mxu0 %v2607
  %2804 = vmatprep.subr.mxu0 %v2614
  %2805 = vmatpush1.msra.mxu0 %v2613
  %2806 = vmatprep.subr.mxu0 %v2620
  %2807 = vmatpush1.msra.mxu0 %v2619
  %2808 = vmatprep.subr.mxu0 %v2626
  %2809 = vmatpush1.msra.mxu0 %v2625
  %2810 = vmatprep.subr.mxu0 %v2632
  %2811 = vmatpush1.msra.mxu0 %v2631
  %2812 = vmatprep.subr.mxu0 %v2638
  %2813 = vmatpush1.msra.mxu0 %v2637
  %2814 = vmatprep.subr.mxu0 %v2644
  %2815 = vmatpush1.msra.mxu0 %v2643
  %2816 = vmatprep.subr.mxu0 0.0
  %2817 = vmatpush1.msra.mxu0 0.0
  %2818 = vmatprep.subr.mxu0 0.0
  %2819 = vmatpush1.msra.mxu0 0.0
  %2820 = vmatprep.subr.mxu0 0.0
  %2821 = vmatpush1.msra.mxu0 0.0
  %2822 = vmatprep.subr.mxu0 0.0
  %2823 = vmatpush1.msra.mxu0 0.0
  %2824 = vmatprep.subr.mxu0 0.0
  %2825 = vmatpush1.msra.mxu0 0.0
  %2826 = vmatprep.subr.mxu0 0.0
  %2827 = vmatpush1.msra.mxu0 0.0
  %2828 = vmatprep.subr.mxu0 0.0
  %2829 = vmatpush1.msra.mxu0 0.0
  %2830 = vmatprep.subr.mxu0 0.0
  %2831 = vmatpush1.msra.mxu0 0.0
  %2832 = vmatprep.subr.mxu0 0.0
  %2833 = vmatpush1.msra.mxu0 0.0
  %2834 = vmatprep.subr.mxu0 0.0
  %2835 = vmatpush1.msra.mxu0 0.0
  %2836 = vmatprep.subr.mxu0 0.0
  %2837 = vmatpush1.msra.mxu0 0.0
  %2838 = vmatprep.subr.mxu0 0.0
  %2839 = vmatpush1.msra.mxu0 0.0
  %2840 = vmatprep.subr.mxu0 0.0
  %2841 = vmatpush1.msra.mxu0 0.0
  %2842 = vmatprep.subr.mxu0 0.0
  %2843 = vmatpush1.msra.mxu0 0.0
  %2844 = vmatprep.subr.mxu0 0.0
  %2845 = vmatpush1.msra.mxu0 0.0
  %2846 = vmatprep.subr.mxu0 0.0
  %2847 = vmatpush1.msra.mxu0 0.0
  %2848 = vmatprep.subr.mxu0 0.0
  %2849 = vmatpush1.msra.mxu0 0.0
  %2850 = vmatprep.subr.mxu0 0.0
  %2851 = vmatpush1.msra.mxu0 0.0
  %2852 = vmatprep.subr.mxu0 0.0
  %2853 = vmatpush1.msra.mxu0 0.0
  %2854 = vmatprep.mubr.f32.mxu0 0.0
  %2855 = vmatmul.mubr.f32.gmra.mrb[0].mxu0 %v2646
  %v2856 = vpop.f32.mrb[0].mxu0
  %v2857 = vadd.f32 0.0, %v2856
  %v2858 = vpop.f32.mrb[0].mxu0
  %v2859 = vadd.f32 0.0, %v2858
  %2860 = vdwg.mxu0
  %v2861 = vld [vmem:[%s0] sm:$0xff]
  %v2862 = vld [vmem:[%s0 + $0x8] sm:$0xff]
  %v2863 = vld [vmem:[%s0 + $0x10] sm:$0xff]
  %v2864 = vld [vmem:[%s0 + $0x18] sm:$0xf]
  %v2871 = vcombine.low %v2715, %v2717
  %v2872 = vcombine.low %v2786, %v2788
  %v2873 = vcombine.low %v2857, %v2859
  %2874 = vrot.lane.b32.xlu0 %v2871, 42
  %v2875 = vpop.permute.xlu0 %2874
  %2876 = vrot.lane.b32.xlu0 %v2872, 42
  %v2877 = vpop.permute.xlu0 %2876
  %2878 = vrot.lane.b32.xlu0 %v2873, 42
  %v2879 = vpop.permute.xlu0 %2878
  %v2880 = vrot.slane %v2875, 4
  %v2881 = vrot.slane %v2877, 4
  %v2882 = vrot.slane %v2879, 4
  %v2883 = vsel %vm1484, %v2880, %v2875
  %v2884 = vsel %vm1486, %v2880, %v2881
  %v2885 = vsel %vm1484, %v2884, %v2877
  %v2886 = vsel %vm1486, %v2881, %v2882
  %v2887 = vsel %vm1484, %v2886, %v2879
  %v2892 = vadd.f32 %v2861, %v2883
  %v2893 = vadd.f32 %v2862, %v2885
  %v2894 = vadd.f32 %v2863, %v2887
  %v2895 = vadd.f32 %v2864, %v2882
  %2900 = vrot.lane.b32.xlu0 %v2892, 86
  %v2901 = vpop.permute.xlu0 %2900
  %2902 = vrot.lane.b32.xlu0 %v2893, 86
  %v2903 = vpop.permute.xlu0 %2902
  %2904 = vrot.lane.b32.xlu0 %v2894, 86
  %v2905 = vpop.permute.xlu0 %2904
  %2906 = vrot.lane.b32.xlu0 %v2895, 86
  %v2907 = vpop.permute.xlu0 %2906
  %v2908 = vrot.slane %v2901, 4
  %v2909 = vrot.slane %v2903, 4
  %v2910 = vrot.slane %v2905, 4
  %v2911 = vrot.slane %v2907, 4
  %v2912 = vsel %vm1486, %v2908, %v2909
  %v2913 = vsel %vm560, %v2901, %v2912
  %v2914 = vsel %vm1486, %v2909, %v2910
  %v2915 = vsel %vm560, %v2903, %v2914
  %v2916 = vsel %vm1486, %v2910, %v2911
  %v2917 = vsel %vm560, %v2905, %v2916
  %2921 = vst [vmem:[%s3] sm:$0xff] %v2913
  %2922 = vst [vmem:[%s3 + $0x8] sm:$0xff] %v2915
  %2923 = vst [vmem:[%s3 + $0x10] sm:$0xff] %v2917
  // Predicated region
  $region14: #{residual_layer.1} parent=0 // pred_check
    _
  $region15: #{residual_layer.1} parent=0 // pred_check_branch
    %2925 = sbr.rel (0) target = $region17
  $region16: #{residual_layer.1} parent=0 // pred_region
    _
  $region17: #{residual_layer.1} parent=0 // pred_fallthru
    _
  // Predicated region
  $region18: #{residual_layer.1} parent=0 // pred_check
    _
  $region19: #{residual_layer.1} parent=0 // pred_check_branch
    %2927 = sbr.rel (0) target = $region21
  $region20: #{residual_layer.1} parent=0 // pred_region
    _
  $region21: #{residual_layer.1} parent=0 // pred_fallthru
    _

</llo_original>
